<compile_context>
chip_gen: v7x
topology: tpu7x:2x2x1
jax: 0.10.0
libtpu: 0.0.40
codegen_flags: <defaults>
</compile_context>

<pallas_src>
import functools
import math

import jax
import jax.numpy as jnp
from jax.experimental import pallas as pl
from jax.experimental.pallas import tpu as pltpu


NEG_INF = -1e30  # finite sentinel: softmax degrades gracefully on fully-masked rows


# ----------------------------- in-kernel helpers -----------------------------

def _layer_norm(x, g, b, eps=1e-5):
    mean = jnp.mean(x, axis=-1, keepdims=True)
    var = jnp.mean((x - mean) ** 2, axis=-1, keepdims=True)
    return (x - mean) * jax.lax.rsqrt(var + eps) * g + b


def _mha(x_q2, x_kv2, wq, wk, wv, wo, add_mask, bb, Tq, Skv, num_heads,
         need_weights=False):
    """Multi-head attention over a folded batch block.

    x_q2: (bb*Tq, E) flattened queries, x_kv2: (bb*Skv, E); weights (E, E).
    add_mask: (bb, Tq, Skv) additive mask (already broadcast once).
    Returns (out (bb*Tq, E), attn weights (bb, H, Tq, Skv) or None).
    """
    E = x_q2.shape[-1]
    hd = E // num_heads
    scale = 1.0 / math.sqrt(hd)

    # Batched projections: one (bb*T, E) x (E, E) MXU op each; scale folded into q.
    q2 = jnp.dot(x_q2, wq, preferred_element_type=jnp.float32) * scale
    k2 = jnp.dot(x_kv2, wk, preferred_element_type=jnp.float32)
    v2 = jnp.dot(x_kv2, wv, preferred_element_type=jnp.float32)

    w_heads = []
    out = None
    for h in range(num_heads):                      # unrolled; H is small
        sl = slice(h * hd, (h + 1) * hd)
        qh = q2[:, sl].reshape(bb, Tq, hd)          # sublane-aligned leading split
        kh = k2[:, sl].reshape(bb, Skv, hd)
        vh = v2[:, sl].reshape(bb, Skv, hd)
        # scores: contract head dim directly (no kh transpose), batched over bb.
        s = jax.lax.dot_general(qh, kh, (((2,), (2,)), ((0,), (0,))),
                                preferred_element_type=jnp.float32)
        w = jax.nn.softmax(s + add_mask, axis=-1)   # (bb, Tq, Skv)
        if need_weights:
            w_heads.append(w)
        ctx = jax.lax.dot_general(w, vh, (((2,), (1,)), ((0,), (0,))),
                                  preferred_element_type=jnp.float32)
        # Merge heads as a sum of per-head output projections (no lane-axis concat);
        # wo row-slice is 8-sublane aligned.
        part = jnp.dot(ctx.reshape(bb * Tq, hd), wo[sl, :],
                       preferred_element_type=jnp.float32)
        out = part if out is None else out + part

    attn = jnp.stack(w_heads, axis=1) if need_weights else None  # (bb, H, Tq, Skv)
    return out, attn


# ------------------------------- Pallas kernel -------------------------------

def decoder_stack_kernel(num_heads, bb, T, S, E,
                         x0_ref, enc_ref, cmask_ref, pmask_ref,
                         wq1_ref, wk1_ref, wv1_ref, wo1_ref, g1_ref, b1_ref,
                         wq2_ref, wk2_ref, wv2_ref, wo2_ref, g2_ref, b2_ref,
                         fw1_ref, fb1_ref, fw2_ref, fb2_ref, g3_ref, b3_ref,
                         out_x_ref, attn_ref, x_state):
    l = pl.program_id(1)

    @pl.when(l == 0)
    def _():
        # First layer of this batch block: seed the resident activation.
        x_state[...] = x0_ref[...]

    x2 = x_state[...].reshape(bb * T, E)            # (bb*T, E) folded batch
    enc2 = enc_ref[...].reshape(bb * S, E)          # (bb*S, E)

    # Hoisted mask broadcasts: once per attention, not per head.
    causal_add = jnp.broadcast_to(cmask_ref[...][None, :, :], (bb, T, T))
    pad_add = jnp.broadcast_to(pmask_ref[...], (bb, T, S))

    # ---- masked (causal) self attention + residual + LayerNorm ----
    sa, _ = _mha(x2, x2, wq1_ref[0], wk1_ref[0], wv1_ref[0], wo1_ref[0],
                 causal_add, bb, T, T, num_heads, need_weights=False)
    h1 = _layer_norm(sa + x2, g1_ref[0, 0], b1_ref[0, 0])

    # ---- encoder-decoder attention + residual + LayerNorm ----
    ed, attn = _mha(h1, enc2, wq2_ref[0], wk2_ref[0], wv2_ref[0], wo2_ref[0],
                    pad_add, bb, T, S, num_heads, need_weights=True)
    attn_ref[0] = attn                              # single store per layer
    h2 = _layer_norm(ed + h1, g2_ref[0, 0], b2_ref[0, 0])

    # ---- position-wise feed forward + residual + LayerNorm ----
    f = jnp.maximum(
        jnp.dot(h2, fw1_ref[0], preferred_element_type=jnp.float32) + fb1_ref[0, 0],
        0.0)
    y = jnp.dot(f, fw2_ref[0], preferred_element_type=jnp.float32) + fb2_ref[0, 0]
    new_x = _layer_norm(y + h2, g3_ref[0, 0], b3_ref[0, 0]).reshape(bb, T, E)

    x_state[...] = new_x                            # carry to next layer (VMEM)
    out_x_ref[...] = new_x                          # block index constant over l


_LAYER_KEYS = ('wq1', 'wk1', 'wv1', 'wo1', 'ln1_g', 'ln1_b',
               'wq2', 'wk2', 'wv2', 'wo2', 'ln2_g', 'ln2_b',
               'fw1', 'fb1', 'fw2', 'fb2', 'ln3_g', 'ln3_b')


# ------------------------------ Decoder forward -------------------------------

def decoder_forward(input_indices, encoder_output, pad_mask, causal_mask,
                    params, num_heads, batch_blocks=2):
    """Equivalent of Decoder.forward (eval mode). Returns (x, [attn per layer])."""
    B, T = input_indices.shape
    S = encoder_output.shape[1]
    E = params['embedding'].shape[1]
    layers = params['layers']
    L = len(layers)

    x0 = (params['embedding'][input_indices] + params['pos_embedding'][:T][None]
          ).astype(jnp.float32)
    # F.dropout(training=False) -> identity

    causal_add = jnp.where(causal_mask, NEG_INF, 0.0).astype(jnp.float32)       # (T, T)
    if pad_mask is not None:
        pad_add = jnp.where(pad_mask, NEG_INF, 0.0).astype(jnp.float32)[:, None, :]
    else:
        pad_add = jnp.zeros((B, 1, S), jnp.float32)                              # (B,1,S)

    # Stack per-layer params along a leading layer axis -> one pallas_call total.
    stacked = [jnp.stack([lp[k] for lp in layers], axis=0) for k in _LAYER_KEYS]

    # >=2-way parallel batch axis when possible (keeps both v7x TCs busy);
    # batch_blocks=1 fully folds the batch for single-TC chips.
    nb = batch_blocks if (batch_blocks > 0 and B % batch_blocks == 0) else 1
    bb = B // nb

    def layer_spec(arr):
        nrest = arr.ndim - 1
        return pl.BlockSpec((1,) + arr.shape[1:],
                            lambda b, l, _n=nrest: (l,) + (0,) * _n)

    kernel = functools.partial(decoder_stack_kernel, num_heads, bb, T, S, E)

    out_x, attn = pl.pallas_call(
        kernel,
        out_shape=(jax.ShapeDtypeStruct((B, T, E), jnp.float32),
                   jax.ShapeDtypeStruct((L, B, num_heads, T, S), jnp.float32)),
        grid=(nb, L),
        in_specs=[
            pl.BlockSpec((bb, T, E), lambda b, l: (b, 0, 0)),      # embedded input
            pl.BlockSpec((bb, S, E), lambda b, l: (b, 0, 0)),      # encoder output
            pl.BlockSpec((T, T), lambda b, l: (0, 0)),             # causal additive mask
            pl.BlockSpec((bb, 1, S), lambda b, l: (b, 0, 0)),      # padding additive mask
        ] + [layer_spec(w) for w in stacked],
        out_specs=(pl.BlockSpec((bb, T, E), lambda b, l: (b, 0, 0)),
                   pl.BlockSpec((1, bb, num_heads, T, S),
                                lambda b, l: (l, b, 0, 0, 0))),
        scratch_shapes=[pltpu.VMEM((bb, T, E), jnp.float32)],      # resident activation
        compiler_params=pltpu.CompilerParams(
            dimension_semantics=("parallel", "arbitrary")),
    )(x0, encoder_output.astype(jnp.float32), causal_add, pad_add, *stacked)

    return out_x, [attn[l] for l in range(L)]


# --------------------------- pure-JAX reference check -------------------------

def _reference_decoder(input_indices, encoder_output, pad_mask, causal_mask,
                       params, num_heads):
    B, T = input_indices.shape
    x = params['embedding'][input_indices] + params['pos_embedding'][:T][None]
    causal_add = jnp.where(causal_mask, -jnp.inf, 0.0)[None, None]               # (1,1,T,T)
    pad_add = jnp.where(pad_mask, -jnp.inf, 0.0)[:, None, None, :]               # (B,1,1,S)

    def ln(v, g, b, eps=1e-5):
        m = v.mean(-1, keepdims=True)
        var = ((v - m) ** 2).mean(-1, keepdims=True)
        return (v - m) / jnp.sqrt(var + eps) * g + b

    def mha(xq, xkv, wq, wk, wv, wo, add_mask):
        Bq, Tq, E = xq.shape
        Sk = xkv.shape[1]
        hd = E // num_heads
        q = (xq @ wq).reshape(Bq, Tq, num_heads, hd).transpose(0, 2, 1, 3)
        k = (xkv @ wk).reshape(Bq, Sk, num_heads, hd).transpose(0, 2, 1, 3)
        v = (xkv @ wv).reshape(Bq, Sk, num_heads, hd).transpose(0, 2, 1, 3)
        s = jnp.einsum('bhtd,bhsd->bhts', q, k) / math.sqrt(hd) + add_mask
        w = jax.nn.softmax(s, axis=-1)
        ctx = jnp.einsum('bhts,bhsd->bhtd', w, v).transpose(0, 2, 1, 3).reshape(Bq, Tq, E)
        return ctx @ wo, w

    attn_list = []
    for p in params['layers']:
        sa, _ = mha(x, x, p['wq1'], p['wk1'], p['wv1'], p['wo1'], causal_add)
        h1 = ln(sa + x, p['ln1_g'], p['ln1_b'])
        ed, w = mha(h1, encoder_output, p['wq2'], p['wk2'], p['wv2'], p['wo2'], pad_add)
        h2 = ln(ed + h1, p['ln2_g'], p['ln2_b'])
        f = jnp.maximum(h2 @ p['fw1'] + p['fb1'], 0.0)
        y = f @ p['fw2'] + p['fb2']
        x = ln(y + h2, p['ln3_g'], p['ln3_b'])
        attn_list.append(w)
    return x, attn_list


# --------------------------------- parameters ---------------------------------

def init_params(key, E, FFN, L, vocab, max_pos):
    keys = jax.random.split(key, L + 1)
    params = {}
    params['embedding'] = jax.random.normal(keys[0], (vocab, E), jnp.float32)

    # Sinusoidal positional table (matches SinusoidalPositionalEncodedEmbedding).
    pos = jnp.arange(max_pos, dtype=jnp.float32)[:, None]
    freq = jnp.power(10000.0, -jnp.arange(0, E, 2, dtype=jnp.float32) / E)
    pf = pos * freq
    pe = jnp.zeros((max_pos, E), jnp.float32)
    pe = pe.at[:, 0::2].set(jnp.sin(pf))
    pe = pe.at[:, 1::2].set(jnp.cos(pf))
    params['pos_embedding'] = pe

    def w(k, shape, scale=0.1):
        return jax.random.normal(k, shape, jnp.float32) * scale

    layers = []
    for li in range(L):
        lk = jax.random.split(keys[li + 1], 12)
        layers.append({
            'wq1': w(lk[0], (E, E)), 'wk1': w(lk[1], (E, E)),
            'wv1': w(lk[2], (E, E)), 'wo1': w(lk[3], (E, E)),
            'ln1_g': jnp.ones((1, E), jnp.float32), 'ln1_b': jnp.zeros((1, E), jnp.float32),
            'wq2': w(lk[4], (E, E)), 'wk2': w(lk[5], (E, E)),
            'wv2': w(lk[6], (E, E)), 'wo2': w(lk[7], (E, E)),
            'ln2_g': jnp.ones((1, E), jnp.float32), 'ln2_b': jnp.zeros((1, E), jnp.float32),
            'fw1': w(lk[8], (E, FFN)), 'fb1': w(lk[9], (1, FFN), 0.05),
            'fw2': w(lk[10], (FFN, E)), 'fb2': w(lk[11], (1, E), 0.05),
            'ln3_g': jnp.ones((1, E), jnp.float32), 'ln3_b': jnp.zeros((1, E), jnp.float32),
        })
    params['layers'] = layers
    return params


# ------------------------------------ main -------------------------------------

if __name__ == "__main__":
    B, T, S = 2, 8, 8          # batch, trg_len, src_len
    E, H, FFN = 32, 4, 64      # emb_dim, num_attention_heads, ffn_dim
    L = 2                      # num_decoder_layers
    VOCAB, MAXPOS = 50, 16

    root = jax.random.PRNGKey(0)
    k_param, k_idx, k_enc = jax.random.split(root, 3)
    params = init_params(k_param, E, FFN, L, VOCAB, MAXPOS)

    input_indices = jax.random.randint(k_idx, (B, T), 0, VOCAB)
    encoder_output = jax.random.normal(k_enc, (B, S, E), jnp.float32)

    # Padding mask: True = padded.  Each batch row keeps at least one real token.
    src_lens = jnp.array([S, S - 2])
    pad_mask = jnp.arange(S)[None, :] >= src_lens[:, None]          # (B, S) bool
    # Causal mask: True = future position (masked).
    causal_mask = jnp.triu(jnp.ones((T, T), jnp.bool_), k=1)        # (T, T) bool

    out_x, attn_weights = decoder_forward(input_indices, encoder_output,
                                          pad_mask, causal_mask, params, H)
    jax.block_until_ready(out_x)
    jax.block_until_ready(attn_weights)

    # Sanity check against a pure-JAX reference implementation.
    ref_x, ref_attn = _reference_decoder(input_indices, encoder_output,
                                         pad_mask, causal_mask, params, H)
    assert out_x.shape == (B, T, E)
    assert all(a.shape == (B, H, T, S) for a in attn_weights)
    assert jnp.allclose(out_x, ref_x, atol=2e-2, rtol=2e-2)
    for a, r in zip(attn_weights, ref_attn):
        assert jnp.allclose(a, r, atol=2e-2, rtol=2e-2)

    print("KERNEL_OK")
</pallas_src>

<mosaic_0001>
module attributes {stable_mosaic.version = 11 : i64} {
  func.func @decoder_stack_kernel(%arg0: i32, %arg1: i32, %arg2: memref<1x8x32xf32, #tpu.memory_space<vmem>>, %arg3: memref<1x8x32xf32, #tpu.memory_space<vmem>>, %arg4: memref<8x8xf32, #tpu.memory_space<vmem>>, %arg5: memref<1x1x8xf32, #tpu.memory_space<vmem>>, %arg6: memref<1x32x32xf32, #tpu.memory_space<vmem>>, %arg7: memref<1x32x32xf32, #tpu.memory_space<vmem>>, %arg8: memref<1x32x32xf32, #tpu.memory_space<vmem>>, %arg9: memref<1x32x32xf32, #tpu.memory_space<vmem>>, %arg10: memref<1x1x32xf32, #tpu.memory_space<vmem>>, %arg11: memref<1x1x32xf32, #tpu.memory_space<vmem>>, %arg12: memref<1x32x32xf32, #tpu.memory_space<vmem>>, %arg13: memref<1x32x32xf32, #tpu.memory_space<vmem>>, %arg14: memref<1x32x32xf32, #tpu.memory_space<vmem>>, %arg15: memref<1x32x32xf32, #tpu.memory_space<vmem>>, %arg16: memref<1x1x32xf32, #tpu.memory_space<vmem>>, %arg17: memref<1x1x32xf32, #tpu.memory_space<vmem>>, %arg18: memref<1x32x64xf32, #tpu.memory_space<vmem>>, %arg19: memref<1x1x64xf32, #tpu.memory_space<vmem>>, %arg20: memref<1x64x32xf32, #tpu.memory_space<vmem>>, %arg21: memref<1x1x32xf32, #tpu.memory_space<vmem>>, %arg22: memref<1x1x32xf32, #tpu.memory_space<vmem>>, %arg23: memref<1x1x32xf32, #tpu.memory_space<vmem>>, %arg24: memref<1x8x32xf32, #tpu.memory_space<vmem>>, %arg25: memref<1x1x4x8x8xf32, #tpu.memory_space<vmem>>, %arg26: memref<1x8x32xf32, #tpu.memory_space<vmem>>) attributes {dimension_semantics = [#tpu.dimension_semantics<parallel>, #tpu.dimension_semantics<arbitrary>], iteration_bounds = array<i64: 2, 2>, scalar_prefetch = 0 : i64, scratch_operands = 1 : i64, tpu.core_type = #tpu.core_type<tc>, window_params = [{transform_indices = @transform_0, window_bounds = array<i64: 1, 8, 32>}, {transform_indices = @transform_1, window_bounds = array<i64: 1, 8, 32>}, {pipeline_mode = #tpu.pipeline_mode<synchronous>, transform_indices = @transform_2, window_bounds = array<i64: 8, 8>}, {transform_indices = @transform_3, window_bounds = array<i64: 1, 1, 8>}, {transform_indices = @transform_4, window_bounds = array<i64: 1, 32, 32>}, {transform_indices = @transform_5, window_bounds = array<i64: 1, 32, 32>}, {transform_indices = @transform_6, window_bounds = array<i64: 1, 32, 32>}, {transform_indices = @transform_7, window_bounds = array<i64: 1, 32, 32>}, {transform_indices = @transform_8, window_bounds = array<i64: 1, 1, 32>}, {transform_indices = @transform_9, window_bounds = array<i64: 1, 1, 32>}, {transform_indices = @transform_10, window_bounds = array<i64: 1, 32, 32>}, {transform_indices = @transform_11, window_bounds = array<i64: 1, 32, 32>}, {transform_indices = @transform_12, window_bounds = array<i64: 1, 32, 32>}, {transform_indices = @transform_13, window_bounds = array<i64: 1, 32, 32>}, {transform_indices = @transform_14, window_bounds = array<i64: 1, 1, 32>}, {transform_indices = @transform_15, window_bounds = array<i64: 1, 1, 32>}, {transform_indices = @transform_16, window_bounds = array<i64: 1, 32, 64>}, {transform_indices = @transform_17, window_bounds = array<i64: 1, 1, 64>}, {transform_indices = @transform_18, window_bounds = array<i64: 1, 64, 32>}, {transform_indices = @transform_19, window_bounds = array<i64: 1, 1, 32>}, {transform_indices = @transform_20, window_bounds = array<i64: 1, 1, 32>}, {transform_indices = @transform_21, window_bounds = array<i64: 1, 1, 32>}, {transform_indices = @transform_22, window_bounds = array<i64: 1, 8, 32>}, {transform_indices = @transform_23, window_bounds = array<i64: 1, 1, 4, 8, 8>}]} {
    %c0_i32 = arith.constant 0 : i32
    %0 = arith.cmpi eq, %arg1, %c0_i32 : i32
    %1 = arith.extui %0 : i1 to i32
    %c0_i32_0 = arith.constant 0 : i32
    %2 = arith.cmpi ne, %1, %c0_i32_0 : i32
    scf.if %2 {
      %c0_149 = arith.constant 0 : index
      %c0_150 = arith.constant 0 : index
      %c0_151 = arith.constant 0 : index
      %344 = vector.load %arg2[%c0_149, %c0_150, %c0_151] : memref<1x8x32xf32, #tpu.memory_space<vmem>>, vector<1x8x32xf32>
      %c0_152 = arith.constant 0 : index
      %c0_153 = arith.constant 0 : index
      %c0_154 = arith.constant 0 : index
      %345 = vector.load %arg26[%c0_152, %c0_153, %c0_154] : memref<1x8x32xf32, #tpu.memory_space<vmem>>, vector<1x8x32xf32>
      tpu.vector_store %arg26[%c0_152, %c0_153, %c0_154], %344 {strides = array<i32>} : memref<1x8x32xf32, #tpu.memory_space<vmem>>, vector<1x8x32xf32>,
    } else {
    }
    %c0 = arith.constant 0 : index
    %c0_1 = arith.constant 0 : index
    %c0_2 = arith.constant 0 : index
    %3 = vector.load %arg26[%c0, %c0_1, %c0_2] : memref<1x8x32xf32, #tpu.memory_space<vmem>>, vector<1x8x32xf32>
    %4 = vector.shape_cast %3 : vector<1x8x32xf32> to vector<8x32xf32>
    %c0_3 = arith.constant 0 : index
    %c0_4 = arith.constant 0 : index
    %c0_5 = arith.constant 0 : index
    %5 = vector.load %arg3[%c0_3, %c0_4, %c0_5] : memref<1x8x32xf32, #tpu.memory_space<vmem>>, vector<1x8x32xf32>
    %6 = vector.shape_cast %5 : vector<1x8x32xf32> to vector<8x32xf32>
    %c0_6 = arith.constant 0 : index
    %c0_7 = arith.constant 0 : index
    %7 = vector.load %arg4[%c0_6, %c0_7] : memref<8x8xf32, #tpu.memory_space<vmem>>, vector<8x8xf32>
    %8 = vector.shape_cast %7 : vector<8x8xf32> to vector<1x8x8xf32>
    %c0_8 = arith.constant 0 : index
    %c0_9 = arith.constant 0 : index
    %c0_10 = arith.constant 0 : index
    %9 = vector.load %arg5[%c0_8, %c0_9, %c0_10] : memref<1x1x8xf32, #tpu.memory_space<vmem>>, vector<1x1x8xf32>
    %10 = vector.shape_cast %9 : vector<1x1x8xf32> to vector<1x1x8xf32>
    %11 = vector.broadcast %10 : vector<1x1x8xf32> to vector<1x8x8xf32>
    %c0_11 = arith.constant 0 : index
    %c0_12 = arith.constant 0 : index
    %c0_13 = arith.constant 0 : index
    %12 = vector.load %arg6[%c0_11, %c0_12, %c0_13] : memref<1x32x32xf32, #tpu.memory_space<vmem>>, vector<1x32x32xf32>
    %13 = vector.shape_cast %12 : vector<1x32x32xf32> to vector<32x32xf32>
    %c0_14 = arith.constant 0 : index
    %c0_15 = arith.constant 0 : index
    %c0_16 = arith.constant 0 : index
    %14 = vector.load %arg7[%c0_14, %c0_15, %c0_16] : memref<1x32x32xf32, #tpu.memory_space<vmem>>, vector<1x32x32xf32>
    %15 = vector.shape_cast %14 : vector<1x32x32xf32> to vector<32x32xf32>
    %c0_17 = arith.constant 0 : index
    %c0_18 = arith.constant 0 : index
    %c0_19 = arith.constant 0 : index
    %16 = vector.load %arg8[%c0_17, %c0_18, %c0_19] : memref<1x32x32xf32, #tpu.memory_space<vmem>>, vector<1x32x32xf32>
    %17 = vector.shape_cast %16 : vector<1x32x32xf32> to vector<32x32xf32>
    %c0_20 = arith.constant 0 : index
    %c0_21 = arith.constant 0 : index
    %c0_22 = arith.constant 0 : index
    %18 = vector.load %arg9[%c0_20, %c0_21, %c0_22] : memref<1x32x32xf32, #tpu.memory_space<vmem>>, vector<1x32x32xf32>
    %19 = vector.shape_cast %18 : vector<1x32x32xf32> to vector<32x32xf32>
    %cst = arith.constant dense<0.000000e+00> : vector<8x32xf32>
    %20 = tpu.matmul %4, %13, %cst {dimension_numbers = #tpu.dot_dimension_numbers<[1], [0], [0], [1], [0, 0, 1, 1], [], []>} : vector<8x32xf32>, vector<32x32xf32>, vector<8x32xf32> -> vector<8x32xf32>
    %cst_23 = arith.constant 0.353553385 : f32
    %21 = vector.broadcast %cst_23 : f32 to vector<8x32xf32>
    %22 = arith.mulf %20, %21 : vector<8x32xf32>
    %cst_24 = arith.constant dense<0.000000e+00> : vector<8x32xf32>
    %23 = tpu.matmul %4, %15, %cst_24 {dimension_numbers = #tpu.dot_dimension_numbers<[1], [0], [0], [1], [0, 0, 1, 1], [], []>} : vector<8x32xf32>, vector<32x32xf32>, vector<8x32xf32> -> vector<8x32xf32>
    %cst_25 = arith.constant dense<0.000000e+00> : vector<8x32xf32>
    %24 = tpu.matmul %4, %17, %cst_25 {dimension_numbers = #tpu.dot_dimension_numbers<[1], [0], [0], [1], [0, 0, 1, 1], [], []>} : vector<8x32xf32>, vector<32x32xf32>, vector<8x32xf32> -> vector<8x32xf32>
    %25 = vector.extract_strided_slice %22 {offsets = [0, 0], sizes = [8, 8], strides = [1, 1]} : vector<8x32xf32> to vector<8x8xf32>
    %26 = vector.shape_cast %25 : vector<8x8xf32> to vector<1x8x8xf32>
    %27 = vector.extract_strided_slice %23 {offsets = [0, 0], sizes = [8, 8], strides = [1, 1]} : vector<8x32xf32> to vector<8x8xf32>
    %28 = vector.shape_cast %27 : vector<8x8xf32> to vector<1x8x8xf32>
    %29 = vector.extract_strided_slice %24 {offsets = [0, 0], sizes = [8, 8], strides = [1, 1]} : vector<8x32xf32> to vector<8x8xf32>
    %30 = vector.shape_cast %29 : vector<8x8xf32> to vector<1x8x8xf32>
    %cst_26 = arith.constant dense<0.000000e+00> : vector<1x8x8xf32>
    %31 = tpu.matmul %26, %28, %cst_26 {dimension_numbers = #tpu.dot_dimension_numbers<[2], [2], [1], [1], [0, 0, 0, 1, 1, 1], [0], [0]>} : vector<1x8x8xf32>, vector<1x8x8xf32>, vector<1x8x8xf32> -> vector<1x8x8xf32>
    %32 = arith.addf %31, %8 : vector<1x8x8xf32>
    %cst_27 = arith.constant dense<0xFF800000> : vector<1x8xf32>
    %33 = vector.multi_reduction <maximumf>, %32, %cst_27 [2] : vector<1x8x8xf32> to vector<1x8xf32>
    %cst_28 = arith.constant 0xFF800000 : f32
    %34 = vector.broadcast %cst_28 : f32 to vector<1x8xf32>
    %35 = arith.maximumf %34, %33 : vector<1x8xf32>
    %36 = vector.shape_cast %35 : vector<1x8xf32> to vector<1x8x1xf32>
    %37 = vector.broadcast %36 : vector<1x8x1xf32> to vector<1x8x8xf32>
    %38 = arith.subf %32, %37 : vector<1x8x8xf32>
    %39 = math.exp %38 : vector<1x8x8xf32>
    %cst_29 = arith.constant dense<0.000000e+00> : vector<1x8xf32>
    %40 = vector.multi_reduction <add>, %39, %cst_29 [2] : vector<1x8x8xf32> to vector<1x8xf32>
    %41 = vector.shape_cast %40 : vector<1x8xf32> to vector<1x8x1xf32>
    %42 = vector.broadcast %41 : vector<1x8x1xf32> to vector<1x8x8xf32>
    %43 = arith.divf %39, %42 : vector<1x8x8xf32>
    %cst_30 = arith.constant dense<0.000000e+00> : vector<1x8x8xf32>
    %44 = tpu.matmul %43, %30, %cst_30 {dimension_numbers = #tpu.dot_dimension_numbers<[2], [1], [1], [2], [0, 0, 0, 1, 1, 2], [0], [0]>} : vector<1x8x8xf32>, vector<1x8x8xf32>, vector<1x8x8xf32> -> vector<1x8x8xf32>
    %45 = vector.shape_cast %44 : vector<1x8x8xf32> to vector<8x8xf32>
    %46 = vector.extract_strided_slice %19 {offsets = [0, 0], sizes = [8, 32], strides = [1, 1]} : vector<32x32xf32> to vector<8x32xf32>
    %cst_31 = arith.constant dense<0.000000e+00> : vector<8x32xf32>
    %47 = tpu.matmul %45, %46, %cst_31 {dimension_numbers = #tpu.dot_dimension_numbers<[1], [0], [0], [1], [0, 0, 1, 1], [], []>} : vector<8x8xf32>, vector<8x32xf32>, vector<8x32xf32> -> vector<8x32xf32>
    %48 = vector.extract_strided_slice %22 {offsets = [0, 8], sizes = [8, 8], strides = [1, 1]} : vector<8x32xf32> to vector<8x8xf32>
    %49 = vector.shape_cast %48 : vector<8x8xf32> to vector<1x8x8xf32>
    %50 = vector.extract_strided_slice %23 {offsets = [0, 8], sizes = [8, 8], strides = [1, 1]} : vector<8x32xf32> to vector<8x8xf32>
    %51 = vector.shape_cast %50 : vector<8x8xf32> to vector<1x8x8xf32>
    %52 = vector.extract_strided_slice %24 {offsets = [0, 8], sizes = [8, 8], strides = [1, 1]} : vector<8x32xf32> to vector<8x8xf32>
    %53 = vector.shape_cast %52 : vector<8x8xf32> to vector<1x8x8xf32>
    %cst_32 = arith.constant dense<0.000000e+00> : vector<1x8x8xf32>
    %54 = tpu.matmul %49, %51, %cst_32 {dimension_numbers = #tpu.dot_dimension_numbers<[2], [2], [1], [1], [0, 0, 0, 1, 1, 1], [0], [0]>} : vector<1x8x8xf32>, vector<1x8x8xf32>, vector<1x8x8xf32> -> vector<1x8x8xf32>
    %55 = arith.addf %54, %8 : vector<1x8x8xf32>
    %cst_33 = arith.constant dense<0xFF800000> : vector<1x8xf32>
    %56 = vector.multi_reduction <maximumf>, %55, %cst_33 [2] : vector<1x8x8xf32> to vector<1x8xf32>
    %cst_34 = arith.constant 0xFF800000 : f32
    %57 = vector.broadcast %cst_34 : f32 to vector<1x8xf32>
    %58 = arith.maximumf %57, %56 : vector<1x8xf32>
    %59 = vector.shape_cast %58 : vector<1x8xf32> to vector<1x8x1xf32>
    %60 = vector.broadcast %59 : vector<1x8x1xf32> to vector<1x8x8xf32>
    %61 = arith.subf %55, %60 : vector<1x8x8xf32>
    %62 = math.exp %61 : vector<1x8x8xf32>
    %cst_35 = arith.constant dense<0.000000e+00> : vector<1x8xf32>
    %63 = vector.multi_reduction <add>, %62, %cst_35 [2] : vector<1x8x8xf32> to vector<1x8xf32>
    %64 = vector.shape_cast %63 : vector<1x8xf32> to vector<1x8x1xf32>
    %65 = vector.broadcast %64 : vector<1x8x1xf32> to vector<1x8x8xf32>
    %66 = arith.divf %62, %65 : vector<1x8x8xf32>
    %cst_36 = arith.constant dense<0.000000e+00> : vector<1x8x8xf32>
    %67 = tpu.matmul %66, %53, %cst_36 {dimension_numbers = #tpu.dot_dimension_numbers<[2], [1], [1], [2], [0, 0, 0, 1, 1, 2], [0], [0]>} : vector<1x8x8xf32>, vector<1x8x8xf32>, vector<1x8x8xf32> -> vector<1x8x8xf32>
    %68 = vector.shape_cast %67 : vector<1x8x8xf32> to vector<8x8xf32>
    %69 = vector.extract_strided_slice %19 {offsets = [8, 0], sizes = [8, 32], strides = [1, 1]} : vector<32x32xf32> to vector<8x32xf32>
    %cst_37 = arith.constant dense<0.000000e+00> : vector<8x32xf32>
    %70 = tpu.matmul %68, %69, %cst_37 {dimension_numbers = #tpu.dot_dimension_numbers<[1], [0], [0], [1], [0, 0, 1, 1], [], []>} : vector<8x8xf32>, vector<8x32xf32>, vector<8x32xf32> -> vector<8x32xf32>
    %71 = arith.addf %47, %70 : vector<8x32xf32>
    %72 = vector.extract_strided_slice %22 {offsets = [0, 16], sizes = [8, 8], strides = [1, 1]} : vector<8x32xf32> to vector<8x8xf32>
    %73 = vector.shape_cast %72 : vector<8x8xf32> to vector<1x8x8xf32>
    %74 = vector.extract_strided_slice %23 {offsets = [0, 16], sizes = [8, 8], strides = [1, 1]} : vector<8x32xf32> to vector<8x8xf32>
    %75 = vector.shape_cast %74 : vector<8x8xf32> to vector<1x8x8xf32>
    %76 = vector.extract_strided_slice %24 {offsets = [0, 16], sizes = [8, 8], strides = [1, 1]} : vector<8x32xf32> to vector<8x8xf32>
    %77 = vector.shape_cast %76 : vector<8x8xf32> to vector<1x8x8xf32>
    %cst_38 = arith.constant dense<0.000000e+00> : vector<1x8x8xf32>
    %78 = tpu.matmul %73, %75, %cst_38 {dimension_numbers = #tpu.dot_dimension_numbers<[2], [2], [1], [1], [0, 0, 0, 1, 1, 1], [0], [0]>} : vector<1x8x8xf32>, vector<1x8x8xf32>, vector<1x8x8xf32> -> vector<1x8x8xf32>
    %79 = arith.addf %78, %8 : vector<1x8x8xf32>
    %cst_39 = arith.constant dense<0xFF800000> : vector<1x8xf32>
    %80 = vector.multi_reduction <maximumf>, %79, %cst_39 [2] : vector<1x8x8xf32> to vector<1x8xf32>
    %cst_40 = arith.constant 0xFF800000 : f32
    %81 = vector.broadcast %cst_40 : f32 to vector<1x8xf32>
    %82 = arith.maximumf %81, %80 : vector<1x8xf32>
    %83 = vector.shape_cast %82 : vector<1x8xf32> to vector<1x8x1xf32>
    %84 = vector.broadcast %83 : vector<1x8x1xf32> to vector<1x8x8xf32>
    %85 = arith.subf %79, %84 : vector<1x8x8xf32>
    %86 = math.exp %85 : vector<1x8x8xf32>
    %cst_41 = arith.constant dense<0.000000e+00> : vector<1x8xf32>
    %87 = vector.multi_reduction <add>, %86, %cst_41 [2] : vector<1x8x8xf32> to vector<1x8xf32>
    %88 = vector.shape_cast %87 : vector<1x8xf32> to vector<1x8x1xf32>
    %89 = vector.broadcast %88 : vector<1x8x1xf32> to vector<1x8x8xf32>
    %90 = arith.divf %86, %89 : vector<1x8x8xf32>
    %cst_42 = arith.constant dense<0.000000e+00> : vector<1x8x8xf32>
    %91 = tpu.matmul %90, %77, %cst_42 {dimension_numbers = #tpu.dot_dimension_numbers<[2], [1], [1], [2], [0, 0, 0, 1, 1, 2], [0], [0]>} : vector<1x8x8xf32>, vector<1x8x8xf32>, vector<1x8x8xf32> -> vector<1x8x8xf32>
    %92 = vector.shape_cast %91 : vector<1x8x8xf32> to vector<8x8xf32>
    %93 = vector.extract_strided_slice %19 {offsets = [16, 0], sizes = [8, 32], strides = [1, 1]} : vector<32x32xf32> to vector<8x32xf32>
    %cst_43 = arith.constant dense<0.000000e+00> : vector<8x32xf32>
    %94 = tpu.matmul %92, %93, %cst_43 {dimension_numbers = #tpu.dot_dimension_numbers<[1], [0], [0], [1], [0, 0, 1, 1], [], []>} : vector<8x8xf32>, vector<8x32xf32>, vector<8x32xf32> -> vector<8x32xf32>
    %95 = arith.addf %71, %94 : vector<8x32xf32>
    %96 = vector.extract_strided_slice %22 {offsets = [0, 24], sizes = [8, 8], strides = [1, 1]} : vector<8x32xf32> to vector<8x8xf32>
    %97 = vector.shape_cast %96 : vector<8x8xf32> to vector<1x8x8xf32>
    %98 = vector.extract_strided_slice %23 {offsets = [0, 24], sizes = [8, 8], strides = [1, 1]} : vector<8x32xf32> to vector<8x8xf32>
    %99 = vector.shape_cast %98 : vector<8x8xf32> to vector<1x8x8xf32>
    %100 = vector.extract_strided_slice %24 {offsets = [0, 24], sizes = [8, 8], strides = [1, 1]} : vector<8x32xf32> to vector<8x8xf32>
    %101 = vector.shape_cast %100 : vector<8x8xf32> to vector<1x8x8xf32>
    %cst_44 = arith.constant dense<0.000000e+00> : vector<1x8x8xf32>
    %102 = tpu.matmul %97, %99, %cst_44 {dimension_numbers = #tpu.dot_dimension_numbers<[2], [2], [1], [1], [0, 0, 0, 1, 1, 1], [0], [0]>} : vector<1x8x8xf32>, vector<1x8x8xf32>, vector<1x8x8xf32> -> vector<1x8x8xf32>
    %103 = arith.addf %102, %8 : vector<1x8x8xf32>
    %cst_45 = arith.constant dense<0xFF800000> : vector<1x8xf32>
    %104 = vector.multi_reduction <maximumf>, %103, %cst_45 [2] : vector<1x8x8xf32> to vector<1x8xf32>
    %cst_46 = arith.constant 0xFF800000 : f32
    %105 = vector.broadcast %cst_46 : f32 to vector<1x8xf32>
    %106 = arith.maximumf %105, %104 : vector<1x8xf32>
    %107 = vector.shape_cast %106 : vector<1x8xf32> to vector<1x8x1xf32>
    %108 = vector.broadcast %107 : vector<1x8x1xf32> to vector<1x8x8xf32>
    %109 = arith.subf %103, %108 : vector<1x8x8xf32>
    %110 = math.exp %109 : vector<1x8x8xf32>
    %cst_47 = arith.constant dense<0.000000e+00> : vector<1x8xf32>
    %111 = vector.multi_reduction <add>, %110, %cst_47 [2] : vector<1x8x8xf32> to vector<1x8xf32>
    %112 = vector.shape_cast %111 : vector<1x8xf32> to vector<1x8x1xf32>
    %113 = vector.broadcast %112 : vector<1x8x1xf32> to vector<1x8x8xf32>
    %114 = arith.divf %110, %113 : vector<1x8x8xf32>
    %cst_48 = arith.constant dense<0.000000e+00> : vector<1x8x8xf32>
    %115 = tpu.matmul %114, %101, %cst_48 {dimension_numbers = #tpu.dot_dimension_numbers<[2], [1], [1], [2], [0, 0, 0, 1, 1, 2], [0], [0]>} : vector<1x8x8xf32>, vector<1x8x8xf32>, vector<1x8x8xf32> -> vector<1x8x8xf32>
    %116 = vector.shape_cast %115 : vector<1x8x8xf32> to vector<8x8xf32>
    %117 = vector.extract_strided_slice %19 {offsets = [24, 0], sizes = [8, 32], strides = [1, 1]} : vector<32x32xf32> to vector<8x32xf32>
    %cst_49 = arith.constant dense<0.000000e+00> : vector<8x32xf32>
    %118 = tpu.matmul %116, %117, %cst_49 {dimension_numbers = #tpu.dot_dimension_numbers<[1], [0], [0], [1], [0, 0, 1, 1], [], []>} : vector<8x8xf32>, vector<8x32xf32>, vector<8x32xf32> -> vector<8x32xf32>
    %119 = arith.addf %95, %118 : vector<8x32xf32>
    %120 = arith.addf %119, %4 : vector<8x32xf32>
    %c0_50 = arith.constant 0 : index
    %c0_51 = arith.constant 0 : index
    %c0_52 = arith.constant 0 : index
    %121 = vector.load %arg10[%c0_50, %c0_51, %c0_52] : memref<1x1x32xf32, #tpu.memory_space<vmem>>, vector<1x1x32xf32>
    %122 = vector.shape_cast %121 : vector<1x1x32xf32> to vector<32xf32>
    %c0_53 = arith.constant 0 : index
    %c0_54 = arith.constant 0 : index
    %c0_55 = arith.constant 0 : index
    %123 = vector.load %arg11[%c0_53, %c0_54, %c0_55] : memref<1x1x32xf32, #tpu.memory_space<vmem>>, vector<1x1x32xf32>
    %124 = vector.shape_cast %123 : vector<1x1x32xf32> to vector<32xf32>
    %cst_56 = arith.constant dense<0.000000e+00> : vector<8xf32>
    %125 = vector.multi_reduction <add>, %120, %cst_56 [1] : vector<8x32xf32> to vector<8xf32>
    %126 = vector.shape_cast %125 : vector<8xf32> to vector<8x1xf32>
    %cst_57 = arith.constant 3.200000e+01 : f32
    %127 = vector.broadcast %cst_57 : f32 to vector<8x1xf32>
    %128 = arith.divf %126, %127 : vector<8x1xf32>
    %129 = vector.broadcast %128 : vector<8x1xf32> to vector<8x32xf32>
    %130 = arith.subf %120, %129 : vector<8x32xf32>
    %131 = arith.mulf %130, %130 : vector<8x32xf32>
    %cst_58 = arith.constant dense<0.000000e+00> : vector<8xf32>
    %132 = vector.multi_reduction <add>, %131, %cst_58 [1] : vector<8x32xf32> to vector<8xf32>
    %133 = vector.shape_cast %132 : vector<8xf32> to vector<8x1xf32>
    %cst_59 = arith.constant 3.200000e+01 : f32
    %134 = vector.broadcast %cst_59 : f32 to vector<8x1xf32>
    %135 = arith.divf %133, %134 : vector<8x1xf32>
    %136 = vector.broadcast %128 : vector<8x1xf32> to vector<8x32xf32>
    %137 = arith.subf %120, %136 : vector<8x32xf32>
    %cst_60 = arith.constant 9.99999974E-6 : f32
    %138 = vector.broadcast %cst_60 : f32 to vector<8x1xf32>
    %139 = arith.addf %135, %138 : vector<8x1xf32>
    %140 = math.rsqrt %139 : vector<8x1xf32>
    %141 = vector.broadcast %140 : vector<8x1xf32> to vector<8x32xf32>
    %142 = arith.mulf %137, %141 : vector<8x32xf32>
    %143 = vector.shape_cast %122 : vector<32xf32> to vector<1x32xf32>
    %144 = vector.broadcast %143 : vector<1x32xf32> to vector<8x32xf32>
    %145 = arith.mulf %142, %144 : vector<8x32xf32>
    %146 = vector.shape_cast %124 : vector<32xf32> to vector<1x32xf32>
    %147 = vector.broadcast %146 : vector<1x32xf32> to vector<8x32xf32>
    %148 = arith.addf %145, %147 : vector<8x32xf32>
    %c0_61 = arith.constant 0 : index
    %c0_62 = arith.constant 0 : index
    %c0_63 = arith.constant 0 : index
    %149 = vector.load %arg12[%c0_61, %c0_62, %c0_63] : memref<1x32x32xf32, #tpu.memory_space<vmem>>, vector<1x32x32xf32>
    %150 = vector.shape_cast %149 : vector<1x32x32xf32> to vector<32x32xf32>
    %c0_64 = arith.constant 0 : index
    %c0_65 = arith.constant 0 : index
    %c0_66 = arith.constant 0 : index
    %151 = vector.load %arg13[%c0_64, %c0_65, %c0_66] : memref<1x32x32xf32, #tpu.memory_space<vmem>>, vector<1x32x32xf32>
    %152 = vector.shape_cast %151 : vector<1x32x32xf32> to vector<32x32xf32>
    %c0_67 = arith.constant 0 : index
    %c0_68 = arith.constant 0 : index
    %c0_69 = arith.constant 0 : index
    %153 = vector.load %arg14[%c0_67, %c0_68, %c0_69] : memref<1x32x32xf32, #tpu.memory_space<vmem>>, vector<1x32x32xf32>
    %154 = vector.shape_cast %153 : vector<1x32x32xf32> to vector<32x32xf32>
    %c0_70 = arith.constant 0 : index
    %c0_71 = arith.constant 0 : index
    %c0_72 = arith.constant 0 : index
    %155 = vector.load %arg15[%c0_70, %c0_71, %c0_72] : memref<1x32x32xf32, #tpu.memory_space<vmem>>, vector<1x32x32xf32>
    %156 = vector.shape_cast %155 : vector<1x32x32xf32> to vector<32x32xf32>
    %cst_73 = arith.constant dense<0.000000e+00> : vector<8x32xf32>
    %157 = tpu.matmul %148, %150, %cst_73 {dimension_numbers = #tpu.dot_dimension_numbers<[1], [0], [0], [1], [0, 0, 1, 1], [], []>} : vector<8x32xf32>, vector<32x32xf32>, vector<8x32xf32> -> vector<8x32xf32>
    %cst_74 = arith.constant 0.353553385 : f32
    %158 = vector.broadcast %cst_74 : f32 to vector<8x32xf32>
    %159 = arith.mulf %157, %158 : vector<8x32xf32>
    %cst_75 = arith.constant dense<0.000000e+00> : vector<8x32xf32>
    %160 = tpu.matmul %6, %152, %cst_75 {dimension_numbers = #tpu.dot_dimension_numbers<[1], [0], [0], [1], [0, 0, 1, 1], [], []>} : vector<8x32xf32>, vector<32x32xf32>, vector<8x32xf32> -> vector<8x32xf32>
    %cst_76 = arith.constant dense<0.000000e+00> : vector<8x32xf32>
    %161 = tpu.matmul %6, %154, %cst_76 {dimension_numbers = #tpu.dot_dimension_numbers<[1], [0], [0], [1], [0, 0, 1, 1], [], []>} : vector<8x32xf32>, vector<32x32xf32>, vector<8x32xf32> -> vector<8x32xf32>
    %162 = vector.extract_strided_slice %159 {offsets = [0, 0], sizes = [8, 8], strides = [1, 1]} : vector<8x32xf32> to vector<8x8xf32>
    %163 = vector.shape_cast %162 : vector<8x8xf32> to vector<1x8x8xf32>
    %164 = vector.extract_strided_slice %160 {offsets = [0, 0], sizes = [8, 8], strides = [1, 1]} : vector<8x32xf32> to vector<8x8xf32>
    %165 = vector.shape_cast %164 : vector<8x8xf32> to vector<1x8x8xf32>
    %166 = vector.extract_strided_slice %161 {offsets = [0, 0], sizes = [8, 8], strides = [1, 1]} : vector<8x32xf32> to vector<8x8xf32>
    %167 = vector.shape_cast %166 : vector<8x8xf32> to vector<1x8x8xf32>
    %cst_77 = arith.constant dense<0.000000e+00> : vector<1x8x8xf32>
    %168 = tpu.matmul %163, %165, %cst_77 {dimension_numbers = #tpu.dot_dimension_numbers<[2], [2], [1], [1], [0, 0, 0, 1, 1, 1], [0], [0]>} : vector<1x8x8xf32>, vector<1x8x8xf32>, vector<1x8x8xf32> -> vector<1x8x8xf32>
    %169 = arith.addf %168, %11 : vector<1x8x8xf32>
    %cst_78 = arith.constant dense<0xFF800000> : vector<1x8xf32>
    %170 = vector.multi_reduction <maximumf>, %169, %cst_78 [2] : vector<1x8x8xf32> to vector<1x8xf32>
    %cst_79 = arith.constant 0xFF800000 : f32
    %171 = vector.broadcast %cst_79 : f32 to vector<1x8xf32>
    %172 = arith.maximumf %171, %170 : vector<1x8xf32>
    %173 = vector.shape_cast %172 : vector<1x8xf32> to vector<1x8x1xf32>
    %174 = vector.broadcast %173 : vector<1x8x1xf32> to vector<1x8x8xf32>
    %175 = arith.subf %169, %174 : vector<1x8x8xf32>
    %176 = math.exp %175 : vector<1x8x8xf32>
    %cst_80 = arith.constant dense<0.000000e+00> : vector<1x8xf32>
    %177 = vector.multi_reduction <add>, %176, %cst_80 [2] : vector<1x8x8xf32> to vector<1x8xf32>
    %178 = vector.shape_cast %177 : vector<1x8xf32> to vector<1x8x1xf32>
    %179 = vector.broadcast %178 : vector<1x8x1xf32> to vector<1x8x8xf32>
    %180 = arith.divf %176, %179 : vector<1x8x8xf32>
    %cst_81 = arith.constant dense<0.000000e+00> : vector<1x8x8xf32>
    %181 = tpu.matmul %180, %167, %cst_81 {dimension_numbers = #tpu.dot_dimension_numbers<[2], [1], [1], [2], [0, 0, 0, 1, 1, 2], [0], [0]>} : vector<1x8x8xf32>, vector<1x8x8xf32>, vector<1x8x8xf32> -> vector<1x8x8xf32>
    %182 = vector.shape_cast %181 : vector<1x8x8xf32> to vector<8x8xf32>
    %183 = vector.extract_strided_slice %156 {offsets = [0, 0], sizes = [8, 32], strides = [1, 1]} : vector<32x32xf32> to vector<8x32xf32>
    %cst_82 = arith.constant dense<0.000000e+00> : vector<8x32xf32>
    %184 = tpu.matmul %182, %183, %cst_82 {dimension_numbers = #tpu.dot_dimension_numbers<[1], [0], [0], [1], [0, 0, 1, 1], [], []>} : vector<8x8xf32>, vector<8x32xf32>, vector<8x32xf32> -> vector<8x32xf32>
    %185 = vector.extract_strided_slice %159 {offsets = [0, 8], sizes = [8, 8], strides = [1, 1]} : vector<8x32xf32> to vector<8x8xf32>
    %186 = vector.shape_cast %185 : vector<8x8xf32> to vector<1x8x8xf32>
    %187 = vector.extract_strided_slice %160 {offsets = [0, 8], sizes = [8, 8], strides = [1, 1]} : vector<8x32xf32> to vector<8x8xf32>
    %188 = vector.shape_cast %187 : vector<8x8xf32> to vector<1x8x8xf32>
    %189 = vector.extract_strided_slice %161 {offsets = [0, 8], sizes = [8, 8], strides = [1, 1]} : vector<8x32xf32> to vector<8x8xf32>
    %190 = vector.shape_cast %189 : vector<8x8xf32> to vector<1x8x8xf32>
    %cst_83 = arith.constant dense<0.000000e+00> : vector<1x8x8xf32>
    %191 = tpu.matmul %186, %188, %cst_83 {dimension_numbers = #tpu.dot_dimension_numbers<[2], [2], [1], [1], [0, 0, 0, 1, 1, 1], [0], [0]>} : vector<1x8x8xf32>, vector<1x8x8xf32>, vector<1x8x8xf32> -> vector<1x8x8xf32>
    %192 = arith.addf %191, %11 : vector<1x8x8xf32>
    %cst_84 = arith.constant dense<0xFF800000> : vector<1x8xf32>
    %193 = vector.multi_reduction <maximumf>, %192, %cst_84 [2] : vector<1x8x8xf32> to vector<1x8xf32>
    %cst_85 = arith.constant 0xFF800000 : f32
    %194 = vector.broadcast %cst_85 : f32 to vector<1x8xf32>
    %195 = arith.maximumf %194, %193 : vector<1x8xf32>
    %196 = vector.shape_cast %195 : vector<1x8xf32> to vector<1x8x1xf32>
    %197 = vector.broadcast %196 : vector<1x8x1xf32> to vector<1x8x8xf32>
    %198 = arith.subf %192, %197 : vector<1x8x8xf32>
    %199 = math.exp %198 : vector<1x8x8xf32>
    %cst_86 = arith.constant dense<0.000000e+00> : vector<1x8xf32>
    %200 = vector.multi_reduction <add>, %199, %cst_86 [2] : vector<1x8x8xf32> to vector<1x8xf32>
    %201 = vector.shape_cast %200 : vector<1x8xf32> to vector<1x8x1xf32>
    %202 = vector.broadcast %201 : vector<1x8x1xf32> to vector<1x8x8xf32>
    %203 = arith.divf %199, %202 : vector<1x8x8xf32>
    %cst_87 = arith.constant dense<0.000000e+00> : vector<1x8x8xf32>
    %204 = tpu.matmul %203, %190, %cst_87 {dimension_numbers = #tpu.dot_dimension_numbers<[2], [1], [1], [2], [0, 0, 0, 1, 1, 2], [0], [0]>} : vector<1x8x8xf32>, vector<1x8x8xf32>, vector<1x8x8xf32> -> vector<1x8x8xf32>
    %205 = vector.shape_cast %204 : vector<1x8x8xf32> to vector<8x8xf32>
    %206 = vector.extract_strided_slice %156 {offsets = [8, 0], sizes = [8, 32], strides = [1, 1]} : vector<32x32xf32> to vector<8x32xf32>
    %cst_88 = arith.constant dense<0.000000e+00> : vector<8x32xf32>
    %207 = tpu.matmul %205, %206, %cst_88 {dimension_numbers = #tpu.dot_dimension_numbers<[1], [0], [0], [1], [0, 0, 1, 1], [], []>} : vector<8x8xf32>, vector<8x32xf32>, vector<8x32xf32> -> vector<8x32xf32>
    %208 = arith.addf %184, %207 : vector<8x32xf32>
    %209 = vector.extract_strided_slice %159 {offsets = [0, 16], sizes = [8, 8], strides = [1, 1]} : vector<8x32xf32> to vector<8x8xf32>
    %210 = vector.shape_cast %209 : vector<8x8xf32> to vector<1x8x8xf32>
    %211 = vector.extract_strided_slice %160 {offsets = [0, 16], sizes = [8, 8], strides = [1, 1]} : vector<8x32xf32> to vector<8x8xf32>
    %212 = vector.shape_cast %211 : vector<8x8xf32> to vector<1x8x8xf32>
    %213 = vector.extract_strided_slice %161 {offsets = [0, 16], sizes = [8, 8], strides = [1, 1]} : vector<8x32xf32> to vector<8x8xf32>
    %214 = vector.shape_cast %213 : vector<8x8xf32> to vector<1x8x8xf32>
    %cst_89 = arith.constant dense<0.000000e+00> : vector<1x8x8xf32>
    %215 = tpu.matmul %210, %212, %cst_89 {dimension_numbers = #tpu.dot_dimension_numbers<[2], [2], [1], [1], [0, 0, 0, 1, 1, 1], [0], [0]>} : vector<1x8x8xf32>, vector<1x8x8xf32>, vector<1x8x8xf32> -> vector<1x8x8xf32>
    %216 = arith.addf %215, %11 : vector<1x8x8xf32>
    %cst_90 = arith.constant dense<0xFF800000> : vector<1x8xf32>
    %217 = vector.multi_reduction <maximumf>, %216, %cst_90 [2] : vector<1x8x8xf32> to vector<1x8xf32>
    %cst_91 = arith.constant 0xFF800000 : f32
    %218 = vector.broadcast %cst_91 : f32 to vector<1x8xf32>
    %219 = arith.maximumf %218, %217 : vector<1x8xf32>
    %220 = vector.shape_cast %219 : vector<1x8xf32> to vector<1x8x1xf32>
    %221 = vector.broadcast %220 : vector<1x8x1xf32> to vector<1x8x8xf32>
    %222 = arith.subf %216, %221 : vector<1x8x8xf32>
    %223 = math.exp %222 : vector<1x8x8xf32>
    %cst_92 = arith.constant dense<0.000000e+00> : vector<1x8xf32>
    %224 = vector.multi_reduction <add>, %223, %cst_92 [2] : vector<1x8x8xf32> to vector<1x8xf32>
    %225 = vector.shape_cast %224 : vector<1x8xf32> to vector<1x8x1xf32>
    %226 = vector.broadcast %225 : vector<1x8x1xf32> to vector<1x8x8xf32>
    %227 = arith.divf %223, %226 : vector<1x8x8xf32>
    %cst_93 = arith.constant dense<0.000000e+00> : vector<1x8x8xf32>
    %228 = tpu.matmul %227, %214, %cst_93 {dimension_numbers = #tpu.dot_dimension_numbers<[2], [1], [1], [2], [0, 0, 0, 1, 1, 2], [0], [0]>} : vector<1x8x8xf32>, vector<1x8x8xf32>, vector<1x8x8xf32> -> vector<1x8x8xf32>
    %229 = vector.shape_cast %228 : vector<1x8x8xf32> to vector<8x8xf32>
    %230 = vector.extract_strided_slice %156 {offsets = [16, 0], sizes = [8, 32], strides = [1, 1]} : vector<32x32xf32> to vector<8x32xf32>
    %cst_94 = arith.constant dense<0.000000e+00> : vector<8x32xf32>
    %231 = tpu.matmul %229, %230, %cst_94 {dimension_numbers = #tpu.dot_dimension_numbers<[1], [0], [0], [1], [0, 0, 1, 1], [], []>} : vector<8x8xf32>, vector<8x32xf32>, vector<8x32xf32> -> vector<8x32xf32>
    %232 = arith.addf %208, %231 : vector<8x32xf32>
    %233 = vector.extract_strided_slice %159 {offsets = [0, 24], sizes = [8, 8], strides = [1, 1]} : vector<8x32xf32> to vector<8x8xf32>
    %234 = vector.shape_cast %233 : vector<8x8xf32> to vector<1x8x8xf32>
    %235 = vector.extract_strided_slice %160 {offsets = [0, 24], sizes = [8, 8], strides = [1, 1]} : vector<8x32xf32> to vector<8x8xf32>
    %236 = vector.shape_cast %235 : vector<8x8xf32> to vector<1x8x8xf32>
    %237 = vector.extract_strided_slice %161 {offsets = [0, 24], sizes = [8, 8], strides = [1, 1]} : vector<8x32xf32> to vector<8x8xf32>
    %238 = vector.shape_cast %237 : vector<8x8xf32> to vector<1x8x8xf32>
    %cst_95 = arith.constant dense<0.000000e+00> : vector<1x8x8xf32>
    %239 = tpu.matmul %234, %236, %cst_95 {dimension_numbers = #tpu.dot_dimension_numbers<[2], [2], [1], [1], [0, 0, 0, 1, 1, 1], [0], [0]>} : vector<1x8x8xf32>, vector<1x8x8xf32>, vector<1x8x8xf32> -> vector<1x8x8xf32>
    %240 = arith.addf %239, %11 : vector<1x8x8xf32>
    %cst_96 = arith.constant dense<0xFF800000> : vector<1x8xf32>
    %241 = vector.multi_reduction <maximumf>, %240, %cst_96 [2] : vector<1x8x8xf32> to vector<1x8xf32>
    %cst_97 = arith.constant 0xFF800000 : f32
    %242 = vector.broadcast %cst_97 : f32 to vector<1x8xf32>
    %243 = arith.maximumf %242, %241 : vector<1x8xf32>
    %244 = vector.shape_cast %243 : vector<1x8xf32> to vector<1x8x1xf32>
    %245 = vector.broadcast %244 : vector<1x8x1xf32> to vector<1x8x8xf32>
    %246 = arith.subf %240, %245 : vector<1x8x8xf32>
    %247 = math.exp %246 : vector<1x8x8xf32>
    %cst_98 = arith.constant dense<0.000000e+00> : vector<1x8xf32>
    %248 = vector.multi_reduction <add>, %247, %cst_98 [2] : vector<1x8x8xf32> to vector<1x8xf32>
    %249 = vector.shape_cast %248 : vector<1x8xf32> to vector<1x8x1xf32>
    %250 = vector.broadcast %249 : vector<1x8x1xf32> to vector<1x8x8xf32>
    %251 = arith.divf %247, %250 : vector<1x8x8xf32>
    %cst_99 = arith.constant dense<0.000000e+00> : vector<1x8x8xf32>
    %252 = tpu.matmul %251, %238, %cst_99 {dimension_numbers = #tpu.dot_dimension_numbers<[2], [1], [1], [2], [0, 0, 0, 1, 1, 2], [0], [0]>} : vector<1x8x8xf32>, vector<1x8x8xf32>, vector<1x8x8xf32> -> vector<1x8x8xf32>
    %253 = vector.shape_cast %252 : vector<1x8x8xf32> to vector<8x8xf32>
    %254 = vector.extract_strided_slice %156 {offsets = [24, 0], sizes = [8, 32], strides = [1, 1]} : vector<32x32xf32> to vector<8x32xf32>
    %cst_100 = arith.constant dense<0.000000e+00> : vector<8x32xf32>
    %255 = tpu.matmul %253, %254, %cst_100 {dimension_numbers = #tpu.dot_dimension_numbers<[1], [0], [0], [1], [0, 0, 1, 1], [], []>} : vector<8x8xf32>, vector<8x32xf32>, vector<8x32xf32> -> vector<8x32xf32>
    %256 = arith.addf %232, %255 : vector<8x32xf32>
    %257 = vector.shape_cast %180 : vector<1x8x8xf32> to vector<1x1x8x8xf32>
    %258 = vector.shape_cast %203 : vector<1x8x8xf32> to vector<1x1x8x8xf32>
    %259 = vector.shape_cast %227 : vector<1x8x8xf32> to vector<1x1x8x8xf32>
    %260 = vector.shape_cast %251 : vector<1x8x8xf32> to vector<1x1x8x8xf32>
    %261 = tpu.concatenate %257, %258, %259, %260 in 1 : vector<1x1x8x8xf32>, vector<1x1x8x8xf32>, vector<1x1x8x8xf32>, vector<1x1x8x8xf32> -> vector<1x4x8x8xf32>
    %c0_101 = arith.constant 0 : index
    %c0_102 = arith.constant 0 : index
    %c0_103 = arith.constant 0 : index
    %c0_104 = arith.constant 0 : index
    %c0_105 = arith.constant 0 : index
    %262 = vector.load %arg25[%c0_101, %c0_102, %c0_103, %c0_104, %c0_105] : memref<1x1x4x8x8xf32, #tpu.memory_space<vmem>>, vector<1x1x4x8x8xf32>
    %263 = vector.shape_cast %262 : vector<1x1x4x8x8xf32> to vector<1x4x8x8xf32>
    %264 = vector.shape_cast %261 : vector<1x4x8x8xf32> to vector<1x1x4x8x8xf32>
    tpu.vector_store %arg25[%c0_101, %c0_102, %c0_103, %c0_104, %c0_105], %264 {strides = array<i32>} : memref<1x1x4x8x8xf32, #tpu.memory_space<vmem>>, vector<1x1x4x8x8xf32>,
    %265 = arith.addf %256, %148 : vector<8x32xf32>
    %c0_106 = arith.constant 0 : index
    %c0_107 = arith.constant 0 : index
    %c0_108 = arith.constant 0 : index
    %266 = vector.load %arg16[%c0_106, %c0_107, %c0_108] : memref<1x1x32xf32, #tpu.memory_space<vmem>>, vector<1x1x32xf32>
    %267 = vector.shape_cast %266 : vector<1x1x32xf32> to vector<32xf32>
    %c0_109 = arith.constant 0 : index
    %c0_110 = arith.constant 0 : index
    %c0_111 = arith.constant 0 : index
    %268 = vector.load %arg17[%c0_109, %c0_110, %c0_111] : memref<1x1x32xf32, #tpu.memory_space<vmem>>, vector<1x1x32xf32>
    %269 = vector.shape_cast %268 : vector<1x1x32xf32> to vector<32xf32>
    %cst_112 = arith.constant dense<0.000000e+00> : vector<8xf32>
    %270 = vector.multi_reduction <add>, %265, %cst_112 [1] : vector<8x32xf32> to vector<8xf32>
    %271 = vector.shape_cast %270 : vector<8xf32> to vector<8x1xf32>
    %cst_113 = arith.constant 3.200000e+01 : f32
    %272 = vector.broadcast %cst_113 : f32 to vector<8x1xf32>
    %273 = arith.divf %271, %272 : vector<8x1xf32>
    %274 = vector.broadcast %273 : vector<8x1xf32> to vector<8x32xf32>
    %275 = arith.subf %265, %274 : vector<8x32xf32>
    %276 = arith.mulf %275, %275 : vector<8x32xf32>
    %cst_114 = arith.constant dense<0.000000e+00> : vector<8xf32>
    %277 = vector.multi_reduction <add>, %276, %cst_114 [1] : vector<8x32xf32> to vector<8xf32>
    %278 = vector.shape_cast %277 : vector<8xf32> to vector<8x1xf32>
    %cst_115 = arith.constant 3.200000e+01 : f32
    %279 = vector.broadcast %cst_115 : f32 to vector<8x1xf32>
    %280 = arith.divf %278, %279 : vector<8x1xf32>
    %281 = vector.broadcast %273 : vector<8x1xf32> to vector<8x32xf32>
    %282 = arith.subf %265, %281 : vector<8x32xf32>
    %cst_116 = arith.constant 9.99999974E-6 : f32
    %283 = vector.broadcast %cst_116 : f32 to vector<8x1xf32>
    %284 = arith.addf %280, %283 : vector<8x1xf32>
    %285 = math.rsqrt %284 : vector<8x1xf32>
    %286 = vector.broadcast %285 : vector<8x1xf32> to vector<8x32xf32>
    %287 = arith.mulf %282, %286 : vector<8x32xf32>
    %288 = vector.shape_cast %267 : vector<32xf32> to vector<1x32xf32>
    %289 = vector.broadcast %288 : vector<1x32xf32> to vector<8x32xf32>
    %290 = arith.mulf %287, %289 : vector<8x32xf32>
    %291 = vector.shape_cast %269 : vector<32xf32> to vector<1x32xf32>
    %292 = vector.broadcast %291 : vector<1x32xf32> to vector<8x32xf32>
    %293 = arith.addf %290, %292 : vector<8x32xf32>
    %c0_117 = arith.constant 0 : index
    %c0_118 = arith.constant 0 : index
    %c0_119 = arith.constant 0 : index
    %294 = vector.load %arg18[%c0_117, %c0_118, %c0_119] : memref<1x32x64xf32, #tpu.memory_space<vmem>>, vector<1x32x64xf32>
    %295 = vector.shape_cast %294 : vector<1x32x64xf32> to vector<32x64xf32>
    %cst_120 = arith.constant dense<0.000000e+00> : vector<8x64xf32>
    %296 = tpu.matmul %293, %295, %cst_120 {dimension_numbers = #tpu.dot_dimension_numbers<[1], [0], [0], [1], [0, 0, 1, 1], [], []>} : vector<8x32xf32>, vector<32x64xf32>, vector<8x64xf32> -> vector<8x64xf32>
    %c0_121 = arith.constant 0 : index
    %c0_122 = arith.constant 0 : index
    %c0_123 = arith.constant 0 : index
    %297 = vector.load %arg19[%c0_121, %c0_122, %c0_123] : memref<1x1x64xf32, #tpu.memory_space<vmem>>, vector<1x1x64xf32>
    %298 = vector.shape_cast %297 : vector<1x1x64xf32> to vector<64xf32>
    %299 = vector.shape_cast %298 : vector<64xf32> to vector<1x64xf32>
    %300 = vector.broadcast %299 : vector<1x64xf32> to vector<8x64xf32>
    %301 = arith.addf %296, %300 : vector<8x64xf32>
    %cst_124 = arith.constant 0.000000e+00 : f32
    %302 = vector.broadcast %cst_124 : f32 to vector<8x64xf32>
    %303 = arith.maximumf %301, %302 : vector<8x64xf32>
    %c0_125 = arith.constant 0 : index
    %c0_126 = arith.constant 0 : index
    %c0_127 = arith.constant 0 : index
    %304 = vector.load %arg20[%c0_125, %c0_126, %c0_127] : memref<1x64x32xf32, #tpu.memory_space<vmem>>, vector<1x64x32xf32>
    %305 = vector.shape_cast %304 : vector<1x64x32xf32> to vector<64x32xf32>
    %cst_128 = arith.constant dense<0.000000e+00> : vector<8x32xf32>
    %306 = tpu.matmul %303, %305, %cst_128 {dimension_numbers = #tpu.dot_dimension_numbers<[1], [0], [0], [1], [0, 0, 1, 1], [], []>} : vector<8x64xf32>, vector<64x32xf32>, vector<8x32xf32> -> vector<8x32xf32>
    %c0_129 = arith.constant 0 : index
    %c0_130 = arith.constant 0 : index
    %c0_131 = arith.constant 0 : index
    %307 = vector.load %arg21[%c0_129, %c0_130, %c0_131] : memref<1x1x32xf32, #tpu.memory_space<vmem>>, vector<1x1x32xf32>
    %308 = vector.shape_cast %307 : vector<1x1x32xf32> to vector<32xf32>
    %309 = vector.shape_cast %308 : vector<32xf32> to vector<1x32xf32>
    %310 = vector.broadcast %309 : vector<1x32xf32> to vector<8x32xf32>
    %311 = arith.addf %306, %310 : vector<8x32xf32>
    %312 = arith.addf %311, %293 : vector<8x32xf32>
    %c0_132 = arith.constant 0 : index
    %c0_133 = arith.constant 0 : index
    %c0_134 = arith.constant 0 : index
    %313 = vector.load %arg22[%c0_132, %c0_133, %c0_134] : memref<1x1x32xf32, #tpu.memory_space<vmem>>, vector<1x1x32xf32>
    %314 = vector.shape_cast %313 : vector<1x1x32xf32> to vector<32xf32>
    %c0_135 = arith.constant 0 : index
    %c0_136 = arith.constant 0 : index
    %c0_137 = arith.constant 0 : index
    %315 = vector.load %arg23[%c0_135, %c0_136, %c0_137] : memref<1x1x32xf32, #tpu.memory_space<vmem>>, vector<1x1x32xf32>
    %316 = vector.shape_cast %315 : vector<1x1x32xf32> to vector<32xf32>
    %cst_138 = arith.constant dense<0.000000e+00> : vector<8xf32>
    %317 = vector.multi_reduction <add>, %312, %cst_138 [1] : vector<8x32xf32> to vector<8xf32>
    %318 = vector.shape_cast %317 : vector<8xf32> to vector<8x1xf32>
    %cst_139 = arith.constant 3.200000e+01 : f32
    %319 = vector.broadcast %cst_139 : f32 to vector<8x1xf32>
    %320 = arith.divf %318, %319 : vector<8x1xf32>
    %321 = vector.broadcast %320 : vector<8x1xf32> to vector<8x32xf32>
    %322 = arith.subf %312, %321 : vector<8x32xf32>
    %323 = arith.mulf %322, %322 : vector<8x32xf32>
    %cst_140 = arith.constant dense<0.000000e+00> : vector<8xf32>
    %324 = vector.multi_reduction <add>, %323, %cst_140 [1] : vector<8x32xf32> to vector<8xf32>
    %325 = vector.shape_cast %324 : vector<8xf32> to vector<8x1xf32>
    %cst_141 = arith.constant 3.200000e+01 : f32
    %326 = vector.broadcast %cst_141 : f32 to vector<8x1xf32>
    %327 = arith.divf %325, %326 : vector<8x1xf32>
    %328 = vector.broadcast %320 : vector<8x1xf32> to vector<8x32xf32>
    %329 = arith.subf %312, %328 : vector<8x32xf32>
    %cst_142 = arith.constant 9.99999974E-6 : f32
    %330 = vector.broadcast %cst_142 : f32 to vector<8x1xf32>
    %331 = arith.addf %327, %330 : vector<8x1xf32>
    %332 = math.rsqrt %331 : vector<8x1xf32>
    %333 = vector.broadcast %332 : vector<8x1xf32> to vector<8x32xf32>
    %334 = arith.mulf %329, %333 : vector<8x32xf32>
    %335 = vector.shape_cast %314 : vector<32xf32> to vector<1x32xf32>
    %336 = vector.broadcast %335 : vector<1x32xf32> to vector<8x32xf32>
    %337 = arith.mulf %334, %336 : vector<8x32xf32>
    %338 = vector.shape_cast %316 : vector<32xf32> to vector<1x32xf32>
    %339 = vector.broadcast %338 : vector<1x32xf32> to vector<8x32xf32>
    %340 = arith.addf %337, %339 : vector<8x32xf32>
    %341 = vector.shape_cast %340 : vector<8x32xf32> to vector<1x8x32xf32>
    %c0_143 = arith.constant 0 : index
    %c0_144 = arith.constant 0 : index
    %c0_145 = arith.constant 0 : index
    %342 = vector.load %arg26[%c0_143, %c0_144, %c0_145] : memref<1x8x32xf32, #tpu.memory_space<vmem>>, vector<1x8x32xf32>
    tpu.vector_store %arg26[%c0_143, %c0_144, %c0_145], %341 {strides = array<i32>} : memref<1x8x32xf32, #tpu.memory_space<vmem>>, vector<1x8x32xf32>,
    %c0_146 = arith.constant 0 : index
    %c0_147 = arith.constant 0 : index
    %c0_148 = arith.constant 0 : index
    %343 = vector.load %arg24[%c0_146, %c0_147, %c0_148] : memref<1x8x32xf32, #tpu.memory_space<vmem>>, vector<1x8x32xf32>
    tpu.vector_store %arg24[%c0_146, %c0_147, %c0_148], %341 {strides = array<i32>} : memref<1x8x32xf32, #tpu.memory_space<vmem>>, vector<1x8x32xf32>,
    return
  }
  func.func @transform_0(%arg0: i32, %arg1: i32) -> (i32, i32, i32) {
    %c0_i32 = arith.constant 0 : i32
    %c0_i32_0 = arith.constant 0 : i32
    %c0_i32_1 = arith.constant 0 : i32
    return %arg0, %c0_i32, %c0_i32_0 : i32, i32, i32
  }
  func.func @transform_1(%arg0: i32, %arg1: i32) -> (i32, i32, i32) {
    %c0_i32 = arith.constant 0 : i32
    %c0_i32_0 = arith.constant 0 : i32
    %c0_i32_1 = arith.constant 0 : i32
    return %arg0, %c0_i32, %c0_i32_0 : i32, i32, i32
  }
  func.func @transform_2(%arg0: i32, %arg1: i32) -> (i32, i32) {
    %c0_i32 = arith.constant 0 : i32
    %c0_i32_0 = arith.constant 0 : i32
    %c0_i32_1 = arith.constant 0 : i32
    return %c0_i32, %c0_i32_0 : i32, i32
  }
  func.func @transform_3(%arg0: i32, %arg1: i32) -> (i32, i32, i32) {
    %c0_i32 = arith.constant 0 : i32
    %c0_i32_0 = arith.constant 0 : i32
    %c0_i32_1 = arith.constant 0 : i32
    return %arg0, %c0_i32, %c0_i32_0 : i32, i32, i32
  }
  func.func @transform_4(%arg0: i32, %arg1: i32) -> (i32, i32, i32) {
    %c0_i32 = arith.constant 0 : i32
    %c0_i32_0 = arith.constant 0 : i32
    %c0_i32_1 = arith.constant 0 : i32
    return %arg1, %c0_i32, %c0_i32_0 : i32, i32, i32
  }
  func.func @transform_5(%arg0: i32, %arg1: i32) -> (i32, i32, i32) {
    %c0_i32 = arith.constant 0 : i32
    %c0_i32_0 = arith.constant 0 : i32
    %c0_i32_1 = arith.constant 0 : i32
    return %arg1, %c0_i32, %c0_i32_0 : i32, i32, i32
  }
  func.func @transform_6(%arg0: i32, %arg1: i32) -> (i32, i32, i32) {
    %c0_i32 = arith.constant 0 : i32
    %c0_i32_0 = arith.constant 0 : i32
    %c0_i32_1 = arith.constant 0 : i32
    return %arg1, %c0_i32, %c0_i32_0 : i32, i32, i32
  }
  func.func @transform_7(%arg0: i32, %arg1: i32) -> (i32, i32, i32) {
    %c0_i32 = arith.constant 0 : i32
    %c0_i32_0 = arith.constant 0 : i32
    %c0_i32_1 = arith.constant 0 : i32
    return %arg1, %c0_i32, %c0_i32_0 : i32, i32, i32
  }
  func.func @transform_8(%arg0: i32, %arg1: i32) -> (i32, i32, i32) {
    %c0_i32 = arith.constant 0 : i32
    %c0_i32_0 = arith.constant 0 : i32
    %c0_i32_1 = arith.constant 0 : i32
    return %arg1, %c0_i32, %c0_i32_0 : i32, i32, i32
  }
  func.func @transform_9(%arg0: i32, %arg1: i32) -> (i32, i32, i32) {
    %c0_i32 = arith.constant 0 : i32
    %c0_i32_0 = arith.constant 0 : i32
    %c0_i32_1 = arith.constant 0 : i32
    return %arg1, %c0_i32, %c0_i32_0 : i32, i32, i32
  }
  func.func @transform_10(%arg0: i32, %arg1: i32) -> (i32, i32, i32) {
    %c0_i32 = arith.constant 0 : i32
    %c0_i32_0 = arith.constant 0 : i32
    %c0_i32_1 = arith.constant 0 : i32
    return %arg1, %c0_i32, %c0_i32_0 : i32, i32, i32
  }
  func.func @transform_11(%arg0: i32, %arg1: i32) -> (i32, i32, i32) {
    %c0_i32 = arith.constant 0 : i32
    %c0_i32_0 = arith.constant 0 : i32
    %c0_i32_1 = arith.constant 0 : i32
    return %arg1, %c0_i32, %c0_i32_0 : i32, i32, i32
  }
  func.func @transform_12(%arg0: i32, %arg1: i32) -> (i32, i32, i32) {
    %c0_i32 = arith.constant 0 : i32
    %c0_i32_0 = arith.constant 0 : i32
    %c0_i32_1 = arith.constant 0 : i32
    return %arg1, %c0_i32, %c0_i32_0 : i32, i32, i32
  }
  func.func @transform_13(%arg0: i32, %arg1: i32) -> (i32, i32, i32) {
    %c0_i32 = arith.constant 0 : i32
    %c0_i32_0 = arith.constant 0 : i32
    %c0_i32_1 = arith.constant 0 : i32
    return %arg1, %c0_i32, %c0_i32_0 : i32, i32, i32
  }
  func.func @transform_14(%arg0: i32, %arg1: i32) -> (i32, i32, i32) {
    %c0_i32 = arith.constant 0 : i32
    %c0_i32_0 = arith.constant 0 : i32
    %c0_i32_1 = arith.constant 0 : i32
    return %arg1, %c0_i32, %c0_i32_0 : i32, i32, i32
  }
  func.func @transform_15(%arg0: i32, %arg1: i32) -> (i32, i32, i32) {
    %c0_i32 = arith.constant 0 : i32
    %c0_i32_0 = arith.constant 0 : i32
    %c0_i32_1 = arith.constant 0 : i32
    return %arg1, %c0_i32, %c0_i32_0 : i32, i32, i32
  }
  func.func @transform_16(%arg0: i32, %arg1: i32) -> (i32, i32, i32) {
    %c0_i32 = arith.constant 0 : i32
    %c0_i32_0 = arith.constant 0 : i32
    %c0_i32_1 = arith.constant 0 : i32
    return %arg1, %c0_i32, %c0_i32_0 : i32, i32, i32
  }
  func.func @transform_17(%arg0: i32, %arg1: i32) -> (i32, i32, i32) {
    %c0_i32 = arith.constant 0 : i32
    %c0_i32_0 = arith.constant 0 : i32
    %c0_i32_1 = arith.constant 0 : i32
    return %arg1, %c0_i32, %c0_i32_0 : i32, i32, i32
  }
  func.func @transform_18(%arg0: i32, %arg1: i32) -> (i32, i32, i32) {
    %c0_i32 = arith.constant 0 : i32
    %c0_i32_0 = arith.constant 0 : i32
    %c0_i32_1 = arith.constant 0 : i32
    return %arg1, %c0_i32, %c0_i32_0 : i32, i32, i32
  }
  func.func @transform_19(%arg0: i32, %arg1: i32) -> (i32, i32, i32) {
    %c0_i32 = arith.constant 0 : i32
    %c0_i32_0 = arith.constant 0 : i32
    %c0_i32_1 = arith.constant 0 : i32
    return %arg1, %c0_i32, %c0_i32_0 : i32, i32, i32
  }
  func.func @transform_20(%arg0: i32, %arg1: i32) -> (i32, i32, i32) {
    %c0_i32 = arith.constant 0 : i32
    %c0_i32_0 = arith.constant 0 : i32
    %c0_i32_1 = arith.constant 0 : i32
    return %arg1, %c0_i32, %c0_i32_0 : i32, i32, i32
  }
  func.func @transform_21(%arg0: i32, %arg1: i32) -> (i32, i32, i32) {
    %c0_i32 = arith.constant 0 : i32
    %c0_i32_0 = arith.constant 0 : i32
    %c0_i32_1 = arith.constant 0 : i32
    return %arg1, %c0_i32, %c0_i32_0 : i32, i32, i32
  }
  func.func @transform_22(%arg0: i32, %arg1: i32) -> (i32, i32, i32) {
    %c0_i32 = arith.constant 0 : i32
    %c0_i32_0 = arith.constant 0 : i32
    %c0_i32_1 = arith.constant 0 : i32
    return %arg0, %c0_i32, %c0_i32_0 : i32, i32, i32
  }
  func.func @transform_23(%arg0: i32, %arg1: i32) -> (i32, i32, i32, i32, i32) {
    %c0_i32 = arith.constant 0 : i32
    %c0_i32_0 = arith.constant 0 : i32
    %c0_i32_1 = arith.constant 0 : i32
    %c0_i32_2 = arith.constant 0 : i32
    return %arg1, %arg0, %c0_i32, %c0_i32_0, %c0_i32_1 : i32, i32, i32, i32, i32
  }
}

</mosaic_0001>

<llo_original>
// kernel: tpu_custom_call.1
$region0: #{tpu_custom_call.1}
  #allocation0 [shape = 'u32[]', space=smem, size = 0x4, offset = 0x4, fixed_abs, tag = 'smem constant byte address 0x4 - core index']
  #allocation1 [shape = 'u32[144,128]{1,0:T(1,128)}', space=vmem, size = 0x12000, scoped, tag = 'internal scratch']
  #allocation2 [shape = 'f32[1,8,32]{2,1,0:T(8,128)}', space=vmem, size = 0x1000, scoped, tag = 'scratch operand']
  %s0 = inlined_call_operand.hbm [shape: f32[2,8,32], index: 0, kind: input, shape index: {}]
  %s1 = inlined_call_operand.hbm [shape: f32[2,8,32], index: 1, kind: input, shape index: {}]
  %s2 = inlined_call_operand.hbm [shape: f32[8,8], index: 2, kind: input, shape index: {}]
  %s3 = inlined_call_operand.vmem [shape: f32[2,1,8], index: 3, kind: input, shape index: {}]
  %s4 = inlined_call_operand.vmem [shape: f32[2,32,32], index: 4, kind: input, shape index: {}]
  %s5 = inlined_call_operand.vmem [shape: f32[2,32,32], index: 5, kind: input, shape index: {}]
  %s6 = inlined_call_operand.vmem [shape: f32[2,32,32], index: 6, kind: input, shape index: {}]
  %s7 = inlined_call_operand.hbm [shape: f32[2,32,32], index: 7, kind: input, shape index: {}]
  %s8 = inlined_call_operand.vmem [shape: f32[2,1,32], index: 8, kind: input, shape index: {}]
  %s9 = inlined_call_operand.hbm [shape: f32[2,1,32], index: 9, kind: input, shape index: {}]
  %s10 = inlined_call_operand.hbm [shape: f32[2,32,32], index: 10, kind: input, shape index: {}]
  %s11 = inlined_call_operand.hbm [shape: f32[2,32,32], index: 11, kind: input, shape index: {}]
  %s12 = inlined_call_operand.hbm [shape: f32[2,32,32], index: 12, kind: input, shape index: {}]
  %s13 = inlined_call_operand.hbm [shape: f32[2,32,32], index: 13, kind: input, shape index: {}]
  %s14 = inlined_call_operand.hbm [shape: f32[2,1,32], index: 14, kind: input, shape index: {}]
  %s15 = inlined_call_operand.hbm [shape: f32[2,1,32], index: 15, kind: input, shape index: {}]
  %s16 = inlined_call_operand.hbm [shape: f32[2,32,64], index: 16, kind: input, shape index: {}]
  %s17 = inlined_call_operand.hbm [shape: f32[2,1,64], index: 17, kind: input, shape index: {}]
  %s18 = inlined_call_operand.vmem [shape: f32[2,64,32], index: 18, kind: input, shape index: {}]
  %s19 = inlined_call_operand.vmem [shape: f32[2,1,32], index: 19, kind: input, shape index: {}]
  %s20 = inlined_call_operand.vmem [shape: f32[2,1,32], index: 20, kind: input, shape index: {}]
  %s21 = inlined_call_operand.vmem [shape: f32[2,1,32], index: 21, kind: input, shape index: {}]
  %s22 = inlined_call_operand.hbm [shape: f32[2,8,32], index: 22, kind: output, shape index: {0}]
  %s23 = inlined_call_operand.hbm [shape: f32[2,2,4,8,8], index: 23, kind: output, shape index: {1}]
  %24 = xla_tuple %s22, %s23
  %s25 = sld [smem:[#allocation0]]
  $region185: #{tpu_custom_call.1} parent=0
    _
  %s27 = ssub.s32 1, %s25
  %s28 = scalar_select 0, %s27, %s25
  $region1: #{tpu_custom_call.1} parent=0
    #allocation3 [shape = 'u8[8192]{0}', space=vmem, size = 0x2000, scoped, tag = 'input window, operand 0']
    #allocation4 [shape = 's32[2]{0}', space=sflag, size = 0x8, scoped, tag = 'scoped memory for tpu_custom_call.1']
    #allocation5 [shape = 's32[2]{0}', space=sflag, size = 0x8, scoped, tag = 'scoped memory for tpu_custom_call.1']
    #allocation6 [shape = 'u8[8192]{0}', space=vmem, size = 0x2000, scoped, tag = 'input window, operand 1']
    #allocation7 [shape = 's32[2]{0}', space=sflag, size = 0x8, scoped, tag = 'scoped memory for tpu_custom_call.1']
    #allocation8 [shape = 'u8[4096]{0}', space=vmem, size = 0x1000, scoped, tag = 'input window, operand 2, single buffered']
    #allocation9 [shape = 'u8[32768]{0}', space=vmem, size = 0x8000, scoped, tag = 'input window, operand 7']
    #allocation10 [shape = 's32[2]{0}', space=sflag, size = 0x8, scoped, tag = 'scoped memory for tpu_custom_call.1']
    #allocation11 [shape = 'u8[1024]{0}', space=vmem, size = 0x400, scoped, tag = 'input window, operand 9']
    #allocation12 [shape = 'u8[32768]{0}', space=vmem, size = 0x8000, scoped, tag = 'input window, operand 10']
    #allocation13 [shape = 's32[2]{0}', space=sflag, size = 0x8, scoped, tag = 'scoped memory for tpu_custom_call.1']
    #allocation14 [shape = 'u8[32768]{0}', space=vmem, size = 0x8000, scoped, tag = 'input window, operand 11']
    #allocation15 [shape = 'u8[32768]{0}', space=vmem, size = 0x8000, scoped, tag = 'input window, operand 12']
    #allocation16 [shape = 's32[2]{0}', space=sflag, size = 0x8, scoped, tag = 'scoped memory for tpu_custom_call.1']
    #allocation17 [shape = 'u8[32768]{0}', space=vmem, size = 0x8000, scoped, tag = 'input window, operand 13']
    #allocation18 [shape = 'u8[1024]{0}', space=vmem, size = 0x400, scoped, tag = 'input window, operand 14']
    #allocation19 [shape = 's32[2]{0}', space=sflag, size = 0x8, scoped, tag = 'scoped memory for tpu_custom_call.1']
    #allocation20 [shape = 'u8[1024]{0}', space=vmem, size = 0x400, scoped, tag = 'input window, operand 15']
    #allocation21 [shape = 'u8[32768]{0}', space=vmem, size = 0x8000, scoped, tag = 'input window, operand 16']
    #allocation22 [shape = 's32[2]{0}', space=sflag, size = 0x8, scoped, tag = 'scoped memory for tpu_custom_call.1']
    #allocation23 [shape = 'u8[1024]{0}', space=vmem, size = 0x400, scoped, tag = 'input window, operand 17']
    #allocation24 [shape = 'u8[8192]{0}', space=vmem, size = 0x2000, scoped, tag = 'output window, operand 0']
    #allocation25 [shape = 'u8[32768]{0}', space=vmem, size = 0x8000, scoped, tag = 'output window, operand 1']
    #allocation26 [shape = 's32[2]{0}', space=sflag, size = 0x8, scoped, tag = 'scoped memory for tpu_custom_call.1']
    %29 = vsyncpa [#allocation4], 0
    %s30 = scalar_lea.sflag [#allocation4], 1
    %31 = vsyncpa %s30, 0
    %32 = vsyncpa [#allocation7], 0
    %s33 = scalar_lea.sflag [#allocation7], 1
    %34 = vsyncpa %s33, 0
    %35 = vsyncpa [#allocation10], 0
    %s36 = scalar_lea.sflag [#allocation10], 1
    %37 = vsyncpa %s36, 0
    %38 = vsyncpa [#allocation13], 0
    %s39 = scalar_lea.sflag [#allocation13], 1
    %40 = vsyncpa %s39, 0
    %41 = vsyncpa [#allocation16], 0
    %s42 = scalar_lea.sflag [#allocation16], 1
    %43 = vsyncpa %s42, 0
    %44 = vsyncpa [#allocation19], 0
    %s45 = scalar_lea.sflag [#allocation19], 1
    %46 = vsyncpa %s45, 0
    %47 = vsyncpa [#allocation22], 0
    %s48 = scalar_lea.sflag [#allocation22], 1
    %49 = vsyncpa %s48, 0
    %50 = vsyncpa [#allocation5], 0
    %s51 = scalar_lea.sflag [#allocation5], 1
    %52 = vsyncpa %s51, 0
    %53 = vsyncpa [#allocation26], 0
    %s54 = scalar_lea.sflag [#allocation26], 1
    %55 = vsyncpa %s54, 0
    loop: start=0, step=1, limit=6
    $region2: #{tpu_custom_call.1} parent=1 // loop_pre_header
      _
    $region3: #{tpu_custom_call.1} parent=1 // loop_header
      %s57 = sphi 0, %s61
      %p58 = scmp.ge.s32.totalorder %s57, 6
      %s64 = sphi 0, %s76
      %s65 = sphi 0, %s72
      %s66 = sphi 0, %s64
      %s67 = sphi 0, %s65
      %s68 = sphi 0, %s66
      %s69 = sphi 0, %s67
      %s79 = sphi 0, %s81
      %s82 = sphi 0, %s79
      %s83 = sphi 0, %s82
      %s99 = sphi 0, %s83
      %s105 = sphi 0, %s107
      %s108 = sphi 0, %s105
      %s109 = sphi 0, %s108
      %s125 = sphi 0, %s109
      %s129 = sphi 0, %s129
      %s131 = sphi 0, %s129
      %s132 = sphi 0, %s131
      %s146 = sphi 0, %s132
      %s152 = sphi 0, %s154
      %s155 = sphi 0, %s152
      %s156 = sphi 0, %s155
      %s172 = sphi 0, %s156
      %s178 = sphi 0, %s180
      %s181 = sphi 0, %s178
      %s182 = sphi 0, %s181
      %s198 = sphi 0, %s182
      %s204 = sphi 0, %s206
      %s207 = sphi 0, %s204
      %s208 = sphi 0, %s207
      %s224 = sphi 0, %s208
      %s230 = sphi 0, %s232
      %s233 = sphi 0, %s230
      %s234 = sphi 0, %s233
      %s250 = sphi 0, %s234
      %s256 = sphi 0, %s258
      %s259 = sphi 0, %s256
      %s260 = sphi 0, %s259
      %s276 = sphi 0, %s260
      %s282 = sphi 0, %s284
      %s285 = sphi 0, %s282
      %s286 = sphi 0, %s285
      %s302 = sphi 0, %s286
      %s308 = sphi 0, %s310
      %s311 = sphi 0, %s308
      %s312 = sphi 0, %s311
      %s328 = sphi 0, %s312
      %s334 = sphi 0, %s336
      %s337 = sphi 0, %s334
      %s338 = sphi 0, %s337
      %s354 = sphi 0, %s338
      %s360 = sphi 0, %s362
      %s363 = sphi 0, %s360
      %s364 = sphi 0, %s363
      %s380 = sphi 0, %s364
      %s386 = sphi 0, %s388
      %s389 = sphi 0, %s386
      %s390 = sphi 0, %s389
      %s406 = sphi 0, %s390
      %s412 = sphi 0, %s414
      %s415 = sphi 0, %s412
      %s416 = sphi 0, %s415
      %s432 = sphi 0, %s416
      %s438 = sphi 0, %s440
      %s441 = sphi 0, %s438
      %s442 = sphi 0, %s441
      %s458 = sphi 0, %s442
      %s464 = sphi 0, %s466
      %s467 = sphi 0, %s464
      %s468 = sphi 0, %s467
      %s484 = sphi 0, %s468
      %s490 = sphi 0, %s492
      %s493 = sphi 0, %s490
      %s494 = sphi 0, %s493
      %s510 = sphi 0, %s494
      %s516 = sphi 0, %s518
      %s519 = sphi 0, %s516
      %s520 = sphi 0, %s519
      %s536 = sphi 0, %s520
      %s542 = sphi 0, %s544
      %s545 = sphi 0, %s542
      %s546 = sphi 0, %s545
      %s562 = sphi 0, %s546
      %s568 = sphi 0, %s570
      %s571 = sphi 0, %s568
      %s572 = sphi 0, %s571
      %s588 = sphi 0, %s572
      %s594 = sphi 0, %s596
      %s597 = sphi 0, %s594
      %s598 = sphi 0, %s597
      %s614 = sphi 0, %s598
      %s620 = sphi 0, %s622
      %s623 = sphi 0, %s620
      %s624 = sphi 0, %s623
      %s640 = sphi 0, %s624
      %s646 = sphi 0, %s648
      %s649 = sphi 0, %s646
      %s650 = sphi 0, %s649
      %s666 = sphi 0, %s650
      %s674 = sphi 0, %s676
      %s677 = sphi 0, %s674
      %s678 = sphi 0, %s677
      %s694 = sphi 0, %s678
    $region4: #{tpu_custom_call.1} parent=1 // loop_header_branch
      %60 = sbr.rel (%p58) target = $region8
    $region5: #{tpu_custom_call.1} parent=1 // loop_body
      %s62 = ssub.s32 %s57, 1
      %s63 = ssub.s32 %s57, 2
      %s70 = sadd.s32 1, %s65
      %p71 = scmp.ge.s32.totalorder %s70, 2
      %s72 = scalar_select %p71, 0, %s70
      %s73 = sadd.s32 1, %s64
      %s74 = scalar_select %p71, %s73, %s64
      %p75 = scmp.ge.s32.totalorder %s74, 2
      %s76 = scalar_select %p75, 0, %s74
      %s77 = ssub.s32 %s64, %s76
      %p78 = scmp.eq.s32.totalorder %s77, 0
      %s80 = sadd.s32 %s79, 1
      %s81 = scalar_select %p78, %s79, %s80
      %p84 = pneg %p78
      %p85 = scmp.eq.s32.totalorder %s57, 3
      %p86 = por %p84, %p85
      %p87 = scmp.ne.s32.totalorder %s79, %s82
      %p88 = scmp.eq.s32.totalorder %s57, 0
      %p89 = por %p87, %p88
      %p90 = scmp.ne.s32.totalorder %s79, %s82
      %p91 = scmp.eq.s32.totalorder %s62, 3
      %p92 = por %p90, %p91
      %p93 = scmp.ne.s32.totalorder %s82, %s83
      %p94 = scmp.eq.s32.totalorder %s62, 0
      %p95 = por %p93, %p94
      %p96 = scmp.ne.s32.totalorder %s82, %s83
      %p97 = scmp.eq.s32.totalorder %s63, 3
      %p98 = por %p96, %p97
      %p100 = scmp.ne.s32.totalorder %s83, %s99
      %p101 = scmp.eq.s32.totalorder %s63, 0
      %p102 = por %p100, %p101
      %s103 = ssub.s32 %s64, %s76
      %p104 = scmp.eq.s32.totalorder %s103, 0
      %s106 = sadd.s32 %s105, 1
      %s107 = scalar_select %p104, %s105, %s106
      %p110 = pneg %p104
      %p111 = scmp.eq.s32.totalorder %s57, 3
      %p112 = por %p110, %p111
      %p113 = scmp.ne.s32.totalorder %s105, %s108
      %p114 = scmp.eq.s32.totalorder %s57, 0
      %p115 = por %p113, %p114
      %p116 = scmp.ne.s32.totalorder %s105, %s108
      %p117 = scmp.eq.s32.totalorder %s62, 3
      %p118 = por %p116, %p117
      %p119 = scmp.ne.s32.totalorder %s108, %s109
      %p120 = scmp.eq.s32.totalorder %s62, 0
      %p121 = por %p119, %p120
      %p122 = scmp.ne.s32.totalorder %s108, %s109
      %p123 = scmp.eq.s32.totalorder %s63, 3
      %p124 = por %p122, %p123
      %p126 = scmp.ne.s32.totalorder %s109, %s125
      %p127 = scmp.eq.s32.totalorder %s63, 0
      %p128 = por %p126, %p127
      %s130 = sadd.s32 %s129, 1
      %p133 = scmp.eq.s32.totalorder %s57, 3
      %p134 = scmp.ne.s32.totalorder %s129, %s131
      %p135 = scmp.eq.s32.totalorder %s57, 0
      %p136 = por %p134, %p135
      %p137 = scmp.ne.s32.totalorder %s129, %s131
      %p138 = scmp.eq.s32.totalorder %s62, 3
      %p139 = por %p137, %p138
      %p140 = scmp.ne.s32.totalorder %s131, %s132
      %p141 = scmp.eq.s32.totalorder %s62, 0
      %p142 = por %p140, %p141
      %p143 = scmp.ne.s32.totalorder %s131, %s132
      %p144 = scmp.eq.s32.totalorder %s63, 3
      %p145 = por %p143, %p144
      %p147 = scmp.ne.s32.totalorder %s132, %s146
      %p148 = scmp.eq.s32.totalorder %s63, 0
      %p149 = por %p147, %p148
      %s150 = ssub.s32 %s64, %s76
      %p151 = scmp.eq.s32.totalorder %s150, 0
      %s153 = sadd.s32 %s152, 1
      %s154 = scalar_select %p151, %s152, %s153
      %p157 = pneg %p151
      %p158 = scmp.eq.s32.totalorder %s57, 3
      %p159 = por %p157, %p158
      %p160 = scmp.ne.s32.totalorder %s152, %s155
      %p161 = scmp.eq.s32.totalorder %s57, 0
      %p162 = por %p160, %p161
      %p163 = scmp.ne.s32.totalorder %s152, %s155
      %p164 = scmp.eq.s32.totalorder %s62, 3
      %p165 = por %p163, %p164
      %p166 = scmp.ne.s32.totalorder %s155, %s156
      %p167 = scmp.eq.s32.totalorder %s62, 0
      %p168 = por %p166, %p167
      %p169 = scmp.ne.s32.totalorder %s155, %s156
      %p170 = scmp.eq.s32.totalorder %s63, 3
      %p171 = por %p169, %p170
      %p173 = scmp.ne.s32.totalorder %s156, %s172
      %p174 = scmp.eq.s32.totalorder %s63, 0
      %p175 = por %p173, %p174
      %s176 = ssub.s32 %s65, %s72
      %p177 = scmp.eq.s32.totalorder %s176, 0
      %s179 = sadd.s32 %s178, 1
      %s180 = scalar_select %p177, %s178, %s179
      %p183 = pneg %p177
      %p184 = scmp.eq.s32.totalorder %s57, 3
      %p185 = por %p183, %p184
      %p186 = scmp.ne.s32.totalorder %s178, %s181
      %p187 = scmp.eq.s32.totalorder %s57, 0
      %p188 = por %p186, %p187
      %p189 = scmp.ne.s32.totalorder %s178, %s181
      %p190 = scmp.eq.s32.totalorder %s62, 3
      %p191 = por %p189, %p190
      %p192 = scmp.ne.s32.totalorder %s181, %s182
      %p193 = scmp.eq.s32.totalorder %s62, 0
      %p194 = por %p192, %p193
      %p195 = scmp.ne.s32.totalorder %s181, %s182
      %p196 = scmp.eq.s32.totalorder %s63, 3
      %p197 = por %p195, %p196
      %p199 = scmp.ne.s32.totalorder %s182, %s198
      %p200 = scmp.eq.s32.totalorder %s63, 0
      %p201 = por %p199, %p200
      %s202 = ssub.s32 %s65, %s72
      %p203 = scmp.eq.s32.totalorder %s202, 0
      %s205 = sadd.s32 %s204, 1
      %s206 = scalar_select %p203, %s204, %s205
      %p209 = pneg %p203
      %p210 = scmp.eq.s32.totalorder %s57, 3
      %p211 = por %p209, %p210
      %p212 = scmp.ne.s32.totalorder %s204, %s207
      %p213 = scmp.eq.s32.totalorder %s57, 0
      %p214 = por %p212, %p213
      %p215 = scmp.ne.s32.totalorder %s204, %s207
      %p216 = scmp.eq.s32.totalorder %s62, 3
      %p217 = por %p215, %p216
      %p218 = scmp.ne.s32.totalorder %s207, %s208
      %p219 = scmp.eq.s32.totalorder %s62, 0
      %p220 = por %p218, %p219
      %p221 = scmp.ne.s32.totalorder %s207, %s208
      %p222 = scmp.eq.s32.totalorder %s63, 3
      %p223 = por %p221, %p222
      %p225 = scmp.ne.s32.totalorder %s208, %s224
      %p226 = scmp.eq.s32.totalorder %s63, 0
      %p227 = por %p225, %p226
      %s228 = ssub.s32 %s65, %s72
      %p229 = scmp.eq.s32.totalorder %s228, 0
      %s231 = sadd.s32 %s230, 1
      %s232 = scalar_select %p229, %s230, %s231
      %p235 = pneg %p229
      %p236 = scmp.eq.s32.totalorder %s57, 3
      %p237 = por %p235, %p236
      %p238 = scmp.ne.s32.totalorder %s230, %s233
      %p239 = scmp.eq.s32.totalorder %s57, 0
      %p240 = por %p238, %p239
      %p241 = scmp.ne.s32.totalorder %s230, %s233
      %p242 = scmp.eq.s32.totalorder %s62, 3
      %p243 = por %p241, %p242
      %p244 = scmp.ne.s32.totalorder %s233, %s234
      %p245 = scmp.eq.s32.totalorder %s62, 0
      %p246 = por %p244, %p245
      %p247 = scmp.ne.s32.totalorder %s233, %s234
      %p248 = scmp.eq.s32.totalorder %s63, 3
      %p249 = por %p247, %p248
      %p251 = scmp.ne.s32.totalorder %s234, %s250
      %p252 = scmp.eq.s32.totalorder %s63, 0
      %p253 = por %p251, %p252
      %s254 = ssub.s32 %s65, %s72
      %p255 = scmp.eq.s32.totalorder %s254, 0
      %s257 = sadd.s32 %s256, 1
      %s258 = scalar_select %p255, %s256, %s257
      %p261 = pneg %p255
      %p262 = scmp.eq.s32.totalorder %s57, 3
      %p263 = por %p261, %p262
      %p264 = scmp.ne.s32.totalorder %s256, %s259
      %p265 = scmp.eq.s32.totalorder %s57, 0
      %p266 = por %p264, %p265
      %p267 = scmp.ne.s32.totalorder %s256, %s259
      %p268 = scmp.eq.s32.totalorder %s62, 3
      %p269 = por %p267, %p268
      %p270 = scmp.ne.s32.totalorder %s259, %s260
      %p271 = scmp.eq.s32.totalorder %s62, 0
      %p272 = por %p270, %p271
      %p273 = scmp.ne.s32.totalorder %s259, %s260
      %p274 = scmp.eq.s32.totalorder %s63, 3
      %p275 = por %p273, %p274
      %p277 = scmp.ne.s32.totalorder %s260, %s276
      %p278 = scmp.eq.s32.totalorder %s63, 0
      %p279 = por %p277, %p278
      %s280 = ssub.s32 %s65, %s72
      %p281 = scmp.eq.s32.totalorder %s280, 0
      %s283 = sadd.s32 %s282, 1
      %s284 = scalar_select %p281, %s282, %s283
      %p287 = pneg %p281
      %p288 = scmp.eq.s32.totalorder %s57, 3
      %p289 = por %p287, %p288
      %p290 = scmp.ne.s32.totalorder %s282, %s285
      %p291 = scmp.eq.s32.totalorder %s57, 0
      %p292 = por %p290, %p291
      %p293 = scmp.ne.s32.totalorder %s282, %s285
      %p294 = scmp.eq.s32.totalorder %s62, 3
      %p295 = por %p293, %p294
      %p296 = scmp.ne.s32.totalorder %s285, %s286
      %p297 = scmp.eq.s32.totalorder %s62, 0
      %p298 = por %p296, %p297
      %p299 = scmp.ne.s32.totalorder %s285, %s286
      %p300 = scmp.eq.s32.totalorder %s63, 3
      %p301 = por %p299, %p300
      %p303 = scmp.ne.s32.totalorder %s286, %s302
      %p304 = scmp.eq.s32.totalorder %s63, 0
      %p305 = por %p303, %p304
      %s306 = ssub.s32 %s65, %s72
      %p307 = scmp.eq.s32.totalorder %s306, 0
      %s309 = sadd.s32 %s308, 1
      %s310 = scalar_select %p307, %s308, %s309
      %p313 = pneg %p307
      %p314 = scmp.eq.s32.totalorder %s57, 3
      %p315 = por %p313, %p314
      %p316 = scmp.ne.s32.totalorder %s308, %s311
      %p317 = scmp.eq.s32.totalorder %s57, 0
      %p318 = por %p316, %p317
      %p319 = scmp.ne.s32.totalorder %s308, %s311
      %p320 = scmp.eq.s32.totalorder %s62, 3
      %p321 = por %p319, %p320
      %p322 = scmp.ne.s32.totalorder %s311, %s312
      %p323 = scmp.eq.s32.totalorder %s62, 0
      %p324 = por %p322, %p323
      %p325 = scmp.ne.s32.totalorder %s311, %s312
      %p326 = scmp.eq.s32.totalorder %s63, 3
      %p327 = por %p325, %p326
      %p329 = scmp.ne.s32.totalorder %s312, %s328
      %p330 = scmp.eq.s32.totalorder %s63, 0
      %p331 = por %p329, %p330
      %s332 = ssub.s32 %s65, %s72
      %p333 = scmp.eq.s32.totalorder %s332, 0
      %s335 = sadd.s32 %s334, 1
      %s336 = scalar_select %p333, %s334, %s335
      %p339 = pneg %p333
      %p340 = scmp.eq.s32.totalorder %s57, 3
      %p341 = por %p339, %p340
      %p342 = scmp.ne.s32.totalorder %s334, %s337
      %p343 = scmp.eq.s32.totalorder %s57, 0
      %p344 = por %p342, %p343
      %p345 = scmp.ne.s32.totalorder %s334, %s337
      %p346 = scmp.eq.s32.totalorder %s62, 3
      %p347 = por %p345, %p346
      %p348 = scmp.ne.s32.totalorder %s337, %s338
      %p349 = scmp.eq.s32.totalorder %s62, 0
      %p350 = por %p348, %p349
      %p351 = scmp.ne.s32.totalorder %s337, %s338
      %p352 = scmp.eq.s32.totalorder %s63, 3
      %p353 = por %p351, %p352
      %p355 = scmp.ne.s32.totalorder %s338, %s354
      %p356 = scmp.eq.s32.totalorder %s63, 0
      %p357 = por %p355, %p356
      %s358 = ssub.s32 %s65, %s72
      %p359 = scmp.eq.s32.totalorder %s358, 0
      %s361 = sadd.s32 %s360, 1
      %s362 = scalar_select %p359, %s360, %s361
      %p365 = pneg %p359
      %p366 = scmp.eq.s32.totalorder %s57, 3
      %p367 = por %p365, %p366
      %p368 = scmp.ne.s32.totalorder %s360, %s363
      %p369 = scmp.eq.s32.totalorder %s57, 0
      %p370 = por %p368, %p369
      %p371 = scmp.ne.s32.totalorder %s360, %s363
      %p372 = scmp.eq.s32.totalorder %s62, 3
      %p373 = por %p371, %p372
      %p374 = scmp.ne.s32.totalorder %s363, %s364
      %p375 = scmp.eq.s32.totalorder %s62, 0
      %p376 = por %p374, %p375
      %p377 = scmp.ne.s32.totalorder %s363, %s364
      %p378 = scmp.eq.s32.totalorder %s63, 3
      %p379 = por %p377, %p378
      %p381 = scmp.ne.s32.totalorder %s364, %s380
      %p382 = scmp.eq.s32.totalorder %s63, 0
      %p383 = por %p381, %p382
      %s384 = ssub.s32 %s65, %s72
      %p385 = scmp.eq.s32.totalorder %s384, 0
      %s387 = sadd.s32 %s386, 1
      %s388 = scalar_select %p385, %s386, %s387
      %p391 = pneg %p385
      %p392 = scmp.eq.s32.totalorder %s57, 3
      %p393 = por %p391, %p392
      %p394 = scmp.ne.s32.totalorder %s386, %s389
      %p395 = scmp.eq.s32.totalorder %s57, 0
      %p396 = por %p394, %p395
      %p397 = scmp.ne.s32.totalorder %s386, %s389
      %p398 = scmp.eq.s32.totalorder %s62, 3
      %p399 = por %p397, %p398
      %p400 = scmp.ne.s32.totalorder %s389, %s390
      %p401 = scmp.eq.s32.totalorder %s62, 0
      %p402 = por %p400, %p401
      %p403 = scmp.ne.s32.totalorder %s389, %s390
      %p404 = scmp.eq.s32.totalorder %s63, 3
      %p405 = por %p403, %p404
      %p407 = scmp.ne.s32.totalorder %s390, %s406
      %p408 = scmp.eq.s32.totalorder %s63, 0
      %p409 = por %p407, %p408
      %s410 = ssub.s32 %s65, %s72
      %p411 = scmp.eq.s32.totalorder %s410, 0
      %s413 = sadd.s32 %s412, 1
      %s414 = scalar_select %p411, %s412, %s413
      %p417 = pneg %p411
      %p418 = scmp.eq.s32.totalorder %s57, 3
      %p419 = por %p417, %p418
      %p420 = scmp.ne.s32.totalorder %s412, %s415
      %p421 = scmp.eq.s32.totalorder %s57, 0
      %p422 = por %p420, %p421
      %p423 = scmp.ne.s32.totalorder %s412, %s415
      %p424 = scmp.eq.s32.totalorder %s62, 3
      %p425 = por %p423, %p424
      %p426 = scmp.ne.s32.totalorder %s415, %s416
      %p427 = scmp.eq.s32.totalorder %s62, 0
      %p428 = por %p426, %p427
      %p429 = scmp.ne.s32.totalorder %s415, %s416
      %p430 = scmp.eq.s32.totalorder %s63, 3
      %p431 = por %p429, %p430
      %p433 = scmp.ne.s32.totalorder %s416, %s432
      %p434 = scmp.eq.s32.totalorder %s63, 0
      %p435 = por %p433, %p434
      %s436 = ssub.s32 %s65, %s72
      %p437 = scmp.eq.s32.totalorder %s436, 0
      %s439 = sadd.s32 %s438, 1
      %s440 = scalar_select %p437, %s438, %s439
      %p443 = pneg %p437
      %p444 = scmp.eq.s32.totalorder %s57, 3
      %p445 = por %p443, %p444
      %p446 = scmp.ne.s32.totalorder %s438, %s441
      %p447 = scmp.eq.s32.totalorder %s57, 0
      %p448 = por %p446, %p447
      %p449 = scmp.ne.s32.totalorder %s438, %s441
      %p450 = scmp.eq.s32.totalorder %s62, 3
      %p451 = por %p449, %p450
      %p452 = scmp.ne.s32.totalorder %s441, %s442
      %p453 = scmp.eq.s32.totalorder %s62, 0
      %p454 = por %p452, %p453
      %p455 = scmp.ne.s32.totalorder %s441, %s442
      %p456 = scmp.eq.s32.totalorder %s63, 3
      %p457 = por %p455, %p456
      %p459 = scmp.ne.s32.totalorder %s442, %s458
      %p460 = scmp.eq.s32.totalorder %s63, 0
      %p461 = por %p459, %p460
      %s462 = ssub.s32 %s65, %s72
      %p463 = scmp.eq.s32.totalorder %s462, 0
      %s465 = sadd.s32 %s464, 1
      %s466 = scalar_select %p463, %s464, %s465
      %p469 = pneg %p463
      %p470 = scmp.eq.s32.totalorder %s57, 3
      %p471 = por %p469, %p470
      %p472 = scmp.ne.s32.totalorder %s464, %s467
      %p473 = scmp.eq.s32.totalorder %s57, 0
      %p474 = por %p472, %p473
      %p475 = scmp.ne.s32.totalorder %s464, %s467
      %p476 = scmp.eq.s32.totalorder %s62, 3
      %p477 = por %p475, %p476
      %p478 = scmp.ne.s32.totalorder %s467, %s468
      %p479 = scmp.eq.s32.totalorder %s62, 0
      %p480 = por %p478, %p479
      %p481 = scmp.ne.s32.totalorder %s467, %s468
      %p482 = scmp.eq.s32.totalorder %s63, 3
      %p483 = por %p481, %p482
      %p485 = scmp.ne.s32.totalorder %s468, %s484
      %p486 = scmp.eq.s32.totalorder %s63, 0
      %p487 = por %p485, %p486
      %s488 = ssub.s32 %s65, %s72
      %p489 = scmp.eq.s32.totalorder %s488, 0
      %s491 = sadd.s32 %s490, 1
      %s492 = scalar_select %p489, %s490, %s491
      %p495 = pneg %p489
      %p496 = scmp.eq.s32.totalorder %s57, 3
      %p497 = por %p495, %p496
      %p498 = scmp.ne.s32.totalorder %s490, %s493
      %p499 = scmp.eq.s32.totalorder %s57, 0
      %p500 = por %p498, %p499
      %p501 = scmp.ne.s32.totalorder %s490, %s493
      %p502 = scmp.eq.s32.totalorder %s62, 3
      %p503 = por %p501, %p502
      %p504 = scmp.ne.s32.totalorder %s493, %s494
      %p505 = scmp.eq.s32.totalorder %s62, 0
      %p506 = por %p504, %p505
      %p507 = scmp.ne.s32.totalorder %s493, %s494
      %p508 = scmp.eq.s32.totalorder %s63, 3
      %p509 = por %p507, %p508
      %p511 = scmp.ne.s32.totalorder %s494, %s510
      %p512 = scmp.eq.s32.totalorder %s63, 0
      %p513 = por %p511, %p512
      %s514 = ssub.s32 %s65, %s72
      %p515 = scmp.eq.s32.totalorder %s514, 0
      %s517 = sadd.s32 %s516, 1
      %s518 = scalar_select %p515, %s516, %s517
      %p521 = pneg %p515
      %p522 = scmp.eq.s32.totalorder %s57, 3
      %p523 = por %p521, %p522
      %p524 = scmp.ne.s32.totalorder %s516, %s519
      %p525 = scmp.eq.s32.totalorder %s57, 0
      %p526 = por %p524, %p525
      %p527 = scmp.ne.s32.totalorder %s516, %s519
      %p528 = scmp.eq.s32.totalorder %s62, 3
      %p529 = por %p527, %p528
      %p530 = scmp.ne.s32.totalorder %s519, %s520
      %p531 = scmp.eq.s32.totalorder %s62, 0
      %p532 = por %p530, %p531
      %p533 = scmp.ne.s32.totalorder %s519, %s520
      %p534 = scmp.eq.s32.totalorder %s63, 3
      %p535 = por %p533, %p534
      %p537 = scmp.ne.s32.totalorder %s520, %s536
      %p538 = scmp.eq.s32.totalorder %s63, 0
      %p539 = por %p537, %p538
      %s540 = ssub.s32 %s65, %s72
      %p541 = scmp.eq.s32.totalorder %s540, 0
      %s543 = sadd.s32 %s542, 1
      %s544 = scalar_select %p541, %s542, %s543
      %p547 = pneg %p541
      %p548 = scmp.eq.s32.totalorder %s57, 3
      %p549 = por %p547, %p548
      %p550 = scmp.ne.s32.totalorder %s542, %s545
      %p551 = scmp.eq.s32.totalorder %s57, 0
      %p552 = por %p550, %p551
      %p553 = scmp.ne.s32.totalorder %s542, %s545
      %p554 = scmp.eq.s32.totalorder %s62, 3
      %p555 = por %p553, %p554
      %p556 = scmp.ne.s32.totalorder %s545, %s546
      %p557 = scmp.eq.s32.totalorder %s62, 0
      %p558 = por %p556, %p557
      %p559 = scmp.ne.s32.totalorder %s545, %s546
      %p560 = scmp.eq.s32.totalorder %s63, 3
      %p561 = por %p559, %p560
      %p563 = scmp.ne.s32.totalorder %s546, %s562
      %p564 = scmp.eq.s32.totalorder %s63, 0
      %p565 = por %p563, %p564
      %s566 = ssub.s32 %s65, %s72
      %p567 = scmp.eq.s32.totalorder %s566, 0
      %s569 = sadd.s32 %s568, 1
      %s570 = scalar_select %p567, %s568, %s569
      %p573 = pneg %p567
      %p574 = scmp.eq.s32.totalorder %s57, 3
      %p575 = por %p573, %p574
      %p576 = scmp.ne.s32.totalorder %s568, %s571
      %p577 = scmp.eq.s32.totalorder %s57, 0
      %p578 = por %p576, %p577
      %p579 = scmp.ne.s32.totalorder %s568, %s571
      %p580 = scmp.eq.s32.totalorder %s62, 3
      %p581 = por %p579, %p580
      %p582 = scmp.ne.s32.totalorder %s571, %s572
      %p583 = scmp.eq.s32.totalorder %s62, 0
      %p584 = por %p582, %p583
      %p585 = scmp.ne.s32.totalorder %s571, %s572
      %p586 = scmp.eq.s32.totalorder %s63, 3
      %p587 = por %p585, %p586
      %p589 = scmp.ne.s32.totalorder %s572, %s588
      %p590 = scmp.eq.s32.totalorder %s63, 0
      %p591 = por %p589, %p590
      %s592 = ssub.s32 %s65, %s72
      %p593 = scmp.eq.s32.totalorder %s592, 0
      %s595 = sadd.s32 %s594, 1
      %s596 = scalar_select %p593, %s594, %s595
      %p599 = pneg %p593
      %p600 = scmp.eq.s32.totalorder %s57, 3
      %p601 = por %p599, %p600
      %p602 = scmp.ne.s32.totalorder %s594, %s597
      %p603 = scmp.eq.s32.totalorder %s57, 0
      %p604 = por %p602, %p603
      %p605 = scmp.ne.s32.totalorder %s594, %s597
      %p606 = scmp.eq.s32.totalorder %s62, 3
      %p607 = por %p605, %p606
      %p608 = scmp.ne.s32.totalorder %s597, %s598
      %p609 = scmp.eq.s32.totalorder %s62, 0
      %p610 = por %p608, %p609
      %p611 = scmp.ne.s32.totalorder %s597, %s598
      %p612 = scmp.eq.s32.totalorder %s63, 3
      %p613 = por %p611, %p612
      %p615 = scmp.ne.s32.totalorder %s598, %s614
      %p616 = scmp.eq.s32.totalorder %s63, 0
      %p617 = por %p615, %p616
      %s618 = ssub.s32 %s65, %s72
      %p619 = scmp.eq.s32.totalorder %s618, 0
      %s621 = sadd.s32 %s620, 1
      %s622 = scalar_select %p619, %s620, %s621
      %p625 = pneg %p619
      %p626 = scmp.eq.s32.totalorder %s57, 3
      %p627 = por %p625, %p626
      %p628 = scmp.ne.s32.totalorder %s620, %s623
      %p629 = scmp.eq.s32.totalorder %s57, 0
      %p630 = por %p628, %p629
      %p631 = scmp.ne.s32.totalorder %s620, %s623
      %p632 = scmp.eq.s32.totalorder %s62, 3
      %p633 = por %p631, %p632
      %p634 = scmp.ne.s32.totalorder %s623, %s624
      %p635 = scmp.eq.s32.totalorder %s62, 0
      %p636 = por %p634, %p635
      %p637 = scmp.ne.s32.totalorder %s623, %s624
      %p638 = scmp.eq.s32.totalorder %s63, 3
      %p639 = por %p637, %p638
      %p641 = scmp.ne.s32.totalorder %s624, %s640
      %p642 = scmp.eq.s32.totalorder %s63, 0
      %p643 = por %p641, %p642
      %s644 = ssub.s32 %s64, %s76
      %p645 = scmp.eq.s32.totalorder %s644, 0
      %s647 = sadd.s32 %s646, 1
      %s648 = scalar_select %p645, %s646, %s647
      %p651 = pneg %p645
      %p652 = scmp.eq.s32.totalorder %s57, 3
      %p653 = por %p651, %p652
      %p654 = scmp.ne.s32.totalorder %s646, %s649
      %p655 = scmp.eq.s32.totalorder %s57, 0
      %p656 = por %p654, %p655
      %p657 = scmp.ne.s32.totalorder %s646, %s649
      %p658 = scmp.eq.s32.totalorder %s62, 3
      %p659 = por %p657, %p658
      %p660 = scmp.ne.s32.totalorder %s649, %s650
      %p661 = scmp.eq.s32.totalorder %s62, 0
      %p662 = por %p660, %p661
      %p663 = scmp.ne.s32.totalorder %s649, %s650
      %p664 = scmp.eq.s32.totalorder %s63, 3
      %p665 = por %p663, %p664
      %p667 = scmp.ne.s32.totalorder %s650, %s666
      %p668 = scmp.eq.s32.totalorder %s63, 0
      %p669 = por %p667, %p668
      %s670 = ssub.s32 %s65, %s72
      %s671 = ssub.s32 %s64, %s76
      %s672 = sor.u32 %s670, %s671
      %p673 = scmp.eq.s32.totalorder %s672, 0
      %s675 = sadd.s32 %s674, 1
      %s676 = scalar_select %p673, %s674, %s675
      %p679 = pneg %p673
      %p680 = scmp.eq.s32.totalorder %s57, 3
      %p681 = por %p679, %p680
      %p682 = scmp.ne.s32.totalorder %s674, %s677
      %p683 = scmp.eq.s32.totalorder %s57, 0
      %p684 = por %p682, %p683
      %p685 = scmp.ne.s32.totalorder %s674, %s677
      %p686 = scmp.eq.s32.totalorder %s62, 3
      %p687 = por %p685, %p686
      %p688 = scmp.ne.s32.totalorder %s677, %s678
      %p689 = scmp.eq.s32.totalorder %s62, 0
      %p690 = por %p688, %p689
      %p691 = scmp.ne.s32.totalorder %s677, %s678
      %p692 = scmp.eq.s32.totalorder %s63, 3
      %p693 = por %p691, %p692
      %p695 = scmp.ne.s32.totalorder %s678, %s694
      %p696 = scmp.eq.s32.totalorder %s63, 0
      %p697 = por %p695, %p696
      %p698 = scmp.le.s32.totalorder 1, %s57
      %p699 = scmp.lt.s32.totalorder %s57, 5
      %p700 = pnand %p698, %p699
      %p701 = pneg %p700
      // Predicated region
      $region9: #{tpu_custom_call.1} parent=5 // pred_check
        _
      $region10: #{tpu_custom_call.1} parent=5 // pred_check_branch
        %703 = sbr.rel (%p700) target = $region12
      $region11: #{tpu_custom_call.1} parent=5 // pred_region
        %s704 = ssub.s32 %s57, 1
        // Predicated region
        $region13: #{tpu_custom_call.1} parent=11 // pred_check
          %p705 = pneg %p142
        $region14: #{tpu_custom_call.1} parent=11 // pred_check_branch
          %707 = sbr.rel (%p705) target = $region16
        $region15: #{tpu_custom_call.1} parent=11 // pred_region
          %s709 = ssub.s32 128, 128
          %710 = vsyncadd [#allocation7], %s709
          %s712 = sshll.u32 [#allocation8], 4
          %s713 = int_to_ptr.vmem [resolvable:$true] %s712
          %715 = dma.hbm_to_vmem [thread:$0]  %s2, 128, %s713, [#allocation7]
        $region16: #{tpu_custom_call.1} parent=11 // pred_fallthru
          _
      $region12: #{tpu_custom_call.1} parent=5 // pred_fallthru
        _
      %p716 = scmp.lt.s32.totalorder %s57, 4
      // Predicated region
      $region17: #{tpu_custom_call.1} parent=5 // pred_check
        %p717 = pneg %p716
      $region18: #{tpu_custom_call.1} parent=5 // pred_check_branch
        %719 = sbr.rel (%p717) target = $region20
      $region19: #{tpu_custom_call.1} parent=5 // pred_region
        // Predicated region
        $region21: #{tpu_custom_call.1} parent=19 // pred_check
          %p720 = pneg %p89
        $region22: #{tpu_custom_call.1} parent=19 // pred_check_branch
          %722 = sbr.rel (%p720) target = $region24
        $region23: #{tpu_custom_call.1} parent=19 // pred_region
          %s723 = sand.u32 %s79, 1
          %s724 = scalar_lea.sflag [#allocation4], %s723
          %s725 = sand.u32 %s79, 1
          %s726 = smul.addr %s725, 8
          %s727 = scalar_lea.vmem [#allocation3], %s726
          %s729 = ssub.s32 128, 128
          %730 = vsyncadd %s724, %s729
          %s731 = smul.addr %s64, 128
          %s732 = scalar_lea.hbm %s0, %s731
          %s734 = sshll.u32 %s727, 4
          %s735 = int_to_ptr.vmem [resolvable:$true] %s734
          %737 = dma.hbm_to_vmem [thread:$0]  %s732, 128, %s735, %s724
        $region24: #{tpu_custom_call.1} parent=19 // pred_fallthru
          _
        // Predicated region
        $region25: #{tpu_custom_call.1} parent=19 // pred_check
          %p738 = pneg %p115
        $region26: #{tpu_custom_call.1} parent=19 // pred_check_branch
          %740 = sbr.rel (%p738) target = $region28
        $region27: #{tpu_custom_call.1} parent=19 // pred_region
          %s741 = sand.u32 %s57, 1
          %s742 = scalar_lea.sflag [#allocation7], %s741
          %s743 = sand.u32 %s105, 1
          %s744 = smul.addr %s743, 8
          %s745 = scalar_lea.vmem [#allocation6], %s744
          %s747 = ssub.s32 128, 128
          %748 = vsyncadd %s742, %s747
          %s749 = smul.addr %s64, 128
          %s750 = scalar_lea.hbm %s1, %s749
          %s752 = sshll.u32 %s745, 4
          %s753 = int_to_ptr.vmem [resolvable:$true] %s752
          %755 = dma.hbm_to_vmem [thread:$0]  %s750, 128, %s753, %s742
        $region28: #{tpu_custom_call.1} parent=19 // pred_fallthru
          _
        // Predicated region
        $region29: #{tpu_custom_call.1} parent=19 // pred_check
          %p756 = pneg %p162
        $region30: #{tpu_custom_call.1} parent=19 // pred_check_branch
          %758 = sbr.rel (%p756) target = $region32
        $region31: #{tpu_custom_call.1} parent=19 // pred_region
          %p759 = scmp.lt.s32.totalorder %s64, 1
          %s760 = scalar_select %p759, %s64, 1
          %s761 = scalar_lea.vmem %s3, %s760
        $region32: #{tpu_custom_call.1} parent=19 // pred_fallthru
          _
        // Predicated region
        $region33: #{tpu_custom_call.1} parent=19 // pred_check
          %p762 = pneg %p188
        $region34: #{tpu_custom_call.1} parent=19 // pred_check_branch
          %764 = sbr.rel (%p762) target = $region36
        $region35: #{tpu_custom_call.1} parent=19 // pred_region
          %p765 = scmp.lt.s32.totalorder %s65, 1
          %s766 = scalar_select %p765, %s65, 1
          %s767 = smul.addr %s766, 4
          %s768 = smul.addr %s767, 8
          %s769 = scalar_lea.vmem %s4, %s768
        $region36: #{tpu_custom_call.1} parent=19 // pred_fallthru
          _
        // Predicated region
        $region37: #{tpu_custom_call.1} parent=19 // pred_check
          %p770 = pneg %p214
        $region38: #{tpu_custom_call.1} parent=19 // pred_check_branch
          %772 = sbr.rel (%p770) target = $region40
        $region39: #{tpu_custom_call.1} parent=19 // pred_region
          %p773 = scmp.lt.s32.totalorder %s65, 1
          %s774 = scalar_select %p773, %s65, 1
          %s775 = smul.addr %s774, 4
          %s776 = smul.addr %s775, 8
          %s777 = scalar_lea.vmem %s5, %s776
        $region40: #{tpu_custom_call.1} parent=19 // pred_fallthru
          _
        // Predicated region
        $region41: #{tpu_custom_call.1} parent=19 // pred_check
          %p778 = pneg %p240
        $region42: #{tpu_custom_call.1} parent=19 // pred_check_branch
          %780 = sbr.rel (%p778) target = $region44
        $region43: #{tpu_custom_call.1} parent=19 // pred_region
          %p781 = scmp.lt.s32.totalorder %s65, 1
          %s782 = scalar_select %p781, %s65, 1
          %s783 = smul.addr %s782, 4
          %s784 = smul.addr %s783, 8
          %s785 = scalar_lea.vmem %s6, %s784
        $region44: #{tpu_custom_call.1} parent=19 // pred_fallthru
          _
        // Predicated region
        $region45: #{tpu_custom_call.1} parent=19 // pred_check
          %p786 = pneg %p266
        $region46: #{tpu_custom_call.1} parent=19 // pred_check_branch
          %788 = sbr.rel (%p786) target = $region48
        $region47: #{tpu_custom_call.1} parent=19 // pred_region
          %s789 = sand.u32 %s57, 1
          %s790 = scalar_lea.sflag [#allocation10], %s789
          %s791 = sand.u32 %s256, 1
          %s792 = smul.addr %s791, 32
          %s793 = scalar_lea.vmem [#allocation9], %s792
          %s795 = ssub.s32 512, 512
          %796 = vsyncadd %s790, %s795
          %s797 = smul.addr %s65, 4
          %s798 = smul.addr %s797, 128
          %s799 = scalar_lea.hbm %s7, %s798
          %s800 = sshll.u32 %s793, 4
          %s801 = int_to_ptr.vmem [resolvable:$true] %s800
          %806 = dma.hbm_to_vmem [thread:$0]  %s799, 512, %s801, %s790, 128, 128, 8
        $region48: #{tpu_custom_call.1} parent=19 // pred_fallthru
          _
        // Predicated region
        $region49: #{tpu_custom_call.1} parent=19 // pred_check
          %p807 = pneg %p292
        $region50: #{tpu_custom_call.1} parent=19 // pred_check_branch
          %809 = sbr.rel (%p807) target = $region52
        $region51: #{tpu_custom_call.1} parent=19 // pred_region
          %p810 = scmp.lt.s32.totalorder %s65, 1
          %s811 = scalar_select %p810, %s65, 1
          %s812 = scalar_lea.vmem %s8, %s811
        $region52: #{tpu_custom_call.1} parent=19 // pred_fallthru
          _
        // Predicated region
        $region53: #{tpu_custom_call.1} parent=19 // pred_check
          %p813 = pneg %p318
        $region54: #{tpu_custom_call.1} parent=19 // pred_check_branch
          %815 = sbr.rel (%p813) target = $region56
        $region55: #{tpu_custom_call.1} parent=19 // pred_region
          %s816 = sand.u32 %s57, 1
          %s817 = scalar_lea.sflag [#allocation10], %s816
          %s818 = sand.u32 %s308, 1
          %s819 = scalar_lea.vmem [#allocation11], %s818
          %s821 = ssub.s32 16, 16
          %822 = vsyncadd %s817, %s821
          %s823 = smul.addr %s65, 16
          %s824 = scalar_lea.hbm %s9, %s823
          %s826 = sshll.u32 %s819, 4
          %s827 = int_to_ptr.vmem [resolvable:$true] %s826
          %829 = dma.hbm_to_vmem [thread:$0]  %s824, 16, %s827, %s817
        $region56: #{tpu_custom_call.1} parent=19 // pred_fallthru
          _
        // Predicated region
        $region57: #{tpu_custom_call.1} parent=19 // pred_check
          %p830 = pneg %p344
        $region58: #{tpu_custom_call.1} parent=19 // pred_check_branch
          %832 = sbr.rel (%p830) target = $region60
        $region59: #{tpu_custom_call.1} parent=19 // pred_region
          %s833 = sand.u32 %s57, 1
          %s834 = scalar_lea.sflag [#allocation13], %s833
          %s835 = sand.u32 %s334, 1
          %s836 = smul.addr %s835, 32
          %s837 = scalar_lea.vmem [#allocation12], %s836
          %s839 = ssub.s32 512, 512
          %840 = vsyncadd %s834, %s839
          %s841 = smul.addr %s65, 4
          %s842 = smul.addr %s841, 128
          %s843 = scalar_lea.hbm %s10, %s842
          %s844 = sshll.u32 %s837, 4
          %s845 = int_to_ptr.vmem [resolvable:$true] %s844
          %850 = dma.hbm_to_vmem [thread:$0]  %s843, 512, %s845, %s834, 128, 128, 8
        $region60: #{tpu_custom_call.1} parent=19 // pred_fallthru
          _
        // Predicated region
        $region61: #{tpu_custom_call.1} parent=19 // pred_check
          %p851 = pneg %p370
        $region62: #{tpu_custom_call.1} parent=19 // pred_check_branch
          %853 = sbr.rel (%p851) target = $region64
        $region63: #{tpu_custom_call.1} parent=19 // pred_region
          %s854 = sand.u32 %s57, 1
          %s855 = scalar_lea.sflag [#allocation13], %s854
          %s856 = sand.u32 %s360, 1
          %s857 = smul.addr %s856, 32
          %s858 = scalar_lea.vmem [#allocation14], %s857
          %s860 = ssub.s32 512, 512
          %861 = vsyncadd %s855, %s860
          %s862 = smul.addr %s65, 4
          %s863 = smul.addr %s862, 128
          %s864 = scalar_lea.hbm %s11, %s863
          %s865 = sshll.u32 %s858, 4
          %s866 = int_to_ptr.vmem [resolvable:$true] %s865
          %871 = dma.hbm_to_vmem [thread:$0]  %s864, 512, %s866, %s855, 128, 128, 8
        $region64: #{tpu_custom_call.1} parent=19 // pred_fallthru
          _
        // Predicated region
        $region65: #{tpu_custom_call.1} parent=19 // pred_check
          %p872 = pneg %p396
        $region66: #{tpu_custom_call.1} parent=19 // pred_check_branch
          %874 = sbr.rel (%p872) target = $region68
        $region67: #{tpu_custom_call.1} parent=19 // pred_region
          %s875 = sand.u32 %s57, 1
          %s876 = scalar_lea.sflag [#allocation16], %s875
          %s877 = sand.u32 %s386, 1
          %s878 = smul.addr %s877, 32
          %s879 = scalar_lea.vmem [#allocation15], %s878
          %s881 = ssub.s32 512, 512
          %882 = vsyncadd %s876, %s881
          %s883 = smul.addr %s65, 4
          %s884 = smul.addr %s883, 128
          %s885 = scalar_lea.hbm %s12, %s884
          %s886 = sshll.u32 %s879, 4
          %s887 = int_to_ptr.vmem [resolvable:$true] %s886
          %892 = dma.hbm_to_vmem [thread:$0]  %s885, 512, %s887, %s876, 128, 128, 8
        $region68: #{tpu_custom_call.1} parent=19 // pred_fallthru
          _
        // Predicated region
        $region69: #{tpu_custom_call.1} parent=19 // pred_check
          %p893 = pneg %p422
        $region70: #{tpu_custom_call.1} parent=19 // pred_check_branch
          %895 = sbr.rel (%p893) target = $region72
        $region71: #{tpu_custom_call.1} parent=19 // pred_region
          %s896 = sand.u32 %s57, 1
          %s897 = scalar_lea.sflag [#allocation16], %s896
          %s898 = sand.u32 %s412, 1
          %s899 = smul.addr %s898, 32
          %s900 = scalar_lea.vmem [#allocation17], %s899
          %s902 = ssub.s32 512, 512
          %903 = vsyncadd %s897, %s902
          %s904 = smul.addr %s65, 4
          %s905 = smul.addr %s904, 128
          %s906 = scalar_lea.hbm %s13, %s905
          %s907 = sshll.u32 %s900, 4
          %s908 = int_to_ptr.vmem [resolvable:$true] %s907
          %913 = dma.hbm_to_vmem [thread:$0]  %s906, 512, %s908, %s897, 128, 128, 8
        $region72: #{tpu_custom_call.1} parent=19 // pred_fallthru
          _
        // Predicated region
        $region73: #{tpu_custom_call.1} parent=19 // pred_check
          %p914 = pneg %p448
        $region74: #{tpu_custom_call.1} parent=19 // pred_check_branch
          %916 = sbr.rel (%p914) target = $region76
        $region75: #{tpu_custom_call.1} parent=19 // pred_region
          %s917 = sand.u32 %s57, 1
          %s918 = scalar_lea.sflag [#allocation19], %s917
          %s919 = sand.u32 %s438, 1
          %s920 = scalar_lea.vmem [#allocation18], %s919
          %s922 = ssub.s32 16, 16
          %923 = vsyncadd %s918, %s922
          %s924 = smul.addr %s65, 16
          %s925 = scalar_lea.hbm %s14, %s924
          %s927 = sshll.u32 %s920, 4
          %s928 = int_to_ptr.vmem [resolvable:$true] %s927
          %930 = dma.hbm_to_vmem [thread:$0]  %s925, 16, %s928, %s918
        $region76: #{tpu_custom_call.1} parent=19 // pred_fallthru
          _
        // Predicated region
        $region77: #{tpu_custom_call.1} parent=19 // pred_check
          %p931 = pneg %p474
        $region78: #{tpu_custom_call.1} parent=19 // pred_check_branch
          %933 = sbr.rel (%p931) target = $region80
        $region79: #{tpu_custom_call.1} parent=19 // pred_region
          %s934 = sand.u32 %s57, 1
          %s935 = scalar_lea.sflag [#allocation19], %s934
          %s936 = sand.u32 %s464, 1
          %s937 = scalar_lea.vmem [#allocation20], %s936
          %s939 = ssub.s32 16, 16
          %940 = vsyncadd %s935, %s939
          %s941 = smul.addr %s65, 16
          %s942 = scalar_lea.hbm %s15, %s941
          %s944 = sshll.u32 %s937, 4
          %s945 = int_to_ptr.vmem [resolvable:$true] %s944
          %947 = dma.hbm_to_vmem [thread:$0]  %s942, 16, %s945, %s935
        $region80: #{tpu_custom_call.1} parent=19 // pred_fallthru
          _
        // Predicated region
        $region81: #{tpu_custom_call.1} parent=19 // pred_check
          %p948 = pneg %p500
        $region82: #{tpu_custom_call.1} parent=19 // pred_check_branch
          %950 = sbr.rel (%p948) target = $region84
        $region83: #{tpu_custom_call.1} parent=19 // pred_region
          %s951 = sand.u32 %s57, 1
          %s952 = scalar_lea.sflag [#allocation22], %s951
          %s953 = sand.u32 %s490, 1
          %s954 = smul.addr %s953, 32
          %s955 = scalar_lea.vmem [#allocation21], %s954
          %s957 = ssub.s32 512, 512
          %958 = vsyncadd %s952, %s957
          %s959 = smul.addr %s65, 4
          %s960 = smul.addr %s959, 128
          %s961 = scalar_lea.hbm %s16, %s960
          %s962 = sshll.u32 %s955, 4
          %s963 = int_to_ptr.vmem [resolvable:$true] %s962
          %968 = dma.hbm_to_vmem [thread:$0]  %s961, 512, %s963, %s952, 128, 128, 8
        $region84: #{tpu_custom_call.1} parent=19 // pred_fallthru
          _
        // Predicated region
        $region85: #{tpu_custom_call.1} parent=19 // pred_check
          %p969 = pneg %p526
        $region86: #{tpu_custom_call.1} parent=19 // pred_check_branch
          %971 = sbr.rel (%p969) target = $region88
        $region87: #{tpu_custom_call.1} parent=19 // pred_region
          %s972 = sand.u32 %s57, 1
          %s973 = scalar_lea.sflag [#allocation22], %s972
          %s974 = sand.u32 %s516, 1
          %s975 = scalar_lea.vmem [#allocation23], %s974
          %s977 = ssub.s32 16, 16
          %978 = vsyncadd %s973, %s977
          %s979 = smul.addr %s65, 16
          %s980 = scalar_lea.hbm %s17, %s979
          %s982 = sshll.u32 %s975, 4
          %s983 = int_to_ptr.vmem [resolvable:$true] %s982
          %985 = dma.hbm_to_vmem [thread:$0]  %s980, 16, %s983, %s973
        $region88: #{tpu_custom_call.1} parent=19 // pred_fallthru
          _
        // Predicated region
        $region89: #{tpu_custom_call.1} parent=19 // pred_check
          %p986 = pneg %p552
        $region90: #{tpu_custom_call.1} parent=19 // pred_check_branch
          %988 = sbr.rel (%p986) target = $region92
        $region91: #{tpu_custom_call.1} parent=19 // pred_region
          %p989 = scmp.lt.s32.totalorder %s65, 1
          %s990 = scalar_select %p989, %s65, 1
          %s991 = smul.addr %s990, 8
          %s992 = smul.addr %s991, 8
          %s993 = scalar_lea.vmem %s18, %s992
        $region92: #{tpu_custom_call.1} parent=19 // pred_fallthru
          _
        // Predicated region
        $region93: #{tpu_custom_call.1} parent=19 // pred_check
          %p994 = pneg %p578
        $region94: #{tpu_custom_call.1} parent=19 // pred_check_branch
          %996 = sbr.rel (%p994) target = $region96
        $region95: #{tpu_custom_call.1} parent=19 // pred_region
          %p997 = scmp.lt.s32.totalorder %s65, 1
          %s998 = scalar_select %p997, %s65, 1
          %s999 = scalar_lea.vmem %s19, %s998
        $region96: #{tpu_custom_call.1} parent=19 // pred_fallthru
          _
        // Predicated region
        $region97: #{tpu_custom_call.1} parent=19 // pred_check
          %p1000 = pneg %p604
        $region98: #{tpu_custom_call.1} parent=19 // pred_check_branch
          %1002 = sbr.rel (%p1000) target = $region100
        $region99: #{tpu_custom_call.1} parent=19 // pred_region
          %p1003 = scmp.lt.s32.totalorder %s65, 1
          %s1004 = scalar_select %p1003, %s65, 1
          %s1005 = scalar_lea.vmem %s20, %s1004
        $region100: #{tpu_custom_call.1} parent=19 // pred_fallthru
          _
        // Predicated region
        $region101: #{tpu_custom_call.1} parent=19 // pred_check
          %p1006 = pneg %p630
        $region102: #{tpu_custom_call.1} parent=19 // pred_check_branch
          %1008 = sbr.rel (%p1006) target = $region104
        $region103: #{tpu_custom_call.1} parent=19 // pred_region
          %p1009 = scmp.lt.s32.totalorder %s65, 1
          %s1010 = scalar_select %p1009, %s65, 1
          %s1011 = scalar_lea.vmem %s21, %s1010
        $region104: #{tpu_custom_call.1} parent=19 // pred_fallthru
          _
      $region20: #{tpu_custom_call.1} parent=5 // pred_fallthru
        _
      %p1012 = scmp.le.s32.totalorder 1, %s57
      %p1013 = scmp.lt.s32.totalorder %s57, 5
      %p1014 = pnand %p1012, %p1013
      %p1015 = pneg %p1014
      // Predicated region
      $region105: #{tpu_custom_call.1} parent=5 // pred_check
        _
      $region106: #{tpu_custom_call.1} parent=5 // pred_check_branch
        %1017 = sbr.rel (%p1014) target = $region108
      $region107: #{tpu_custom_call.1} parent=5 // pred_region
        %s1018 = ssub.s32 %s57, 1
        %s1019 = sand.u32 %s82, 1
        %s1020 = scalar_lea.sflag [#allocation4], %s1019
        %s1021 = sand.u32 %s82, 1
        %s1022 = smul.addr %s1021, 8
        %s1023 = scalar_lea.vmem [#allocation3], %s1022
        // Predicated region
        $region109: #{tpu_custom_call.1} parent=107 // pred_check
          %p1024 = pneg %p95
        $region110: #{tpu_custom_call.1} parent=107 // pred_check_branch
          %1026 = sbr.rel (%p1024) target = $region112
        $region111: #{tpu_custom_call.1} parent=107 // pred_region
          %1027 = dma.done %s1020, 128
        $region112: #{tpu_custom_call.1} parent=107 // pred_fallthru
          _
        %s1028 = sand.u32 %s62, 1
        %s1029 = scalar_lea.sflag [#allocation7], %s1028
        %s1030 = sand.u32 %s108, 1
        %s1031 = smul.addr %s1030, 8
        %s1032 = scalar_lea.vmem [#allocation6], %s1031
        // Predicated region
        $region113: #{tpu_custom_call.1} parent=107 // pred_check
          %p1033 = pneg %p121
        $region114: #{tpu_custom_call.1} parent=107 // pred_check_branch
          %1035 = sbr.rel (%p1033) target = $region116
        $region115: #{tpu_custom_call.1} parent=107 // pred_region
          %1036 = dma.done %s1029, 128
        $region116: #{tpu_custom_call.1} parent=107 // pred_fallthru
          _
        // Predicated region
        $region117: #{tpu_custom_call.1} parent=107 // pred_check
          %p1037 = pneg %p142
        $region118: #{tpu_custom_call.1} parent=107 // pred_check_branch
          %1039 = sbr.rel (%p1037) target = $region120
        $region119: #{tpu_custom_call.1} parent=107 // pred_region
          %1040 = dma.done [#allocation7], 128
        $region120: #{tpu_custom_call.1} parent=107 // pred_fallthru
          _
        %s1041 = sand.u32 %s62, 1
        %s1042 = scalar_lea.sflag [#allocation10], %s1041
        %s1043 = sand.u32 %s259, 1
        %s1044 = smul.addr %s1043, 32
        %s1045 = scalar_lea.vmem [#allocation9], %s1044
        // Predicated region
        $region121: #{tpu_custom_call.1} parent=107 // pred_check
          %p1046 = pneg %p272
        $region122: #{tpu_custom_call.1} parent=107 // pred_check_branch
          %1048 = sbr.rel (%p1046) target = $region124
        $region123: #{tpu_custom_call.1} parent=107 // pred_region
          %1049 = dma.done %s1042, 512
        $region124: #{tpu_custom_call.1} parent=107 // pred_fallthru
          _
        %s1050 = sand.u32 %s62, 1
        %s1051 = scalar_lea.sflag [#allocation10], %s1050
        %s1052 = sand.u32 %s311, 1
        %s1053 = scalar_lea.vmem [#allocation11], %s1052
        // Predicated region
        $region125: #{tpu_custom_call.1} parent=107 // pred_check
          %p1054 = pneg %p324
        $region126: #{tpu_custom_call.1} parent=107 // pred_check_branch
          %1056 = sbr.rel (%p1054) target = $region128
        $region127: #{tpu_custom_call.1} parent=107 // pred_region
          %1057 = dma.done %s1051, 16
        $region128: #{tpu_custom_call.1} parent=107 // pred_fallthru
          _
        %s1058 = sand.u32 %s62, 1
        %s1059 = scalar_lea.sflag [#allocation13], %s1058
        %s1060 = sand.u32 %s337, 1
        %s1061 = smul.addr %s1060, 32
        %s1062 = scalar_lea.vmem [#allocation12], %s1061
        // Predicated region
        $region129: #{tpu_custom_call.1} parent=107 // pred_check
          %p1063 = pneg %p350
        $region130: #{tpu_custom_call.1} parent=107 // pred_check_branch
          %1065 = sbr.rel (%p1063) target = $region132
        $region131: #{tpu_custom_call.1} parent=107 // pred_region
          %1066 = dma.done %s1059, 512
        $region132: #{tpu_custom_call.1} parent=107 // pred_fallthru
          _
        %s1067 = sand.u32 %s62, 1
        %s1068 = scalar_lea.sflag [#allocation13], %s1067
        %s1069 = sand.u32 %s363, 1
        %s1070 = smul.addr %s1069, 32
        %s1071 = scalar_lea.vmem [#allocation14], %s1070
        // Predicated region
        $region133: #{tpu_custom_call.1} parent=107 // pred_check
          %p1072 = pneg %p376
        $region134: #{tpu_custom_call.1} parent=107 // pred_check_branch
          %1074 = sbr.rel (%p1072) target = $region136
        $region135: #{tpu_custom_call.1} parent=107 // pred_region
          %1075 = dma.done %s1068, 512
        $region136: #{tpu_custom_call.1} parent=107 // pred_fallthru
          _
        %s1076 = sand.u32 %s62, 1
        %s1077 = scalar_lea.sflag [#allocation16], %s1076
        %s1078 = sand.u32 %s389, 1
        %s1079 = smul.addr %s1078, 32
        %s1080 = scalar_lea.vmem [#allocation15], %s1079
        // Predicated region
        $region137: #{tpu_custom_call.1} parent=107 // pred_check
          %p1081 = pneg %p402
        $region138: #{tpu_custom_call.1} parent=107 // pred_check_branch
          %1083 = sbr.rel (%p1081) target = $region140
        $region139: #{tpu_custom_call.1} parent=107 // pred_region
          %1084 = dma.done %s1077, 512
        $region140: #{tpu_custom_call.1} parent=107 // pred_fallthru
          _
        %s1085 = sand.u32 %s62, 1
        %s1086 = scalar_lea.sflag [#allocation16], %s1085
        %s1087 = sand.u32 %s415, 1
        %s1088 = smul.addr %s1087, 32
        %s1089 = scalar_lea.vmem [#allocation17], %s1088
        // Predicated region
        $region141: #{tpu_custom_call.1} parent=107 // pred_check
          %p1090 = pneg %p428
        $region142: #{tpu_custom_call.1} parent=107 // pred_check_branch
          %1092 = sbr.rel (%p1090) target = $region144
        $region143: #{tpu_custom_call.1} parent=107 // pred_region
          %1093 = dma.done %s1086, 512
        $region144: #{tpu_custom_call.1} parent=107 // pred_fallthru
          _
        %s1094 = sand.u32 %s62, 1
        %s1095 = scalar_lea.sflag [#allocation19], %s1094
        %s1096 = sand.u32 %s441, 1
        %s1097 = scalar_lea.vmem [#allocation18], %s1096
        // Predicated region
        $region145: #{tpu_custom_call.1} parent=107 // pred_check
          %p1098 = pneg %p454
        $region146: #{tpu_custom_call.1} parent=107 // pred_check_branch
          %1100 = sbr.rel (%p1098) target = $region148
        $region147: #{tpu_custom_call.1} parent=107 // pred_region
          %1101 = dma.done %s1095, 16
        $region148: #{tpu_custom_call.1} parent=107 // pred_fallthru
          _
        %s1102 = sand.u32 %s62, 1
        %s1103 = scalar_lea.sflag [#allocation19], %s1102
        %s1104 = sand.u32 %s467, 1
        %s1105 = scalar_lea.vmem [#allocation20], %s1104
        // Predicated region
        $region149: #{tpu_custom_call.1} parent=107 // pred_check
          %p1106 = pneg %p480
        $region150: #{tpu_custom_call.1} parent=107 // pred_check_branch
          %1108 = sbr.rel (%p1106) target = $region152
        $region151: #{tpu_custom_call.1} parent=107 // pred_region
          %1109 = dma.done %s1103, 16
        $region152: #{tpu_custom_call.1} parent=107 // pred_fallthru
          _
        %s1110 = sand.u32 %s62, 1
        %s1111 = scalar_lea.sflag [#allocation22], %s1110
        %s1112 = sand.u32 %s493, 1
        %s1113 = smul.addr %s1112, 32
        %s1114 = scalar_lea.vmem [#allocation21], %s1113
        // Predicated region
        $region153: #{tpu_custom_call.1} parent=107 // pred_check
          %p1115 = pneg %p506
        $region154: #{tpu_custom_call.1} parent=107 // pred_check_branch
          %1117 = sbr.rel (%p1115) target = $region156
        $region155: #{tpu_custom_call.1} parent=107 // pred_region
          %1118 = dma.done %s1111, 512
        $region156: #{tpu_custom_call.1} parent=107 // pred_fallthru
          _
        %s1119 = sand.u32 %s62, 1
        %s1120 = scalar_lea.sflag [#allocation22], %s1119
        %s1121 = sand.u32 %s519, 1
        %s1122 = scalar_lea.vmem [#allocation23], %s1121
        // Predicated region
        $region157: #{tpu_custom_call.1} parent=107 // pred_check
          %p1123 = pneg %p532
        $region158: #{tpu_custom_call.1} parent=107 // pred_check_branch
          %1125 = sbr.rel (%p1123) target = $region160
        $region159: #{tpu_custom_call.1} parent=107 // pred_region
          %1126 = dma.done %s1120, 16
        $region160: #{tpu_custom_call.1} parent=107 // pred_fallthru
          _
        %s1127 = sand.u32 %s82, 1
        %s1128 = scalar_lea.sflag [#allocation4], %s1127
        %s1129 = sand.u32 %s82, 1
        %s1130 = smul.addr %s1129, 8
        %s1131 = scalar_lea.vmem [#allocation3], %s1130
        %p1132 = pneg %p95
        %p1133 = pneg %p92
        %s1134 = sand.u32 %s62, 1
        %s1135 = scalar_lea.sflag [#allocation7], %s1134
        %s1136 = sand.u32 %s108, 1
        %s1137 = smul.addr %s1136, 8
        %s1138 = scalar_lea.vmem [#allocation6], %s1137
        %p1139 = pneg %p121
        %p1140 = pneg %p118
        %p1141 = pneg %p142
        %p1142 = pneg %p139
        %p1143 = scmp.lt.s32.totalorder %s66, 1
        %s1144 = scalar_select %p1143, %s66, 1
        %s1145 = scalar_lea.vmem %s3, %s1144
        %p1146 = pneg %p168
        %p1147 = pneg %p165
        %p1148 = scmp.lt.s32.totalorder %s67, 1
        %s1149 = scalar_select %p1148, %s67, 1
        %s1150 = smul.addr %s1149, 4
        %s1151 = smul.addr %s1150, 8
        %s1152 = scalar_lea.vmem %s4, %s1151
        %p1153 = pneg %p194
        %p1154 = pneg %p191
        %p1155 = scmp.lt.s32.totalorder %s67, 1
        %s1156 = scalar_select %p1155, %s67, 1
        %s1157 = smul.addr %s1156, 4
        %s1158 = smul.addr %s1157, 8
        %s1159 = scalar_lea.vmem %s5, %s1158
        %p1160 = pneg %p220
        %p1161 = pneg %p217
        %p1162 = scmp.lt.s32.totalorder %s67, 1
        %s1163 = scalar_select %p1162, %s67, 1
        %s1164 = smul.addr %s1163, 4
        %s1165 = smul.addr %s1164, 8
        %s1166 = scalar_lea.vmem %s6, %s1165
        %p1167 = pneg %p246
        %p1168 = pneg %p243
        %s1169 = sand.u32 %s62, 1
        %s1170 = scalar_lea.sflag [#allocation10], %s1169
        %s1171 = sand.u32 %s259, 1
        %s1172 = smul.addr %s1171, 32
        %s1173 = scalar_lea.vmem [#allocation9], %s1172
        %p1174 = pneg %p272
        %p1175 = pneg %p269
        %p1176 = scmp.lt.s32.totalorder %s67, 1
        %s1177 = scalar_select %p1176, %s67, 1
        %s1178 = scalar_lea.vmem %s8, %s1177
        %p1179 = pneg %p298
        %p1180 = pneg %p295
        %s1181 = sand.u32 %s62, 1
        %s1182 = scalar_lea.sflag [#allocation10], %s1181
        %s1183 = sand.u32 %s311, 1
        %s1184 = scalar_lea.vmem [#allocation11], %s1183
        %p1185 = pneg %p324
        %p1186 = pneg %p321
        %s1187 = sand.u32 %s62, 1
        %s1188 = scalar_lea.sflag [#allocation13], %s1187
        %s1189 = sand.u32 %s337, 1
        %s1190 = smul.addr %s1189, 32
        %s1191 = scalar_lea.vmem [#allocation12], %s1190
        %p1192 = pneg %p350
        %p1193 = pneg %p347
        %s1194 = sand.u32 %s62, 1
        %s1195 = scalar_lea.sflag [#allocation13], %s1194
        %s1196 = sand.u32 %s363, 1
        %s1197 = smul.addr %s1196, 32
        %s1198 = scalar_lea.vmem [#allocation14], %s1197
        %p1199 = pneg %p376
        %p1200 = pneg %p373
        %s1201 = sand.u32 %s62, 1
        %s1202 = scalar_lea.sflag [#allocation16], %s1201
        %s1203 = sand.u32 %s389, 1
        %s1204 = smul.addr %s1203, 32
        %s1205 = scalar_lea.vmem [#allocation15], %s1204
        %p1206 = pneg %p402
        %p1207 = pneg %p399
        %s1208 = sand.u32 %s62, 1
        %s1209 = scalar_lea.sflag [#allocation16], %s1208
        %s1210 = sand.u32 %s415, 1
        %s1211 = smul.addr %s1210, 32
        %s1212 = scalar_lea.vmem [#allocation17], %s1211
        %p1213 = pneg %p428
        %p1214 = pneg %p425
        %s1215 = sand.u32 %s62, 1
        %s1216 = scalar_lea.sflag [#allocation19], %s1215
        %s1217 = sand.u32 %s441, 1
        %s1218 = scalar_lea.vmem [#allocation18], %s1217
        %p1219 = pneg %p454
        %p1220 = pneg %p451
        %s1221 = sand.u32 %s62, 1
        %s1222 = scalar_lea.sflag [#allocation19], %s1221
        %s1223 = sand.u32 %s467, 1
        %s1224 = scalar_lea.vmem [#allocation20], %s1223
        %p1225 = pneg %p480
        %p1226 = pneg %p477
        %s1227 = sand.u32 %s62, 1
        %s1228 = scalar_lea.sflag [#allocation22], %s1227
        %s1229 = sand.u32 %s493, 1
        %s1230 = smul.addr %s1229, 32
        %s1231 = scalar_lea.vmem [#allocation21], %s1230
        %p1232 = pneg %p506
        %p1233 = pneg %p503
        %s1234 = sand.u32 %s62, 1
        %s1235 = scalar_lea.sflag [#allocation22], %s1234
        %s1236 = sand.u32 %s519, 1
        %s1237 = scalar_lea.vmem [#allocation23], %s1236
        %p1238 = pneg %p532
        %p1239 = pneg %p529
        %p1240 = scmp.lt.s32.totalorder %s67, 1
        %s1241 = scalar_select %p1240, %s67, 1
        %s1242 = smul.addr %s1241, 8
        %s1243 = smul.addr %s1242, 8
        %s1244 = scalar_lea.vmem %s18, %s1243
        %p1245 = pneg %p558
        %p1246 = pneg %p555
        %p1247 = scmp.lt.s32.totalorder %s67, 1
        %s1248 = scalar_select %p1247, %s67, 1
        %s1249 = scalar_lea.vmem %s19, %s1248
        %p1250 = pneg %p584
        %p1251 = pneg %p581
        %p1252 = scmp.lt.s32.totalorder %s67, 1
        %s1253 = scalar_select %p1252, %s67, 1
        %s1254 = scalar_lea.vmem %s20, %s1253
        %p1255 = pneg %p610
        %p1256 = pneg %p607
        %p1257 = scmp.lt.s32.totalorder %s67, 1
        %s1258 = scalar_select %p1257, %s67, 1
        %s1259 = scalar_lea.vmem %s21, %s1258
        %p1260 = pneg %p636
        %p1261 = pneg %p633
        %p1262 = pneg %p662
        %p1263 = pneg %p659
        %s1264 = sand.u32 %s649, 1
        %s1265 = scalar_lea.sflag [#allocation5], %s1264
        %s1266 = sand.u32 %s649, 1
        %s1267 = smul.addr %s1266, 8
        %s1268 = scalar_lea.vmem [#allocation24], %s1267
        %p1269 = pneg %p690
        %p1270 = pneg %p687
        %s1271 = sand.u32 %s677, 1
        %s1272 = scalar_lea.sflag [#allocation26], %s1271
        %s1273 = sand.u32 %s677, 1
        %s1274 = smul.addr %s1273, 32
        %s1275 = scalar_lea.vmem [#allocation25], %s1274
        %p1276 = scmp.lt.s32.totalorder %s66, 1
        %s1277 = scalar_select %p1276, %s66, 1
        %s1278 = scalar_lea.vmem %s3, %s1277
        %p1279 = scmp.lt.s32.totalorder %s67, 1
        %s1280 = scalar_select %p1279, %s67, 1
        %s1281 = smul.addr %s1280, 4
        %s1282 = smul.addr %s1281, 8
        %s1283 = scalar_lea.vmem %s4, %s1282
        %p1284 = scmp.lt.s32.totalorder %s67, 1
        %s1285 = scalar_select %p1284, %s67, 1
        %s1286 = smul.addr %s1285, 4
        %s1287 = smul.addr %s1286, 8
        %s1288 = scalar_lea.vmem %s5, %s1287
        %p1289 = scmp.lt.s32.totalorder %s67, 1
        %s1290 = scalar_select %p1289, %s67, 1
        %s1291 = smul.addr %s1290, 4
        %s1292 = smul.addr %s1291, 8
        %s1293 = scalar_lea.vmem %s6, %s1292
        %p1294 = scmp.lt.s32.totalorder %s67, 1
        %s1295 = scalar_select %p1294, %s67, 1
        %s1296 = scalar_lea.vmem %s8, %s1295
        %p1297 = scmp.lt.s32.totalorder %s67, 1
        %s1298 = scalar_select %p1297, %s67, 1
        %s1299 = smul.addr %s1298, 8
        %s1300 = smul.addr %s1299, 8
        %s1301 = scalar_lea.vmem %s18, %s1300
        %p1302 = scmp.lt.s32.totalorder %s67, 1
        %s1303 = scalar_select %p1302, %s67, 1
        %s1304 = scalar_lea.vmem %s19, %s1303
        %p1305 = scmp.lt.s32.totalorder %s67, 1
        %s1306 = scalar_select %p1305, %s67, 1
        %s1307 = scalar_lea.vmem %s20, %s1306
        %p1308 = scmp.lt.s32.totalorder %s67, 1
        %s1309 = scalar_select %p1308, %s67, 1
        %s1310 = scalar_lea.vmem %s21, %s1309
        %p1311 = scmp.eq.s32.totalorder %s67, 0
        // Predicated region
        $region161: #{tpu_custom_call.1} parent=107 // pred_check
          %p1312 = pneg %p1311
        $region162: #{tpu_custom_call.1} parent=107 // pred_check_branch
          %1314 = sbr.rel (%p1312) target = $region164
        $region163: #{tpu_custom_call.1} parent=107 // pred_region
          %v1315 = vld [vmem:[%s1023] sm:$0xff]
          %vm1316 = vcmask 261120
          %1317 = vst.msk [vmem:[#allocation2] sm:$0xff] %vm1316, %v1315
        $region164: #{tpu_custom_call.1} parent=107 // pred_fallthru
          _
        %v1318 = vld [vmem:[#allocation2] sm:$0xff]
        %v1319 = vld [vmem:[%s1032] sm:$0xff]
        %v1320 = vld [vmem:[#allocation8] sm:$0xff]
        %v1321 = vld [vmem:[%s1278] sm:$0x1]
        %v1323 = vlaneseq
        %v1324 = vshrl.u32 %v1323, 7
        %v1325 = vsub.s32 0, %v1324
        %v1326 = vrot.slane %v1321, %v1325
        %v1328 = vld [vmem:[%s1283] sm:$0xff]
        %v1329 = vld [vmem:[%s1283 + $0x8] sm:$0xff]
        %v1330 = vld [vmem:[%s1283 + $0x10] sm:$0xff]
        %v1331 = vld [vmem:[%s1283 + $0x18] sm:$0xff]
        %v1332 = vld [vmem:[%s1288] sm:$0xff]
        %v1333 = vld [vmem:[%s1288 + $0x8] sm:$0xff]
        %v1334 = vld [vmem:[%s1288 + $0x10] sm:$0xff]
        %v1335 = vld [vmem:[%s1288 + $0x18] sm:$0xff]
        %v1336 = vld [vmem:[%s1293] sm:$0xff]
        %v1337 = vld [vmem:[%s1293 + $0x8] sm:$0xff]
        %v1338 = vld [vmem:[%s1293 + $0x10] sm:$0xff]
        %v1339 = vld [vmem:[%s1293 + $0x18] sm:$0xff]
        %v1340 = vld [vmem:[%s1045] sm:$0xff]
        %v1341 = vld [vmem:[%s1045 + $0x8] sm:$0xff]
        %v1342 = vld [vmem:[%s1045 + $0x10] sm:$0xff]
        %v1343 = vld [vmem:[%s1045 + $0x18] sm:$0xff]
        %vm1344 = vcmask 261120
        %v1346 = vsel %vm1344, %v1318, 0
        %1348 = vmatprep.subr.mxu0 0.0
        %1349 = vmatpush1.msra.mxu0 %v1328
        %1350 = vmatprep.subr.mxu0 0.0
        %1351 = vmatpush1.msra.mxu0 %v1329
        %1352 = vmatprep.subr.mxu0 0.0
        %1353 = vmatpush1.msra.mxu0 %v1330
        %1354 = vmatprep.subr.mxu0 0.0
        %1355 = vmatpush1.msra.mxu0 %v1331
        %1356 = vmatprep.subr.mxu0 0.0
        %1357 = vmatpush1.msra.mxu0 0.0
        %1358 = vmatprep.subr.mxu0 0.0
        %1359 = vmatpush1.msra.mxu0 0.0
        %1360 = vmatprep.subr.mxu0 0.0
        %1361 = vmatpush1.msra.mxu0 0.0
        %1362 = vmatprep.subr.mxu0 0.0
        %1363 = vmatpush1.msra.mxu0 0.0
        %1364 = vmatprep.subr.mxu0 0.0
        %1365 = vmatpush1.msra.mxu0 0.0
        %1366 = vmatprep.subr.mxu0 0.0
        %1367 = vmatpush1.msra.mxu0 0.0
        %1368 = vmatprep.subr.mxu0 0.0
        %1369 = vmatpush1.msra.mxu0 0.0
        %1370 = vmatprep.subr.mxu0 0.0
        %1371 = vmatpush1.msra.mxu0 0.0
        %1372 = vmatprep.subr.mxu0 0.0
        %1373 = vmatpush1.msra.mxu0 0.0
        %1374 = vmatprep.subr.mxu0 0.0
        %1375 = vmatpush1.msra.mxu0 0.0
        %1376 = vmatprep.subr.mxu0 0.0
        %1377 = vmatpush1.msra.mxu0 0.0
        %1378 = vmatprep.subr.mxu0 0.0
        %1379 = vmatpush1.msra.mxu0 0.0
        %1380 = vmatprep.subr.mxu0 0.0
        %1381 = vmatpush1.msra.mxu0 0.0
        %1382 = vmatprep.subr.mxu0 0.0
        %1383 = vmatpush1.msra.mxu0 0.0
        %1384 = vmatprep.subr.mxu0 0.0
        %1385 = vmatpush1.msra.mxu0 0.0
        %1386 = vmatprep.subr.mxu0 0.0
        %1387 = vmatpush1.msra.mxu0 0.0
        %1388 = vmatprep.subr.mxu0 0.0
        %1389 = vmatpush1.msra.mxu0 0.0
        %1390 = vmatprep.subr.mxu0 0.0
        %1391 = vmatpush1.msra.mxu0 0.0
        %1392 = vmatprep.subr.mxu0 0.0
        %1393 = vmatpush1.msra.mxu0 0.0
        %1394 = vmatprep.subr.mxu0 0.0
        %1395 = vmatpush1.msra.mxu0 0.0
        %1396 = vmatprep.subr.mxu0 0.0
        %1397 = vmatpush1.msra.mxu0 0.0
        %1398 = vmatprep.subr.mxu0 0.0
        %1399 = vmatpush1.msra.mxu0 0.0
        %1400 = vmatprep.subr.mxu0 0.0
        %1401 = vmatpush1.msra.mxu0 0.0
        %1402 = vmatprep.subr.mxu0 0.0
        %1403 = vmatpush1.msra.mxu0 0.0
        %1404 = vmatprep.subr.mxu0 0.0
        %1405 = vmatpush1.msra.mxu0 0.0
        %1406 = vmatprep.subr.mxu0 0.0
        %1407 = vmatpush1.msra.mxu0 0.0
        %1408 = vmatprep.subr.mxu0 0.0
        %1409 = vmatpush1.msra.mxu0 0.0
        %1410 = vmatprep.subr.mxu0 0.0
        %1411 = vmatpush1.msra.mxu0 0.0
        %1412 = vmatprep.mubr.f32.mxu0 0.0
        %1413 = vmatmul.mubr.f32.gmra.mrb[0].mxu0 %v1346
        %v1414 = vpop.f32.mrb[0].mxu0
        %v1415 = vadd.f32 0.0, %v1414
        %v1416 = vpop.f32.mrb[0].mxu0
        %1417 = vdwg.mxu0
        %v1418 = vmul.f32 %v1415, 0.35355338
        %1419 = vmatprep.subr.mxu0 0.0
        %1420 = vmatpush1.msra.mxu0 %v1332
        %1421 = vmatprep.subr.mxu0 0.0
        %1422 = vmatpush1.msra.mxu0 %v1333
        %1423 = vmatprep.subr.mxu0 0.0
        %1424 = vmatpush1.msra.mxu0 %v1334
        %1425 = vmatprep.subr.mxu0 0.0
        %1426 = vmatpush1.msra.mxu0 %v1335
        %1427 = vmatprep.subr.mxu0 0.0
        %1428 = vmatpush1.msra.mxu0 0.0
        %1429 = vmatprep.subr.mxu0 0.0
        %1430 = vmatpush1.msra.mxu0 0.0
        %1431 = vmatprep.subr.mxu0 0.0
        %1432 = vmatpush1.msra.mxu0 0.0
        %1433 = vmatprep.subr.mxu0 0.0
        %1434 = vmatpush1.msra.mxu0 0.0
        %1435 = vmatprep.subr.mxu0 0.0
        %1436 = vmatpush1.msra.mxu0 0.0
        %1437 = vmatprep.subr.mxu0 0.0
        %1438 = vmatpush1.msra.mxu0 0.0
        %1439 = vmatprep.subr.mxu0 0.0
        %1440 = vmatpush1.msra.mxu0 0.0
        %1441 = vmatprep.subr.mxu0 0.0
        %1442 = vmatpush1.msra.mxu0 0.0
        %1443 = vmatprep.subr.mxu0 0.0
        %1444 = vmatpush1.msra.mxu0 0.0
        %1445 = vmatprep.subr.mxu0 0.0
        %1446 = vmatpush1.msra.mxu0 0.0
        %1447 = vmatprep.subr.mxu0 0.0
        %1448 = vmatpush1.msra.mxu0 0.0
        %1449 = vmatprep.subr.mxu0 0.0
        %1450 = vmatpush1.msra.mxu0 0.0
        %1451 = vmatprep.subr.mxu0 0.0
        %1452 = vmatpush1.msra.mxu0 0.0
        %1453 = vmatprep.subr.mxu0 0.0
        %1454 = vmatpush1.msra.mxu0 0.0
        %1455 = vmatprep.subr.mxu0 0.0
        %1456 = vmatpush1.msra.mxu0 0.0
        %1457 = vmatprep.subr.mxu0 0.0
        %1458 = vmatpush1.msra.mxu0 0.0
        %1459 = vmatprep.subr.mxu0 0.0
        %1460 = vmatpush1.msra.mxu0 0.0
        %1461 = vmatprep.subr.mxu0 0.0
        %1462 = vmatpush1.msra.mxu0 0.0
        %1463 = vmatprep.subr.mxu0 0.0
        %1464 = vmatpush1.msra.mxu0 0.0
        %1465 = vmatprep.subr.mxu0 0.0
        %1466 = vmatpush1.msra.mxu0 0.0
        %1467 = vmatprep.subr.mxu0 0.0
        %1468 = vmatpush1.msra.mxu0 0.0
        %1469 = vmatprep.subr.mxu0 0.0
        %1470 = vmatpush1.msra.mxu0 0.0
        %1471 = vmatprep.subr.mxu0 0.0
        %1472 = vmatpush1.msra.mxu0 0.0
        %1473 = vmatprep.subr.mxu0 0.0
        %1474 = vmatpush1.msra.mxu0 0.0
        %1475 = vmatprep.subr.mxu0 0.0
        %1476 = vmatpush1.msra.mxu0 0.0
        %1477 = vmatprep.subr.mxu0 0.0
        %1478 = vmatpush1.msra.mxu0 0.0
        %1479 = vmatprep.subr.mxu0 0.0
        %1480 = vmatpush1.msra.mxu0 0.0
        %1481 = vmatprep.subr.mxu0 0.0
        %1482 = vmatpush1.msra.mxu0 0.0
        %1483 = vmatprep.mubr.f32.mxu0 0.0
        %1484 = vmatmul.mubr.f32.gmra.mrb[0].mxu0 %v1346
        %v1485 = vpop.f32.mrb[0].mxu0
        %v1486 = vadd.f32 0.0, %v1485
        %v1487 = vpop.f32.mrb[0].mxu0
        %1488 = vdwg.mxu0
        %1489 = vmatprep.subr.mxu0 0.0
        %1490 = vmatpush1.msra.mxu0 %v1336
        %1491 = vmatprep.subr.mxu0 0.0
        %1492 = vmatpush1.msra.mxu0 %v1337
        %1493 = vmatprep.subr.mxu0 0.0
        %1494 = vmatpush1.msra.mxu0 %v1338
        %1495 = vmatprep.subr.mxu0 0.0
        %1496 = vmatpush1.msra.mxu0 %v1339
        %1497 = vmatprep.subr.mxu0 0.0
        %1498 = vmatpush1.msra.mxu0 0.0
        %1499 = vmatprep.subr.mxu0 0.0
        %1500 = vmatpush1.msra.mxu0 0.0
        %1501 = vmatprep.subr.mxu0 0.0
        %1502 = vmatpush1.msra.mxu0 0.0
        %1503 = vmatprep.subr.mxu0 0.0
        %1504 = vmatpush1.msra.mxu0 0.0
        %1505 = vmatprep.subr.mxu0 0.0
        %1506 = vmatpush1.msra.mxu0 0.0
        %1507 = vmatprep.subr.mxu0 0.0
        %1508 = vmatpush1.msra.mxu0 0.0
        %1509 = vmatprep.subr.mxu0 0.0
        %1510 = vmatpush1.msra.mxu0 0.0
        %1511 = vmatprep.subr.mxu0 0.0
        %1512 = vmatpush1.msra.mxu0 0.0
        %1513 = vmatprep.subr.mxu0 0.0
        %1514 = vmatpush1.msra.mxu0 0.0
        %1515 = vmatprep.subr.mxu0 0.0
        %1516 = vmatpush1.msra.mxu0 0.0
        %1517 = vmatprep.subr.mxu0 0.0
        %1518 = vmatpush1.msra.mxu0 0.0
        %1519 = vmatprep.subr.mxu0 0.0
        %1520 = vmatpush1.msra.mxu0 0.0
        %1521 = vmatprep.subr.mxu0 0.0
        %1522 = vmatpush1.msra.mxu0 0.0
        %1523 = vmatprep.subr.mxu0 0.0
        %1524 = vmatpush1.msra.mxu0 0.0
        %1525 = vmatprep.subr.mxu0 0.0
        %1526 = vmatpush1.msra.mxu0 0.0
        %1527 = vmatprep.subr.mxu0 0.0
        %1528 = vmatpush1.msra.mxu0 0.0
        %1529 = vmatprep.subr.mxu0 0.0
        %1530 = vmatpush1.msra.mxu0 0.0
        %1531 = vmatprep.subr.mxu0 0.0
        %1532 = vmatpush1.msra.mxu0 0.0
        %1533 = vmatprep.subr.mxu0 0.0
        %1534 = vmatpush1.msra.mxu0 0.0
        %1535 = vmatprep.subr.mxu0 0.0
        %1536 = vmatpush1.msra.mxu0 0.0
        %1537 = vmatprep.subr.mxu0 0.0
        %1538 = vmatpush1.msra.mxu0 0.0
        %1539 = vmatprep.subr.mxu0 0.0
        %1540 = vmatpush1.msra.mxu0 0.0
        %1541 = vmatprep.subr.mxu0 0.0
        %1542 = vmatpush1.msra.mxu0 0.0
        %1543 = vmatprep.subr.mxu0 0.0
        %1544 = vmatpush1.msra.mxu0 0.0
        %1545 = vmatprep.subr.mxu0 0.0
        %1546 = vmatpush1.msra.mxu0 0.0
        %1547 = vmatprep.subr.mxu0 0.0
        %1548 = vmatpush1.msra.mxu0 0.0
        %1549 = vmatprep.subr.mxu0 0.0
        %1550 = vmatpush1.msra.mxu0 0.0
        %1551 = vmatprep.subr.mxu0 0.0
        %1552 = vmatpush1.msra.mxu0 0.0
        %1553 = vmatprep.mubr.f32.mxu0 0.0
        %1554 = vmatmul.mubr.f32.gmra.mrb[0].mxu0 %v1346
        %v1555 = vpop.f32.mrb[0].mxu0
        %v1556 = vadd.f32 0.0, %v1555
        %v1557 = vpop.f32.mrb[0].mxu0
        %1558 = vdwg.mxu0
        %vm1559 = vcmask 64512
        %v1561 = vsel %vm1559, %v1418, 0
        %v1564 = vsel %vm1559, %v1486, 0
        %1566 = vmatprep.subr.mxu0 0.0
        %1567 = vmatpush1.xpose.msra.mxu0 %v1564
        %1568 = vmatprep.subr.mxu0 0.0
        %1569 = vmatpush1.xpose.msra.mxu0 0.0
        %1570 = vmatprep.subr.mxu0 0.0
        %1571 = vmatpush1.xpose.msra.mxu0 0.0
        %1572 = vmatprep.subr.mxu0 0.0
        %1573 = vmatpush1.xpose.msra.mxu0 0.0
        %1574 = vmatprep.subr.mxu0 0.0
        %1575 = vmatpush1.xpose.msra.mxu0 0.0
        %1576 = vmatprep.subr.mxu0 0.0
        %1577 = vmatpush1.xpose.msra.mxu0 0.0
        %1578 = vmatprep.subr.mxu0 0.0
        %1579 = vmatpush1.xpose.msra.mxu0 0.0
        %1580 = vmatprep.subr.mxu0 0.0
        %1581 = vmatpush1.xpose.msra.mxu0 0.0
        %1582 = vmatprep.subr.mxu0 0.0
        %1583 = vmatpush1.xpose.msra.mxu0 0.0
        %1584 = vmatprep.subr.mxu0 0.0
        %1585 = vmatpush1.xpose.msra.mxu0 0.0
        %1586 = vmatprep.subr.mxu0 0.0
        %1587 = vmatpush1.xpose.msra.mxu0 0.0
        %1588 = vmatprep.subr.mxu0 0.0
        %1589 = vmatpush1.xpose.msra.mxu0 0.0
        %1590 = vmatprep.subr.mxu0 0.0
        %1591 = vmatpush1.xpose.msra.mxu0 0.0
        %1592 = vmatprep.subr.mxu0 0.0
        %1593 = vmatpush1.xpose.msra.mxu0 0.0
        %1594 = vmatprep.subr.mxu0 0.0
        %1595 = vmatpush1.xpose.msra.mxu0 0.0
        %1596 = vmatprep.subr.mxu0 0.0
        %1597 = vmatpush1.xpose.msra.mxu0 0.0
        %1598 = vmatprep.subr.mxu0 0.0
        %1599 = vmatpush1.xpose.msra.mxu0 0.0
        %1600 = vmatprep.subr.mxu0 0.0
        %1601 = vmatpush1.xpose.msra.mxu0 0.0
        %1602 = vmatprep.subr.mxu0 0.0
        %1603 = vmatpush1.xpose.msra.mxu0 0.0
        %1604 = vmatprep.subr.mxu0 0.0
        %1605 = vmatpush1.xpose.msra.mxu0 0.0
        %1606 = vmatprep.subr.mxu0 0.0
        %1607 = vmatpush1.xpose.msra.mxu0 0.0
        %1608 = vmatprep.subr.mxu0 0.0
        %1609 = vmatpush1.xpose.msra.mxu0 0.0
        %1610 = vmatprep.subr.mxu0 0.0
        %1611 = vmatpush1.xpose.msra.mxu0 0.0
        %1612 = vmatprep.subr.mxu0 0.0
        %1613 = vmatpush1.xpose.msra.mxu0 0.0
        %1614 = vmatprep.subr.mxu0 0.0
        %1615 = vmatpush1.xpose.msra.mxu0 0.0
        %1616 = vmatprep.subr.mxu0 0.0
        %1617 = vmatpush1.xpose.msra.mxu0 0.0
        %1618 = vmatprep.subr.mxu0 0.0
        %1619 = vmatpush1.xpose.msra.mxu0 0.0
        %1620 = vmatprep.subr.mxu0 0.0
        %1621 = vmatpush1.xpose.msra.mxu0 0.0
        %1622 = vmatprep.subr.mxu0 0.0
        %1623 = vmatpush1.xpose.msra.mxu0 0.0
        %1624 = vmatprep.subr.mxu0 0.0
        %1625 = vmatpush1.xpose.msra.mxu0 0.0
        %1626 = vmatprep.subr.mxu0 0.0
        %1627 = vmatpush1.xpose.msra.mxu0 0.0
        %1628 = vmatprep.subr.mxu0 0.0
        %1629 = vmatpush1.xpose.msra.mxu0 0.0
        %1630 = vmatprep.mubr.f32.mxu0 0.0
        %1631 = vmatmul.mubr.f32.gmra.mrb[0].mxu0 %v1561
        %v1632 = vpop.f32.mrb[0].mxu0
        %v1633 = vadd.f32 %v1320, %v1632
        %v1634 = vpop.f32.mrb[0].mxu0
        %1635 = vdwg.mxu0
        %v1636 = vsel %vm1559, %v1633, -inf
        %1637 = vmax.xlane.f32.xlu0 %v1636
        %v1638 = vpop.xlane.xlu0 %1637
        %v1639 = vsub.f32 %v1633, %v1638
        %v1640 = vmul.f32 %v1639, 1.442695
        %v1641 = vpow.pop %v1640
        %v1642 = vsel %vm1559, %v1641, 0.0
        %1643 = vadd.xlane.f32.xlu0 %v1642
        %v1644 = vpop.xlane.xlu0 %1643
        %v1645 = vrcp.pop %v1644
        %v1646 = vmul.f32 %v1641, %v1645
        %v1648 = vsel %vm1559, %v1646, 0
        %1650 = vmatprep.subr.mxu0 0.0
        %1651 = vmatpush1.msra.mxu0 %v1556
        %1652 = vmatprep.subr.mxu0 0.0
        %1653 = vmatpush1.msra.mxu0 0.0
        %1654 = vmatprep.subr.mxu0 0.0
        %1655 = vmatpush1.msra.mxu0 0.0
        %1656 = vmatprep.subr.mxu0 0.0
        %1657 = vmatpush1.msra.mxu0 0.0
        %1658 = vmatprep.subr.mxu0 0.0
        %1659 = vmatpush1.msra.mxu0 0.0
        %1660 = vmatprep.subr.mxu0 0.0
        %1661 = vmatpush1.msra.mxu0 0.0
        %1662 = vmatprep.subr.mxu0 0.0
        %1663 = vmatpush1.msra.mxu0 0.0
        %1664 = vmatprep.subr.mxu0 0.0
        %1665 = vmatpush1.msra.mxu0 0.0
        %1666 = vmatprep.subr.mxu0 0.0
        %1667 = vmatpush1.msra.mxu0 0.0
        %1668 = vmatprep.subr.mxu0 0.0
        %1669 = vmatpush1.msra.mxu0 0.0
        %1670 = vmatprep.subr.mxu0 0.0
        %1671 = vmatpush1.msra.mxu0 0.0
        %1672 = vmatprep.subr.mxu0 0.0
        %1673 = vmatpush1.msra.mxu0 0.0
        %1674 = vmatprep.subr.mxu0 0.0
        %1675 = vmatpush1.msra.mxu0 0.0
        %1676 = vmatprep.subr.mxu0 0.0
        %1677 = vmatpush1.msra.mxu0 0.0
        %1678 = vmatprep.subr.mxu0 0.0
        %1679 = vmatpush1.msra.mxu0 0.0
        %1680 = vmatprep.subr.mxu0 0.0
        %1681 = vmatpush1.msra.mxu0 0.0
        %1682 = vmatprep.subr.mxu0 0.0
        %1683 = vmatpush1.msra.mxu0 0.0
        %1684 = vmatprep.subr.mxu0 0.0
        %1685 = vmatpush1.msra.mxu0 0.0
        %1686 = vmatprep.subr.mxu0 0.0
        %1687 = vmatpush1.msra.mxu0 0.0
        %1688 = vmatprep.subr.mxu0 0.0
        %1689 = vmatpush1.msra.mxu0 0.0
        %1690 = vmatprep.subr.mxu0 0.0
        %1691 = vmatpush1.msra.mxu0 0.0
        %1692 = vmatprep.subr.mxu0 0.0
        %1693 = vmatpush1.msra.mxu0 0.0
        %1694 = vmatprep.subr.mxu0 0.0
        %1695 = vmatpush1.msra.mxu0 0.0
        %1696 = vmatprep.subr.mxu0 0.0
        %1697 = vmatpush1.msra.mxu0 0.0
        %1698 = vmatprep.subr.mxu0 0.0
        %1699 = vmatpush1.msra.mxu0 0.0
        %1700 = vmatprep.subr.mxu0 0.0
        %1701 = vmatpush1.msra.mxu0 0.0
        %1702 = vmatprep.subr.mxu0 0.0
        %1703 = vmatpush1.msra.mxu0 0.0
        %1704 = vmatprep.subr.mxu0 0.0
        %1705 = vmatpush1.msra.mxu0 0.0
        %1706 = vmatprep.subr.mxu0 0.0
        %1707 = vmatpush1.msra.mxu0 0.0
        %1708 = vmatprep.subr.mxu0 0.0
        %1709 = vmatpush1.msra.mxu0 0.0
        %1710 = vmatprep.subr.mxu0 0.0
        %1711 = vmatpush1.msra.mxu0 0.0
        %1712 = vmatprep.subr.mxu0 0.0
        %1713 = vmatpush1.msra.mxu0 0.0
        %1714 = vmatprep.mubr.f32.mxu0 0.0
        %1715 = vmatmul.mubr.f32.gmra.mrb[0].mxu0 %v1648
        %v1716 = vpop.f32.mrb[0].mxu0
        %v1717 = vadd.f32 0.0, %v1716
        %v1718 = vpop.f32.mrb[0].mxu0
        %1719 = vdwg.mxu0
        %1720 = vrot.lane.b32.xlu0 %v1418, 120
        %v1721 = vpop.permute.xlu0 %1720
        %1722 = vrot.lane.b32.xlu0 %v1486, 120
        %v1723 = vpop.permute.xlu0 %1722
        %v1724 = vsel %vm1559, %v1721, 0
        %v1726 = vsel %vm1559, %v1723, 0
        %1728 = vmatprep.subr.mxu0 0.0
        %1729 = vmatpush1.xpose.msra.mxu0 %v1726
        %1730 = vmatprep.subr.mxu0 0.0
        %1731 = vmatpush1.xpose.msra.mxu0 0.0
        %1732 = vmatprep.subr.mxu0 0.0
        %1733 = vmatpush1.xpose.msra.mxu0 0.0
        %1734 = vmatprep.subr.mxu0 0.0
        %1735 = vmatpush1.xpose.msra.mxu0 0.0
        %1736 = vmatprep.subr.mxu0 0.0
        %1737 = vmatpush1.xpose.msra.mxu0 0.0
        %1738 = vmatprep.subr.mxu0 0.0
        %1739 = vmatpush1.xpose.msra.mxu0 0.0
        %1740 = vmatprep.subr.mxu0 0.0
        %1741 = vmatpush1.xpose.msra.mxu0 0.0
        %1742 = vmatprep.subr.mxu0 0.0
        %1743 = vmatpush1.xpose.msra.mxu0 0.0
        %1744 = vmatprep.subr.mxu0 0.0
        %1745 = vmatpush1.xpose.msra.mxu0 0.0
        %1746 = vmatprep.subr.mxu0 0.0
        %1747 = vmatpush1.xpose.msra.mxu0 0.0
        %1748 = vmatprep.subr.mxu0 0.0
        %1749 = vmatpush1.xpose.msra.mxu0 0.0
        %1750 = vmatprep.subr.mxu0 0.0
        %1751 = vmatpush1.xpose.msra.mxu0 0.0
        %1752 = vmatprep.subr.mxu0 0.0
        %1753 = vmatpush1.xpose.msra.mxu0 0.0
        %1754 = vmatprep.subr.mxu0 0.0
        %1755 = vmatpush1.xpose.msra.mxu0 0.0
        %1756 = vmatprep.subr.mxu0 0.0
        %1757 = vmatpush1.xpose.msra.mxu0 0.0
        %1758 = vmatprep.subr.mxu0 0.0
        %1759 = vmatpush1.xpose.msra.mxu0 0.0
        %1760 = vmatprep.subr.mxu0 0.0
        %1761 = vmatpush1.xpose.msra.mxu0 0.0
        %1762 = vmatprep.subr.mxu0 0.0
        %1763 = vmatpush1.xpose.msra.mxu0 0.0
        %1764 = vmatprep.subr.mxu0 0.0
        %1765 = vmatpush1.xpose.msra.mxu0 0.0
        %1766 = vmatprep.subr.mxu0 0.0
        %1767 = vmatpush1.xpose.msra.mxu0 0.0
        %1768 = vmatprep.subr.mxu0 0.0
        %1769 = vmatpush1.xpose.msra.mxu0 0.0
        %1770 = vmatprep.subr.mxu0 0.0
        %1771 = vmatpush1.xpose.msra.mxu0 0.0
        %1772 = vmatprep.subr.mxu0 0.0
        %1773 = vmatpush1.xpose.msra.mxu0 0.0
        %1774 = vmatprep.subr.mxu0 0.0
        %1775 = vmatpush1.xpose.msra.mxu0 0.0
        %1776 = vmatprep.subr.mxu0 0.0
        %1777 = vmatpush1.xpose.msra.mxu0 0.0
        %1778 = vmatprep.subr.mxu0 0.0
        %1779 = vmatpush1.xpose.msra.mxu0 0.0
        %1780 = vmatprep.subr.mxu0 0.0
        %1781 = vmatpush1.xpose.msra.mxu0 0.0
        %1782 = vmatprep.subr.mxu0 0.0
        %1783 = vmatpush1.xpose.msra.mxu0 0.0
        %1784 = vmatprep.subr.mxu0 0.0
        %1785 = vmatpush1.xpose.msra.mxu0 0.0
        %1786 = vmatprep.subr.mxu0 0.0
        %1787 = vmatpush1.xpose.msra.mxu0 0.0
        %1788 = vmatprep.subr.mxu0 0.0
        %1789 = vmatpush1.xpose.msra.mxu0 0.0
        %1790 = vmatprep.subr.mxu0 0.0
        %1791 = vmatpush1.xpose.msra.mxu0 0.0
        %1792 = vmatprep.mubr.f32.mxu0 0.0
        %1793 = vmatmul.mubr.f32.gmra.mrb[0].mxu0 %v1724
        %v1794 = vpop.f32.mrb[0].mxu0
        %v1795 = vadd.f32 %v1320, %v1794
        %v1796 = vpop.f32.mrb[0].mxu0
        %1797 = vdwg.mxu0
        %v1798 = vsel %vm1559, %v1795, -inf
        %1799 = vmax.xlane.f32.xlu0 %v1798
        %v1800 = vpop.xlane.xlu0 %1799
        %v1801 = vsub.f32 %v1795, %v1800
        %v1802 = vmul.f32 %v1801, 1.442695
        %v1803 = vpow.pop %v1802
        %v1804 = vsel %vm1559, %v1803, 0.0
        %1805 = vadd.xlane.f32.xlu0 %v1804
        %v1806 = vpop.xlane.xlu0 %1805
        %v1807 = vrcp.pop %v1806
        %v1808 = vmul.f32 %v1803, %v1807
        %1810 = vrot.lane.b32.xlu0 %v1556, 120
        %v1811 = vpop.permute.xlu0 %1810
        %v1814 = vsel %vm1559, %v1808, 0
        %1816 = vmatprep.subr.mxu0 0.0
        %1817 = vmatpush1.msra.mxu0 %v1811
        %1818 = vmatprep.subr.mxu0 0.0
        %1819 = vmatpush1.msra.mxu0 0.0
        %1820 = vmatprep.subr.mxu0 0.0
        %1821 = vmatpush1.msra.mxu0 0.0
        %1822 = vmatprep.subr.mxu0 0.0
        %1823 = vmatpush1.msra.mxu0 0.0
        %1824 = vmatprep.subr.mxu0 0.0
        %1825 = vmatpush1.msra.mxu0 0.0
        %1826 = vmatprep.subr.mxu0 0.0
        %1827 = vmatpush1.msra.mxu0 0.0
        %1828 = vmatprep.subr.mxu0 0.0
        %1829 = vmatpush1.msra.mxu0 0.0
        %1830 = vmatprep.subr.mxu0 0.0
        %1831 = vmatpush1.msra.mxu0 0.0
        %1832 = vmatprep.subr.mxu0 0.0
        %1833 = vmatpush1.msra.mxu0 0.0
        %1834 = vmatprep.subr.mxu0 0.0
        %1835 = vmatpush1.msra.mxu0 0.0
        %1836 = vmatprep.subr.mxu0 0.0
        %1837 = vmatpush1.msra.mxu0 0.0
        %1838 = vmatprep.subr.mxu0 0.0
        %1839 = vmatpush1.msra.mxu0 0.0
        %1840 = vmatprep.subr.mxu0 0.0
        %1841 = vmatpush1.msra.mxu0 0.0
        %1842 = vmatprep.subr.mxu0 0.0
        %1843 = vmatpush1.msra.mxu0 0.0
        %1844 = vmatprep.subr.mxu0 0.0
        %1845 = vmatpush1.msra.mxu0 0.0
        %1846 = vmatprep.subr.mxu0 0.0
        %1847 = vmatpush1.msra.mxu0 0.0
        %1848 = vmatprep.subr.mxu0 0.0
        %1849 = vmatpush1.msra.mxu0 0.0
        %1850 = vmatprep.subr.mxu0 0.0
        %1851 = vmatpush1.msra.mxu0 0.0
        %1852 = vmatprep.subr.mxu0 0.0
        %1853 = vmatpush1.msra.mxu0 0.0
        %1854 = vmatprep.subr.mxu0 0.0
        %1855 = vmatpush1.msra.mxu0 0.0
        %1856 = vmatprep.subr.mxu0 0.0
        %1857 = vmatpush1.msra.mxu0 0.0
        %1858 = vmatprep.subr.mxu0 0.0
        %1859 = vmatpush1.msra.mxu0 0.0
        %1860 = vmatprep.subr.mxu0 0.0
        %1861 = vmatpush1.msra.mxu0 0.0
        %1862 = vmatprep.subr.mxu0 0.0
        %1863 = vmatpush1.msra.mxu0 0.0
        %1864 = vmatprep.subr.mxu0 0.0
        %1865 = vmatpush1.msra.mxu0 0.0
        %1866 = vmatprep.subr.mxu0 0.0
        %1867 = vmatpush1.msra.mxu0 0.0
        %1868 = vmatprep.subr.mxu0 0.0
        %1869 = vmatpush1.msra.mxu0 0.0
        %1870 = vmatprep.subr.mxu0 0.0
        %1871 = vmatpush1.msra.mxu0 0.0
        %1872 = vmatprep.subr.mxu0 0.0
        %1873 = vmatpush1.msra.mxu0 0.0
        %1874 = vmatprep.subr.mxu0 0.0
        %1875 = vmatpush1.msra.mxu0 0.0
        %1876 = vmatprep.subr.mxu0 0.0
        %1877 = vmatpush1.msra.mxu0 0.0
        %1878 = vmatprep.subr.mxu0 0.0
        %1879 = vmatpush1.msra.mxu0 0.0
        %1880 = vmatprep.mubr.f32.mxu0 0.0
        %1881 = vmatmul.mubr.f32.gmra.mrb[0].mxu0 %v1814
        %v1882 = vpop.f32.mrb[0].mxu0
        %v1883 = vadd.f32 0.0, %v1882
        %v1884 = vpop.f32.mrb[0].mxu0
        %1885 = vdwg.mxu0
        %v1887 = vsel %vm1559, %v1883, 0
        %1889 = vmatprep.subr.mxu0 0.0
        %1890 = vmatpush1.msra.mxu0 %v1341
        %1891 = vmatprep.subr.mxu0 0.0
        %1892 = vmatpush1.msra.mxu0 0.0
        %1893 = vmatprep.subr.mxu0 0.0
        %1894 = vmatpush1.msra.mxu0 0.0
        %1895 = vmatprep.subr.mxu0 0.0
        %1896 = vmatpush1.msra.mxu0 0.0
        %1897 = vmatprep.subr.mxu0 0.0
        %1898 = vmatpush1.msra.mxu0 0.0
        %1899 = vmatprep.subr.mxu0 0.0
        %1900 = vmatpush1.msra.mxu0 0.0
        %1901 = vmatprep.subr.mxu0 0.0
        %1902 = vmatpush1.msra.mxu0 0.0
        %1903 = vmatprep.subr.mxu0 0.0
        %1904 = vmatpush1.msra.mxu0 0.0
        %1905 = vmatprep.subr.mxu0 0.0
        %1906 = vmatpush1.msra.mxu0 0.0
        %1907 = vmatprep.subr.mxu0 0.0
        %1908 = vmatpush1.msra.mxu0 0.0
        %1909 = vmatprep.subr.mxu0 0.0
        %1910 = vmatpush1.msra.mxu0 0.0
        %1911 = vmatprep.subr.mxu0 0.0
        %1912 = vmatpush1.msra.mxu0 0.0
        %1913 = vmatprep.subr.mxu0 0.0
        %1914 = vmatpush1.msra.mxu0 0.0
        %1915 = vmatprep.subr.mxu0 0.0
        %1916 = vmatpush1.msra.mxu0 0.0
        %1917 = vmatprep.subr.mxu0 0.0
        %1918 = vmatpush1.msra.mxu0 0.0
        %1919 = vmatprep.subr.mxu0 0.0
        %1920 = vmatpush1.msra.mxu0 0.0
        %1921 = vmatprep.subr.mxu0 0.0
        %1922 = vmatpush1.msra.mxu0 0.0
        %1923 = vmatprep.subr.mxu0 0.0
        %1924 = vmatpush1.msra.mxu0 0.0
        %1925 = vmatprep.subr.mxu0 0.0
        %1926 = vmatpush1.msra.mxu0 0.0
        %1927 = vmatprep.subr.mxu0 0.0
        %1928 = vmatpush1.msra.mxu0 0.0
        %1929 = vmatprep.subr.mxu0 0.0
        %1930 = vmatpush1.msra.mxu0 0.0
        %1931 = vmatprep.subr.mxu0 0.0
        %1932 = vmatpush1.msra.mxu0 0.0
        %1933 = vmatprep.subr.mxu0 0.0
        %1934 = vmatpush1.msra.mxu0 0.0
        %1935 = vmatprep.subr.mxu0 0.0
        %1936 = vmatpush1.msra.mxu0 0.0
        %1937 = vmatprep.subr.mxu0 0.0
        %1938 = vmatpush1.msra.mxu0 0.0
        %1939 = vmatprep.subr.mxu0 0.0
        %1940 = vmatpush1.msra.mxu0 0.0
        %1941 = vmatprep.subr.mxu0 0.0
        %1942 = vmatpush1.msra.mxu0 0.0
        %1943 = vmatprep.subr.mxu0 0.0
        %1944 = vmatpush1.msra.mxu0 0.0
        %1945 = vmatprep.subr.mxu0 0.0
        %1946 = vmatpush1.msra.mxu0 0.0
        %1947 = vmatprep.subr.mxu0 0.0
        %1948 = vmatpush1.msra.mxu0 0.0
        %1949 = vmatprep.subr.mxu0 0.0
        %1950 = vmatpush1.msra.mxu0 0.0
        %1951 = vmatprep.subr.mxu0 0.0
        %1952 = vmatpush1.msra.mxu0 0.0
        %1953 = vmatprep.mubr.f32.mxu0 0.0
        %1954 = vmatmul.mubr.f32.gmra.mrb[0].mxu0 %v1887
        %v1955 = vpop.f32.mrb[0].mxu0
        %v1956 = vadd.f32 0.0, %v1955
        %v1957 = vpop.f32.mrb[0].mxu0
        %1958 = vdwg.mxu0
        %v1960 = vsel %vm1559, %v1717, 0
        %1962 = vmatprep.subr.mxu0 0.0
        %1963 = vmatpush1.msra.mxu0 %v1340
        %1964 = vmatprep.subr.mxu0 0.0
        %1965 = vmatpush1.msra.mxu0 0.0
        %1966 = vmatprep.subr.mxu0 0.0
        %1967 = vmatpush1.msra.mxu0 0.0
        %1968 = vmatprep.subr.mxu0 0.0
        %1969 = vmatpush1.msra.mxu0 0.0
        %1970 = vmatprep.subr.mxu0 0.0
        %1971 = vmatpush1.msra.mxu0 0.0
        %1972 = vmatprep.subr.mxu0 0.0
        %1973 = vmatpush1.msra.mxu0 0.0
        %1974 = vmatprep.subr.mxu0 0.0
        %1975 = vmatpush1.msra.mxu0 0.0
        %1976 = vmatprep.subr.mxu0 0.0
        %1977 = vmatpush1.msra.mxu0 0.0
        %1978 = vmatprep.subr.mxu0 0.0
        %1979 = vmatpush1.msra.mxu0 0.0
        %1980 = vmatprep.subr.mxu0 0.0
        %1981 = vmatpush1.msra.mxu0 0.0
        %1982 = vmatprep.subr.mxu0 0.0
        %1983 = vmatpush1.msra.mxu0 0.0
        %1984 = vmatprep.subr.mxu0 0.0
        %1985 = vmatpush1.msra.mxu0 0.0
        %1986 = vmatprep.subr.mxu0 0.0
        %1987 = vmatpush1.msra.mxu0 0.0
        %1988 = vmatprep.subr.mxu0 0.0
        %1989 = vmatpush1.msra.mxu0 0.0
        %1990 = vmatprep.subr.mxu0 0.0
        %1991 = vmatpush1.msra.mxu0 0.0
        %1992 = vmatprep.subr.mxu0 0.0
        %1993 = vmatpush1.msra.mxu0 0.0
        %1994 = vmatprep.subr.mxu0 0.0
        %1995 = vmatpush1.msra.mxu0 0.0
        %1996 = vmatprep.subr.mxu0 0.0
        %1997 = vmatpush1.msra.mxu0 0.0
        %1998 = vmatprep.subr.mxu0 0.0
        %1999 = vmatpush1.msra.mxu0 0.0
        %2000 = vmatprep.subr.mxu0 0.0
        %2001 = vmatpush1.msra.mxu0 0.0
        %2002 = vmatprep.subr.mxu0 0.0
        %2003 = vmatpush1.msra.mxu0 0.0
        %2004 = vmatprep.subr.mxu0 0.0
        %2005 = vmatpush1.msra.mxu0 0.0
        %2006 = vmatprep.subr.mxu0 0.0
        %2007 = vmatpush1.msra.mxu0 0.0
        %2008 = vmatprep.subr.mxu0 0.0
        %2009 = vmatpush1.msra.mxu0 0.0
        %2010 = vmatprep.subr.mxu0 0.0
        %2011 = vmatpush1.msra.mxu0 0.0
        %2012 = vmatprep.subr.mxu0 0.0
        %2013 = vmatpush1.msra.mxu0 0.0
        %2014 = vmatprep.subr.mxu0 0.0
        %2015 = vmatpush1.msra.mxu0 0.0
        %2016 = vmatprep.subr.mxu0 0.0
        %2017 = vmatpush1.msra.mxu0 0.0
        %2018 = vmatprep.subr.mxu0 0.0
        %2019 = vmatpush1.msra.mxu0 0.0
        %2020 = vmatprep.subr.mxu0 0.0
        %2021 = vmatpush1.msra.mxu0 0.0
        %2022 = vmatprep.subr.mxu0 0.0
        %2023 = vmatpush1.msra.mxu0 0.0
        %2024 = vmatprep.subr.mxu0 0.0
        %2025 = vmatpush1.msra.mxu0 0.0
        %2026 = vmatprep.mubr.f32.mxu0 0.0
        %2027 = vmatmul.mubr.f32.gmra.mrb[0].mxu0 %v1960
        %v2028 = vpop.f32.mrb[0].mxu0
        %v2029 = vadd.f32 %v1956, %v2028
        %v2030 = vpop.f32.mrb[0].mxu0
        %2031 = vdwg.mxu0
        %2032 = vrot.lane.b32.xlu0 %v1418, 112
        %v2033 = vpop.permute.xlu0 %2032
        %2034 = vrot.lane.b32.xlu0 %v1486, 112
        %v2035 = vpop.permute.xlu0 %2034
        %v2036 = vsel %vm1559, %v2033, 0
        %v2038 = vsel %vm1559, %v2035, 0
        %2040 = vmatprep.subr.mxu0 0.0
        %2041 = vmatpush1.xpose.msra.mxu0 %v2038
        %2042 = vmatprep.subr.mxu0 0.0
        %2043 = vmatpush1.xpose.msra.mxu0 0.0
        %2044 = vmatprep.subr.mxu0 0.0
        %2045 = vmatpush1.xpose.msra.mxu0 0.0
        %2046 = vmatprep.subr.mxu0 0.0
        %2047 = vmatpush1.xpose.msra.mxu0 0.0
        %2048 = vmatprep.subr.mxu0 0.0
        %2049 = vmatpush1.xpose.msra.mxu0 0.0
        %2050 = vmatprep.subr.mxu0 0.0
        %2051 = vmatpush1.xpose.msra.mxu0 0.0
        %2052 = vmatprep.subr.mxu0 0.0
        %2053 = vmatpush1.xpose.msra.mxu0 0.0
        %2054 = vmatprep.subr.mxu0 0.0
        %2055 = vmatpush1.xpose.msra.mxu0 0.0
        %2056 = vmatprep.subr.mxu0 0.0
        %2057 = vmatpush1.xpose.msra.mxu0 0.0
        %2058 = vmatprep.subr.mxu0 0.0
        %2059 = vmatpush1.xpose.msra.mxu0 0.0
        %2060 = vmatprep.subr.mxu0 0.0
        %2061 = vmatpush1.xpose.msra.mxu0 0.0
        %2062 = vmatprep.subr.mxu0 0.0
        %2063 = vmatpush1.xpose.msra.mxu0 0.0
        %2064 = vmatprep.subr.mxu0 0.0
        %2065 = vmatpush1.xpose.msra.mxu0 0.0
        %2066 = vmatprep.subr.mxu0 0.0
        %2067 = vmatpush1.xpose.msra.mxu0 0.0
        %2068 = vmatprep.subr.mxu0 0.0
        %2069 = vmatpush1.xpose.msra.mxu0 0.0
        %2070 = vmatprep.subr.mxu0 0.0
        %2071 = vmatpush1.xpose.msra.mxu0 0.0
        %2072 = vmatprep.subr.mxu0 0.0
        %2073 = vmatpush1.xpose.msra.mxu0 0.0
        %2074 = vmatprep.subr.mxu0 0.0
        %2075 = vmatpush1.xpose.msra.mxu0 0.0
        %2076 = vmatprep.subr.mxu0 0.0
        %2077 = vmatpush1.xpose.msra.mxu0 0.0
        %2078 = vmatprep.subr.mxu0 0.0
        %2079 = vmatpush1.xpose.msra.mxu0 0.0
        %2080 = vmatprep.subr.mxu0 0.0
        %2081 = vmatpush1.xpose.msra.mxu0 0.0
        %2082 = vmatprep.subr.mxu0 0.0
        %2083 = vmatpush1.xpose.msra.mxu0 0.0
        %2084 = vmatprep.subr.mxu0 0.0
        %2085 = vmatpush1.xpose.msra.mxu0 0.0
        %2086 = vmatprep.subr.mxu0 0.0
        %2087 = vmatpush1.xpose.msra.mxu0 0.0
        %2088 = vmatprep.subr.mxu0 0.0
        %2089 = vmatpush1.xpose.msra.mxu0 0.0
        %2090 = vmatprep.subr.mxu0 0.0
        %2091 = vmatpush1.xpose.msra.mxu0 0.0
        %2092 = vmatprep.subr.mxu0 0.0
        %2093 = vmatpush1.xpose.msra.mxu0 0.0
        %2094 = vmatprep.subr.mxu0 0.0
        %2095 = vmatpush1.xpose.msra.mxu0 0.0
        %2096 = vmatprep.subr.mxu0 0.0
        %2097 = vmatpush1.xpose.msra.mxu0 0.0
        %2098 = vmatprep.subr.mxu0 0.0
        %2099 = vmatpush1.xpose.msra.mxu0 0.0
        %2100 = vmatprep.subr.mxu0 0.0
        %2101 = vmatpush1.xpose.msra.mxu0 0.0
        %2102 = vmatprep.subr.mxu0 0.0
        %2103 = vmatpush1.xpose.msra.mxu0 0.0
        %2104 = vmatprep.mubr.f32.mxu0 0.0
        %2105 = vmatmul.mubr.f32.gmra.mrb[0].mxu0 %v2036
        %v2106 = vpop.f32.mrb[0].mxu0
        %v2107 = vadd.f32 %v1320, %v2106
        %v2108 = vpop.f32.mrb[0].mxu0
        %2109 = vdwg.mxu0
        %v2110 = vsel %vm1559, %v2107, -inf
        %2111 = vmax.xlane.f32.xlu0 %v2110
        %v2112 = vpop.xlane.xlu0 %2111
        %v2113 = vsub.f32 %v2107, %v2112
        %v2114 = vmul.f32 %v2113, 1.442695
        %v2115 = vpow.pop %v2114
        %v2116 = vsel %vm1559, %v2115, 0.0
        %2117 = vadd.xlane.f32.xlu0 %v2116
        %v2118 = vpop.xlane.xlu0 %2117
        %v2119 = vrcp.pop %v2118
        %v2120 = vmul.f32 %v2115, %v2119
        %2121 = vrot.lane.b32.xlu0 %v1556, 112
        %v2122 = vpop.permute.xlu0 %2121
        %v2125 = vsel %vm1559, %v2120, 0
        %2127 = vmatprep.subr.mxu0 0.0
        %2128 = vmatpush1.msra.mxu0 %v2122
        %2129 = vmatprep.subr.mxu0 0.0
        %2130 = vmatpush1.msra.mxu0 0.0
        %2131 = vmatprep.subr.mxu0 0.0
        %2132 = vmatpush1.msra.mxu0 0.0
        %2133 = vmatprep.subr.mxu0 0.0
        %2134 = vmatpush1.msra.mxu0 0.0
        %2135 = vmatprep.subr.mxu0 0.0
        %2136 = vmatpush1.msra.mxu0 0.0
        %2137 = vmatprep.subr.mxu0 0.0
        %2138 = vmatpush1.msra.mxu0 0.0
        %2139 = vmatprep.subr.mxu0 0.0
        %2140 = vmatpush1.msra.mxu0 0.0
        %2141 = vmatprep.subr.mxu0 0.0
        %2142 = vmatpush1.msra.mxu0 0.0
        %2143 = vmatprep.subr.mxu0 0.0
        %2144 = vmatpush1.msra.mxu0 0.0
        %2145 = vmatprep.subr.mxu0 0.0
        %2146 = vmatpush1.msra.mxu0 0.0
        %2147 = vmatprep.subr.mxu0 0.0
        %2148 = vmatpush1.msra.mxu0 0.0
        %2149 = vmatprep.subr.mxu0 0.0
        %2150 = vmatpush1.msra.mxu0 0.0
        %2151 = vmatprep.subr.mxu0 0.0
        %2152 = vmatpush1.msra.mxu0 0.0
        %2153 = vmatprep.subr.mxu0 0.0
        %2154 = vmatpush1.msra.mxu0 0.0
        %2155 = vmatprep.subr.mxu0 0.0
        %2156 = vmatpush1.msra.mxu0 0.0
        %2157 = vmatprep.subr.mxu0 0.0
        %2158 = vmatpush1.msra.mxu0 0.0
        %2159 = vmatprep.subr.mxu0 0.0
        %2160 = vmatpush1.msra.mxu0 0.0
        %2161 = vmatprep.subr.mxu0 0.0
        %2162 = vmatpush1.msra.mxu0 0.0
        %2163 = vmatprep.subr.mxu0 0.0
        %2164 = vmatpush1.msra.mxu0 0.0
        %2165 = vmatprep.subr.mxu0 0.0
        %2166 = vmatpush1.msra.mxu0 0.0
        %2167 = vmatprep.subr.mxu0 0.0
        %2168 = vmatpush1.msra.mxu0 0.0
        %2169 = vmatprep.subr.mxu0 0.0
        %2170 = vmatpush1.msra.mxu0 0.0
        %2171 = vmatprep.subr.mxu0 0.0
        %2172 = vmatpush1.msra.mxu0 0.0
        %2173 = vmatprep.subr.mxu0 0.0
        %2174 = vmatpush1.msra.mxu0 0.0
        %2175 = vmatprep.subr.mxu0 0.0
        %2176 = vmatpush1.msra.mxu0 0.0
        %2177 = vmatprep.subr.mxu0 0.0
        %2178 = vmatpush1.msra.mxu0 0.0
        %2179 = vmatprep.subr.mxu0 0.0
        %2180 = vmatpush1.msra.mxu0 0.0
        %2181 = vmatprep.subr.mxu0 0.0
        %2182 = vmatpush1.msra.mxu0 0.0
        %2183 = vmatprep.subr.mxu0 0.0
        %2184 = vmatpush1.msra.mxu0 0.0
        %2185 = vmatprep.subr.mxu0 0.0
        %2186 = vmatpush1.msra.mxu0 0.0
        %2187 = vmatprep.subr.mxu0 0.0
        %2188 = vmatpush1.msra.mxu0 0.0
        %2189 = vmatprep.subr.mxu0 0.0
        %2190 = vmatpush1.msra.mxu0 0.0
        %2191 = vmatprep.mubr.f32.mxu0 0.0
        %2192 = vmatmul.mubr.f32.gmra.mrb[0].mxu0 %v2125
        %v2193 = vpop.f32.mrb[0].mxu0
        %v2194 = vadd.f32 0.0, %v2193
        %v2195 = vpop.f32.mrb[0].mxu0
        %2196 = vdwg.mxu0
        %v2198 = vsel %vm1559, %v2194, 0
        %2200 = vmatprep.subr.mxu0 0.0
        %2201 = vmatpush1.msra.mxu0 %v1342
        %2202 = vmatprep.subr.mxu0 0.0
        %2203 = vmatpush1.msra.mxu0 0.0
        %2204 = vmatprep.subr.mxu0 0.0
        %2205 = vmatpush1.msra.mxu0 0.0
        %2206 = vmatprep.subr.mxu0 0.0
        %2207 = vmatpush1.msra.mxu0 0.0
        %2208 = vmatprep.subr.mxu0 0.0
        %2209 = vmatpush1.msra.mxu0 0.0
        %2210 = vmatprep.subr.mxu0 0.0
        %2211 = vmatpush1.msra.mxu0 0.0
        %2212 = vmatprep.subr.mxu0 0.0
        %2213 = vmatpush1.msra.mxu0 0.0
        %2214 = vmatprep.subr.mxu0 0.0
        %2215 = vmatpush1.msra.mxu0 0.0
        %2216 = vmatprep.subr.mxu0 0.0
        %2217 = vmatpush1.msra.mxu0 0.0
        %2218 = vmatprep.subr.mxu0 0.0
        %2219 = vmatpush1.msra.mxu0 0.0
        %2220 = vmatprep.subr.mxu0 0.0
        %2221 = vmatpush1.msra.mxu0 0.0
        %2222 = vmatprep.subr.mxu0 0.0
        %2223 = vmatpush1.msra.mxu0 0.0
        %2224 = vmatprep.subr.mxu0 0.0
        %2225 = vmatpush1.msra.mxu0 0.0
        %2226 = vmatprep.subr.mxu0 0.0
        %2227 = vmatpush1.msra.mxu0 0.0
        %2228 = vmatprep.subr.mxu0 0.0
        %2229 = vmatpush1.msra.mxu0 0.0
        %2230 = vmatprep.subr.mxu0 0.0
        %2231 = vmatpush1.msra.mxu0 0.0
        %2232 = vmatprep.subr.mxu0 0.0
        %2233 = vmatpush1.msra.mxu0 0.0
        %2234 = vmatprep.subr.mxu0 0.0
        %2235 = vmatpush1.msra.mxu0 0.0
        %2236 = vmatprep.subr.mxu0 0.0
        %2237 = vmatpush1.msra.mxu0 0.0
        %2238 = vmatprep.subr.mxu0 0.0
        %2239 = vmatpush1.msra.mxu0 0.0
        %2240 = vmatprep.subr.mxu0 0.0
        %2241 = vmatpush1.msra.mxu0 0.0
        %2242 = vmatprep.subr.mxu0 0.0
        %2243 = vmatpush1.msra.mxu0 0.0
        %2244 = vmatprep.subr.mxu0 0.0
        %2245 = vmatpush1.msra.mxu0 0.0
        %2246 = vmatprep.subr.mxu0 0.0
        %2247 = vmatpush1.msra.mxu0 0.0
        %2248 = vmatprep.subr.mxu0 0.0
        %2249 = vmatpush1.msra.mxu0 0.0
        %2250 = vmatprep.subr.mxu0 0.0
        %2251 = vmatpush1.msra.mxu0 0.0
        %2252 = vmatprep.subr.mxu0 0.0
        %2253 = vmatpush1.msra.mxu0 0.0
        %2254 = vmatprep.subr.mxu0 0.0
        %2255 = vmatpush1.msra.mxu0 0.0
        %2256 = vmatprep.subr.mxu0 0.0
        %2257 = vmatpush1.msra.mxu0 0.0
        %2258 = vmatprep.subr.mxu0 0.0
        %2259 = vmatpush1.msra.mxu0 0.0
        %2260 = vmatprep.subr.mxu0 0.0
        %2261 = vmatpush1.msra.mxu0 0.0
        %2262 = vmatprep.subr.mxu0 0.0
        %2263 = vmatpush1.msra.mxu0 0.0
        %2264 = vmatprep.mubr.f32.mxu0 0.0
        %2265 = vmatmul.mubr.f32.gmra.mrb[0].mxu0 %v2198
        %v2266 = vpop.f32.mrb[0].mxu0
        %v2267 = vadd.f32 0.0, %v2266
        %v2268 = vpop.f32.mrb[0].mxu0
        %2269 = vdwg.mxu0
        %v2270 = vadd.f32 %v2029, %v2267
        %2271 = vrot.lane.b32.xlu0 %v1418, 104
        %v2272 = vpop.permute.xlu0 %2271
        %2273 = vrot.lane.b32.xlu0 %v1486, 104
        %v2274 = vpop.permute.xlu0 %2273
        %v2275 = vsel %vm1559, %v2272, 0
        %v2277 = vsel %vm1559, %v2274, 0
        %2279 = vmatprep.subr.mxu0 0.0
        %2280 = vmatpush1.xpose.msra.mxu0 %v2277
        %2281 = vmatprep.subr.mxu0 0.0
        %2282 = vmatpush1.xpose.msra.mxu0 0.0
        %2283 = vmatprep.subr.mxu0 0.0
        %2284 = vmatpush1.xpose.msra.mxu0 0.0
        %2285 = vmatprep.subr.mxu0 0.0
        %2286 = vmatpush1.xpose.msra.mxu0 0.0
        %2287 = vmatprep.subr.mxu0 0.0
        %2288 = vmatpush1.xpose.msra.mxu0 0.0
        %2289 = vmatprep.subr.mxu0 0.0
        %2290 = vmatpush1.xpose.msra.mxu0 0.0
        %2291 = vmatprep.subr.mxu0 0.0
        %2292 = vmatpush1.xpose.msra.mxu0 0.0
        %2293 = vmatprep.subr.mxu0 0.0
        %2294 = vmatpush1.xpose.msra.mxu0 0.0
        %2295 = vmatprep.subr.mxu0 0.0
        %2296 = vmatpush1.xpose.msra.mxu0 0.0
        %2297 = vmatprep.subr.mxu0 0.0
        %2298 = vmatpush1.xpose.msra.mxu0 0.0
        %2299 = vmatprep.subr.mxu0 0.0
        %2300 = vmatpush1.xpose.msra.mxu0 0.0
        %2301 = vmatprep.subr.mxu0 0.0
        %2302 = vmatpush1.xpose.msra.mxu0 0.0
        %2303 = vmatprep.subr.mxu0 0.0
        %2304 = vmatpush1.xpose.msra.mxu0 0.0
        %2305 = vmatprep.subr.mxu0 0.0
        %2306 = vmatpush1.xpose.msra.mxu0 0.0
        %2307 = vmatprep.subr.mxu0 0.0
        %2308 = vmatpush1.xpose.msra.mxu0 0.0
        %2309 = vmatprep.subr.mxu0 0.0
        %2310 = vmatpush1.xpose.msra.mxu0 0.0
        %2311 = vmatprep.subr.mxu0 0.0
        %2312 = vmatpush1.xpose.msra.mxu0 0.0
        %2313 = vmatprep.subr.mxu0 0.0
        %2314 = vmatpush1.xpose.msra.mxu0 0.0
        %2315 = vmatprep.subr.mxu0 0.0
        %2316 = vmatpush1.xpose.msra.mxu0 0.0
        %2317 = vmatprep.subr.mxu0 0.0
        %2318 = vmatpush1.xpose.msra.mxu0 0.0
        %2319 = vmatprep.subr.mxu0 0.0
        %2320 = vmatpush1.xpose.msra.mxu0 0.0
        %2321 = vmatprep.subr.mxu0 0.0
        %2322 = vmatpush1.xpose.msra.mxu0 0.0
        %2323 = vmatprep.subr.mxu0 0.0
        %2324 = vmatpush1.xpose.msra.mxu0 0.0
        %2325 = vmatprep.subr.mxu0 0.0
        %2326 = vmatpush1.xpose.msra.mxu0 0.0
        %2327 = vmatprep.subr.mxu0 0.0
        %2328 = vmatpush1.xpose.msra.mxu0 0.0
        %2329 = vmatprep.subr.mxu0 0.0
        %2330 = vmatpush1.xpose.msra.mxu0 0.0
        %2331 = vmatprep.subr.mxu0 0.0
        %2332 = vmatpush1.xpose.msra.mxu0 0.0
        %2333 = vmatprep.subr.mxu0 0.0
        %2334 = vmatpush1.xpose.msra.mxu0 0.0
        %2335 = vmatprep.subr.mxu0 0.0
        %2336 = vmatpush1.xpose.msra.mxu0 0.0
        %2337 = vmatprep.subr.mxu0 0.0
        %2338 = vmatpush1.xpose.msra.mxu0 0.0
        %2339 = vmatprep.subr.mxu0 0.0
        %2340 = vmatpush1.xpose.msra.mxu0 0.0
        %2341 = vmatprep.subr.mxu0 0.0
        %2342 = vmatpush1.xpose.msra.mxu0 0.0
        %2343 = vmatprep.mubr.f32.mxu0 0.0
        %2344 = vmatmul.mubr.f32.gmra.mrb[0].mxu0 %v2275
        %v2345 = vpop.f32.mrb[0].mxu0
        %v2346 = vadd.f32 %v1320, %v2345
        %v2347 = vpop.f32.mrb[0].mxu0
        %2348 = vdwg.mxu0
        %v2349 = vsel %vm1559, %v2346, -inf
        %2350 = vmax.xlane.f32.xlu0 %v2349
        %v2351 = vpop.xlane.xlu0 %2350
        %v2352 = vsub.f32 %v2346, %v2351
        %v2353 = vmul.f32 %v2352, 1.442695
        %v2354 = vpow.pop %v2353
        %v2355 = vsel %vm1559, %v2354, 0.0
        %2356 = vadd.xlane.f32.xlu0 %v2355
        %v2357 = vpop.xlane.xlu0 %2356
        %v2358 = vrcp.pop %v2357
        %v2359 = vmul.f32 %v2354, %v2358
        %2360 = vrot.lane.b32.xlu0 %v1556, 104
        %v2361 = vpop.permute.xlu0 %2360
        %v2364 = vsel %vm1559, %v2359, 0
        %2366 = vmatprep.subr.mxu0 0.0
        %2367 = vmatpush1.msra.mxu0 %v2361
        %2368 = vmatprep.subr.mxu0 0.0
        %2369 = vmatpush1.msra.mxu0 0.0
        %2370 = vmatprep.subr.mxu0 0.0
        %2371 = vmatpush1.msra.mxu0 0.0
        %2372 = vmatprep.subr.mxu0 0.0
        %2373 = vmatpush1.msra.mxu0 0.0
        %2374 = vmatprep.subr.mxu0 0.0
        %2375 = vmatpush1.msra.mxu0 0.0
        %2376 = vmatprep.subr.mxu0 0.0
        %2377 = vmatpush1.msra.mxu0 0.0
        %2378 = vmatprep.subr.mxu0 0.0
        %2379 = vmatpush1.msra.mxu0 0.0
        %2380 = vmatprep.subr.mxu0 0.0
        %2381 = vmatpush1.msra.mxu0 0.0
        %2382 = vmatprep.subr.mxu0 0.0
        %2383 = vmatpush1.msra.mxu0 0.0
        %2384 = vmatprep.subr.mxu0 0.0
        %2385 = vmatpush1.msra.mxu0 0.0
        %2386 = vmatprep.subr.mxu0 0.0
        %2387 = vmatpush1.msra.mxu0 0.0
        %2388 = vmatprep.subr.mxu0 0.0
        %2389 = vmatpush1.msra.mxu0 0.0
        %2390 = vmatprep.subr.mxu0 0.0
        %2391 = vmatpush1.msra.mxu0 0.0
        %2392 = vmatprep.subr.mxu0 0.0
        %2393 = vmatpush1.msra.mxu0 0.0
        %2394 = vmatprep.subr.mxu0 0.0
        %2395 = vmatpush1.msra.mxu0 0.0
        %2396 = vmatprep.subr.mxu0 0.0
        %2397 = vmatpush1.msra.mxu0 0.0
        %2398 = vmatprep.subr.mxu0 0.0
        %2399 = vmatpush1.msra.mxu0 0.0
        %2400 = vmatprep.subr.mxu0 0.0
        %2401 = vmatpush1.msra.mxu0 0.0
        %2402 = vmatprep.subr.mxu0 0.0
        %2403 = vmatpush1.msra.mxu0 0.0
        %2404 = vmatprep.subr.mxu0 0.0
        %2405 = vmatpush1.msra.mxu0 0.0
        %2406 = vmatprep.subr.mxu0 0.0
        %2407 = vmatpush1.msra.mxu0 0.0
        %2408 = vmatprep.subr.mxu0 0.0
        %2409 = vmatpush1.msra.mxu0 0.0
        %2410 = vmatprep.subr.mxu0 0.0
        %2411 = vmatpush1.msra.mxu0 0.0
        %2412 = vmatprep.subr.mxu0 0.0
        %2413 = vmatpush1.msra.mxu0 0.0
        %2414 = vmatprep.subr.mxu0 0.0
        %2415 = vmatpush1.msra.mxu0 0.0
        %2416 = vmatprep.subr.mxu0 0.0
        %2417 = vmatpush1.msra.mxu0 0.0
        %2418 = vmatprep.subr.mxu0 0.0
        %2419 = vmatpush1.msra.mxu0 0.0
        %2420 = vmatprep.subr.mxu0 0.0
        %2421 = vmatpush1.msra.mxu0 0.0
        %2422 = vmatprep.subr.mxu0 0.0
        %2423 = vmatpush1.msra.mxu0 0.0
        %2424 = vmatprep.subr.mxu0 0.0
        %2425 = vmatpush1.msra.mxu0 0.0
        %2426 = vmatprep.subr.mxu0 0.0
        %2427 = vmatpush1.msra.mxu0 0.0
        %2428 = vmatprep.subr.mxu0 0.0
        %2429 = vmatpush1.msra.mxu0 0.0
        %2430 = vmatprep.mubr.f32.mxu0 0.0
        %2431 = vmatmul.mubr.f32.gmra.mrb[0].mxu0 %v2364
        %v2432 = vpop.f32.mrb[0].mxu0
        %v2433 = vadd.f32 0.0, %v2432
        %v2434 = vpop.f32.mrb[0].mxu0
        %2435 = vdwg.mxu0
        %v2437 = vsel %vm1559, %v2433, 0
        %2439 = vmatprep.subr.mxu0 0.0
        %2440 = vmatpush1.msra.mxu0 %v1343
        %2441 = vmatprep.subr.mxu0 0.0
        %2442 = vmatpush1.msra.mxu0 0.0
        %2443 = vmatprep.subr.mxu0 0.0
        %2444 = vmatpush1.msra.mxu0 0.0
        %2445 = vmatprep.subr.mxu0 0.0
        %2446 = vmatpush1.msra.mxu0 0.0
        %2447 = vmatprep.subr.mxu0 0.0
        %2448 = vmatpush1.msra.mxu0 0.0
        %2449 = vmatprep.subr.mxu0 0.0
        %2450 = vmatpush1.msra.mxu0 0.0
        %2451 = vmatprep.subr.mxu0 0.0
        %2452 = vmatpush1.msra.mxu0 0.0
        %2453 = vmatprep.subr.mxu0 0.0
        %2454 = vmatpush1.msra.mxu0 0.0
        %2455 = vmatprep.subr.mxu0 0.0
        %2456 = vmatpush1.msra.mxu0 0.0
        %2457 = vmatprep.subr.mxu0 0.0
        %2458 = vmatpush1.msra.mxu0 0.0
        %2459 = vmatprep.subr.mxu0 0.0
        %2460 = vmatpush1.msra.mxu0 0.0
        %2461 = vmatprep.subr.mxu0 0.0
        %2462 = vmatpush1.msra.mxu0 0.0
        %2463 = vmatprep.subr.mxu0 0.0
        %2464 = vmatpush1.msra.mxu0 0.0
        %2465 = vmatprep.subr.mxu0 0.0
        %2466 = vmatpush1.msra.mxu0 0.0
        %2467 = vmatprep.subr.mxu0 0.0
        %2468 = vmatpush1.msra.mxu0 0.0
        %2469 = vmatprep.subr.mxu0 0.0
        %2470 = vmatpush1.msra.mxu0 0.0
        %2471 = vmatprep.subr.mxu0 0.0
        %2472 = vmatpush1.msra.mxu0 0.0
        %2473 = vmatprep.subr.mxu0 0.0
        %2474 = vmatpush1.msra.mxu0 0.0
        %2475 = vmatprep.subr.mxu0 0.0
        %2476 = vmatpush1.msra.mxu0 0.0
        %2477 = vmatprep.subr.mxu0 0.0
        %2478 = vmatpush1.msra.mxu0 0.0
        %2479 = vmatprep.subr.mxu0 0.0
        %2480 = vmatpush1.msra.mxu0 0.0
        %2481 = vmatprep.subr.mxu0 0.0
        %2482 = vmatpush1.msra.mxu0 0.0
        %2483 = vmatprep.subr.mxu0 0.0
        %2484 = vmatpush1.msra.mxu0 0.0
        %2485 = vmatprep.subr.mxu0 0.0
        %2486 = vmatpush1.msra.mxu0 0.0
        %2487 = vmatprep.subr.mxu0 0.0
        %2488 = vmatpush1.msra.mxu0 0.0
        %2489 = vmatprep.subr.mxu0 0.0
        %2490 = vmatpush1.msra.mxu0 0.0
        %2491 = vmatprep.subr.mxu0 0.0
        %2492 = vmatpush1.msra.mxu0 0.0
        %2493 = vmatprep.subr.mxu0 0.0
        %2494 = vmatpush1.msra.mxu0 0.0
        %2495 = vmatprep.subr.mxu0 0.0
        %2496 = vmatpush1.msra.mxu0 0.0
        %2497 = vmatprep.subr.mxu0 0.0
        %2498 = vmatpush1.msra.mxu0 0.0
        %2499 = vmatprep.subr.mxu0 0.0
        %2500 = vmatpush1.msra.mxu0 0.0
        %2501 = vmatprep.subr.mxu0 0.0
        %2502 = vmatpush1.msra.mxu0 0.0
        %2503 = vmatprep.mubr.f32.mxu0 0.0
        %2504 = vmatmul.mubr.f32.gmra.mrb[0].mxu0 %v2437
        %v2505 = vpop.f32.mrb[0].mxu0
        %v2506 = vadd.f32 0.0, %v2505
        %v2507 = vpop.f32.mrb[0].mxu0
        %2508 = vdwg.mxu0
        %v2509 = vadd.f32 %v2270, %v2506
        %v2510 = vadd.f32 %v2509, %v1318
        %v2511 = vld [vmem:[%s1296] sm:$0x1]
        %v2512 = vld [vmem:[%s1053] sm:$0x1]
        %v2513 = vsel %vm1344, %v2510, 0.0
        %2514 = vadd.xlane.f32.xlu0 %v2513
        %v2515 = vpop.xlane.xlu0 %2514
        %v2516 = vrcp.pop 32.0
        %v2517 = vmul.f32 %v2515, %v2516
        %v2518 = vsub.f32 %v2510, %v2517
        %v2519 = vmul.f32 %v2518, %v2518
        %v2520 = vsel %vm1344, %v2519, 0.0
        %2521 = vadd.xlane.f32.xlu0 %v2520
        %v2522 = vpop.xlane.xlu0 %2521
        %v2523 = vmul.f32 %v2522, %v2516
        %v2524 = vadd.f32 %v2523, 1e-05
        %v2525 = vrsqrt.pop %v2524
        %v2526 = vmul.f32 %v2518, %v2525
        %v2528 = vlaneseq
        %v2529 = vshrl.u32 %v2528, 7
        %v2530 = vsub.s32 0, %v2529
        %v2531 = vrot.slane %v2511, %v2530
        %v2533 = vmul.f32 %v2526, %v2531
        %v2535 = vlaneseq
        %v2536 = vshrl.u32 %v2535, 7
        %v2537 = vsub.s32 0, %v2536
        %v2538 = vrot.slane %v2512, %v2537
        %v2540 = vadd.f32 %v2533, %v2538
        %v2541 = vld [vmem:[%s1062] sm:$0xff]
        %v2542 = vld [vmem:[%s1062 + $0x8] sm:$0xff]
        %v2543 = vld [vmem:[%s1062 + $0x10] sm:$0xff]
        %v2544 = vld [vmem:[%s1062 + $0x18] sm:$0xff]
        %v2545 = vld [vmem:[%s1071] sm:$0xff]
        %v2546 = vld [vmem:[%s1071 + $0x8] sm:$0xff]
        %v2547 = vld [vmem:[%s1071 + $0x10] sm:$0xff]
        %v2548 = vld [vmem:[%s1071 + $0x18] sm:$0xff]
        %v2549 = vld [vmem:[%s1080] sm:$0xff]
        %v2550 = vld [vmem:[%s1080 + $0x8] sm:$0xff]
        %v2551 = vld [vmem:[%s1080 + $0x10] sm:$0xff]
        %v2552 = vld [vmem:[%s1080 + $0x18] sm:$0xff]
        %v2553 = vld [vmem:[%s1089] sm:$0xff]
        %v2554 = vld [vmem:[%s1089 + $0x8] sm:$0xff]
        %v2555 = vld [vmem:[%s1089 + $0x10] sm:$0xff]
        %v2556 = vld [vmem:[%s1089 + $0x18] sm:$0xff]
        %v2558 = vsel %vm1344, %v2540, 0
        %2560 = vmatprep.subr.mxu0 0.0
        %2561 = vmatpush1.msra.mxu0 %v2541
        %2562 = vmatprep.subr.mxu0 0.0
        %2563 = vmatpush1.msra.mxu0 %v2542
        %2564 = vmatprep.subr.mxu0 0.0
        %2565 = vmatpush1.msra.mxu0 %v2543
        %2566 = vmatprep.subr.mxu0 0.0
        %2567 = vmatpush1.msra.mxu0 %v2544
        %2568 = vmatprep.subr.mxu0 0.0
        %2569 = vmatpush1.msra.mxu0 0.0
        %2570 = vmatprep.subr.mxu0 0.0
        %2571 = vmatpush1.msra.mxu0 0.0
        %2572 = vmatprep.subr.mxu0 0.0
        %2573 = vmatpush1.msra.mxu0 0.0
        %2574 = vmatprep.subr.mxu0 0.0
        %2575 = vmatpush1.msra.mxu0 0.0
        %2576 = vmatprep.subr.mxu0 0.0
        %2577 = vmatpush1.msra.mxu0 0.0
        %2578 = vmatprep.subr.mxu0 0.0
        %2579 = vmatpush1.msra.mxu0 0.0
        %2580 = vmatprep.subr.mxu0 0.0
        %2581 = vmatpush1.msra.mxu0 0.0
        %2582 = vmatprep.subr.mxu0 0.0
        %2583 = vmatpush1.msra.mxu0 0.0
        %2584 = vmatprep.subr.mxu0 0.0
        %2585 = vmatpush1.msra.mxu0 0.0
        %2586 = vmatprep.subr.mxu0 0.0
        %2587 = vmatpush1.msra.mxu0 0.0
        %2588 = vmatprep.subr.mxu0 0.0
        %2589 = vmatpush1.msra.mxu0 0.0
        %2590 = vmatprep.subr.mxu0 0.0
        %2591 = vmatpush1.msra.mxu0 0.0
        %2592 = vmatprep.subr.mxu0 0.0
        %2593 = vmatpush1.msra.mxu0 0.0
        %2594 = vmatprep.subr.mxu0 0.0
        %2595 = vmatpush1.msra.mxu0 0.0
        %2596 = vmatprep.subr.mxu0 0.0
        %2597 = vmatpush1.msra.mxu0 0.0
        %2598 = vmatprep.subr.mxu0 0.0
        %2599 = vmatpush1.msra.mxu0 0.0
        %2600 = vmatprep.subr.mxu0 0.0
        %2601 = vmatpush1.msra.mxu0 0.0
        %2602 = vmatprep.subr.mxu0 0.0
        %2603 = vmatpush1.msra.mxu0 0.0
        %2604 = vmatprep.subr.mxu0 0.0
        %2605 = vmatpush1.msra.mxu0 0.0
        %2606 = vmatprep.subr.mxu0 0.0
        %2607 = vmatpush1.msra.mxu0 0.0
        %2608 = vmatprep.subr.mxu0 0.0
        %2609 = vmatpush1.msra.mxu0 0.0
        %2610 = vmatprep.subr.mxu0 0.0
        %2611 = vmatpush1.msra.mxu0 0.0
        %2612 = vmatprep.subr.mxu0 0.0
        %2613 = vmatpush1.msra.mxu0 0.0
        %2614 = vmatprep.subr.mxu0 0.0
        %2615 = vmatpush1.msra.mxu0 0.0
        %2616 = vmatprep.subr.mxu0 0.0
        %2617 = vmatpush1.msra.mxu0 0.0
        %2618 = vmatprep.subr.mxu0 0.0
        %2619 = vmatpush1.msra.mxu0 0.0
        %2620 = vmatprep.subr.mxu0 0.0
        %2621 = vmatpush1.msra.mxu0 0.0
        %2622 = vmatprep.subr.mxu0 0.0
        %2623 = vmatpush1.msra.mxu0 0.0
        %2624 = vmatprep.mubr.f32.mxu0 0.0
        %2625 = vmatmul.mubr.f32.gmra.mrb[0].mxu0 %v2558
        %v2626 = vpop.f32.mrb[0].mxu0
        %v2627 = vadd.f32 0.0, %v2626
        %v2628 = vpop.f32.mrb[0].mxu0
        %2629 = vdwg.mxu0
        %v2630 = vmul.f32 %v2627, 0.35355338
        %v2632 = vsel %vm1344, %v1319, 0
        %2634 = vmatprep.subr.mxu0 0.0
        %2635 = vmatpush1.msra.mxu0 %v2545
        %2636 = vmatprep.subr.mxu0 0.0
        %2637 = vmatpush1.msra.mxu0 %v2546
        %2638 = vmatprep.subr.mxu0 0.0
        %2639 = vmatpush1.msra.mxu0 %v2547
        %2640 = vmatprep.subr.mxu0 0.0
        %2641 = vmatpush1.msra.mxu0 %v2548
        %2642 = vmatprep.subr.mxu0 0.0
        %2643 = vmatpush1.msra.mxu0 0.0
        %2644 = vmatprep.subr.mxu0 0.0
        %2645 = vmatpush1.msra.mxu0 0.0
        %2646 = vmatprep.subr.mxu0 0.0
        %2647 = vmatpush1.msra.mxu0 0.0
        %2648 = vmatprep.subr.mxu0 0.0
        %2649 = vmatpush1.msra.mxu0 0.0
        %2650 = vmatprep.subr.mxu0 0.0
        %2651 = vmatpush1.msra.mxu0 0.0
        %2652 = vmatprep.subr.mxu0 0.0
        %2653 = vmatpush1.msra.mxu0 0.0
        %2654 = vmatprep.subr.mxu0 0.0
        %2655 = vmatpush1.msra.mxu0 0.0
        %2656 = vmatprep.subr.mxu0 0.0
        %2657 = vmatpush1.msra.mxu0 0.0
        %2658 = vmatprep.subr.mxu0 0.0
        %2659 = vmatpush1.msra.mxu0 0.0
        %2660 = vmatprep.subr.mxu0 0.0
        %2661 = vmatpush1.msra.mxu0 0.0
        %2662 = vmatprep.subr.mxu0 0.0
        %2663 = vmatpush1.msra.mxu0 0.0
        %2664 = vmatprep.subr.mxu0 0.0
        %2665 = vmatpush1.msra.mxu0 0.0
        %2666 = vmatprep.subr.mxu0 0.0
        %2667 = vmatpush1.msra.mxu0 0.0
        %2668 = vmatprep.subr.mxu0 0.0
        %2669 = vmatpush1.msra.mxu0 0.0
        %2670 = vmatprep.subr.mxu0 0.0
        %2671 = vmatpush1.msra.mxu0 0.0
        %2672 = vmatprep.subr.mxu0 0.0
        %2673 = vmatpush1.msra.mxu0 0.0
        %2674 = vmatprep.subr.mxu0 0.0
        %2675 = vmatpush1.msra.mxu0 0.0
        %2676 = vmatprep.subr.mxu0 0.0
        %2677 = vmatpush1.msra.mxu0 0.0
        %2678 = vmatprep.subr.mxu0 0.0
        %2679 = vmatpush1.msra.mxu0 0.0
        %2680 = vmatprep.subr.mxu0 0.0
        %2681 = vmatpush1.msra.mxu0 0.0
        %2682 = vmatprep.subr.mxu0 0.0
        %2683 = vmatpush1.msra.mxu0 0.0
        %2684 = vmatprep.subr.mxu0 0.0
        %2685 = vmatpush1.msra.mxu0 0.0
        %2686 = vmatprep.subr.mxu0 0.0
        %2687 = vmatpush1.msra.mxu0 0.0
        %2688 = vmatprep.subr.mxu0 0.0
        %2689 = vmatpush1.msra.mxu0 0.0
        %2690 = vmatprep.subr.mxu0 0.0
        %2691 = vmatpush1.msra.mxu0 0.0
        %2692 = vmatprep.subr.mxu0 0.0
        %2693 = vmatpush1.msra.mxu0 0.0
        %2694 = vmatprep.subr.mxu0 0.0
        %2695 = vmatpush1.msra.mxu0 0.0
        %2696 = vmatprep.subr.mxu0 0.0
        %2697 = vmatpush1.msra.mxu0 0.0
        %2698 = vmatprep.mubr.f32.mxu0 0.0
        %2699 = vmatmul.mubr.f32.gmra.mrb[0].mxu0 %v2632
        %v2700 = vpop.f32.mrb[0].mxu0
        %v2701 = vadd.f32 0.0, %v2700
        %v2702 = vpop.f32.mrb[0].mxu0
        %2703 = vdwg.mxu0
        %2704 = vmatprep.subr.mxu0 0.0
        %2705 = vmatpush1.msra.mxu0 %v2549
        %2706 = vmatprep.subr.mxu0 0.0
        %2707 = vmatpush1.msra.mxu0 %v2550
        %2708 = vmatprep.subr.mxu0 0.0
        %2709 = vmatpush1.msra.mxu0 %v2551
        %2710 = vmatprep.subr.mxu0 0.0
        %2711 = vmatpush1.msra.mxu0 %v2552
        %2712 = vmatprep.subr.mxu0 0.0
        %2713 = vmatpush1.msra.mxu0 0.0
        %2714 = vmatprep.subr.mxu0 0.0
        %2715 = vmatpush1.msra.mxu0 0.0
        %2716 = vmatprep.subr.mxu0 0.0
        %2717 = vmatpush1.msra.mxu0 0.0
        %2718 = vmatprep.subr.mxu0 0.0
        %2719 = vmatpush1.msra.mxu0 0.0
        %2720 = vmatprep.subr.mxu0 0.0
        %2721 = vmatpush1.msra.mxu0 0.0
        %2722 = vmatprep.subr.mxu0 0.0
        %2723 = vmatpush1.msra.mxu0 0.0
        %2724 = vmatprep.subr.mxu0 0.0
        %2725 = vmatpush1.msra.mxu0 0.0
        %2726 = vmatprep.subr.mxu0 0.0
        %2727 = vmatpush1.msra.mxu0 0.0
        %2728 = vmatprep.subr.mxu0 0.0
        %2729 = vmatpush1.msra.mxu0 0.0
        %2730 = vmatprep.subr.mxu0 0.0
        %2731 = vmatpush1.msra.mxu0 0.0
        %2732 = vmatprep.subr.mxu0 0.0
        %2733 = vmatpush1.msra.mxu0 0.0
        %2734 = vmatprep.subr.mxu0 0.0
        %2735 = vmatpush1.msra.mxu0 0.0
        %2736 = vmatprep.subr.mxu0 0.0
        %2737 = vmatpush1.msra.mxu0 0.0
        %2738 = vmatprep.subr.mxu0 0.0
        %2739 = vmatpush1.msra.mxu0 0.0
        %2740 = vmatprep.subr.mxu0 0.0
        %2741 = vmatpush1.msra.mxu0 0.0
        %2742 = vmatprep.subr.mxu0 0.0
        %2743 = vmatpush1.msra.mxu0 0.0
        %2744 = vmatprep.subr.mxu0 0.0
        %2745 = vmatpush1.msra.mxu0 0.0
        %2746 = vmatprep.subr.mxu0 0.0
        %2747 = vmatpush1.msra.mxu0 0.0
        %2748 = vmatprep.subr.mxu0 0.0
        %2749 = vmatpush1.msra.mxu0 0.0
        %2750 = vmatprep.subr.mxu0 0.0
        %2751 = vmatpush1.msra.mxu0 0.0
        %2752 = vmatprep.subr.mxu0 0.0
        %2753 = vmatpush1.msra.mxu0 0.0
        %2754 = vmatprep.subr.mxu0 0.0
        %2755 = vmatpush1.msra.mxu0 0.0
        %2756 = vmatprep.subr.mxu0 0.0
        %2757 = vmatpush1.msra.mxu0 0.0
        %2758 = vmatprep.subr.mxu0 0.0
        %2759 = vmatpush1.msra.mxu0 0.0
        %2760 = vmatprep.subr.mxu0 0.0
        %2761 = vmatpush1.msra.mxu0 0.0
        %2762 = vmatprep.subr.mxu0 0.0
        %2763 = vmatpush1.msra.mxu0 0.0
        %2764 = vmatprep.subr.mxu0 0.0
        %2765 = vmatpush1.msra.mxu0 0.0
        %2766 = vmatprep.subr.mxu0 0.0
        %2767 = vmatpush1.msra.mxu0 0.0
        %2768 = vmatprep.mubr.f32.mxu0 0.0
        %2769 = vmatmul.mubr.f32.gmra.mrb[0].mxu0 %v2632
        %v2770 = vpop.f32.mrb[0].mxu0
        %v2771 = vadd.f32 0.0, %v2770
        %v2772 = vpop.f32.mrb[0].mxu0
        %2773 = vdwg.mxu0
        %v2775 = vsel %vm1559, %v2630, 0
        %v2778 = vsel %vm1559, %v2701, 0
        %2780 = vmatprep.subr.mxu0 0.0
        %2781 = vmatpush1.xpose.msra.mxu0 %v2778
        %2782 = vmatprep.subr.mxu0 0.0
        %2783 = vmatpush1.xpose.msra.mxu0 0.0
        %2784 = vmatprep.subr.mxu0 0.0
        %2785 = vmatpush1.xpose.msra.mxu0 0.0
        %2786 = vmatprep.subr.mxu0 0.0
        %2787 = vmatpush1.xpose.msra.mxu0 0.0
        %2788 = vmatprep.subr.mxu0 0.0
        %2789 = vmatpush1.xpose.msra.mxu0 0.0
        %2790 = vmatprep.subr.mxu0 0.0
        %2791 = vmatpush1.xpose.msra.mxu0 0.0
        %2792 = vmatprep.subr.mxu0 0.0
        %2793 = vmatpush1.xpose.msra.mxu0 0.0
        %2794 = vmatprep.subr.mxu0 0.0
        %2795 = vmatpush1.xpose.msra.mxu0 0.0
        %2796 = vmatprep.subr.mxu0 0.0
        %2797 = vmatpush1.xpose.msra.mxu0 0.0
        %2798 = vmatprep.subr.mxu0 0.0
        %2799 = vmatpush1.xpose.msra.mxu0 0.0
        %2800 = vmatprep.subr.mxu0 0.0
        %2801 = vmatpush1.xpose.msra.mxu0 0.0
        %2802 = vmatprep.subr.mxu0 0.0
        %2803 = vmatpush1.xpose.msra.mxu0 0.0
        %2804 = vmatprep.subr.mxu0 0.0
        %2805 = vmatpush1.xpose.msra.mxu0 0.0
        %2806 = vmatprep.subr.mxu0 0.0
        %2807 = vmatpush1.xpose.msra.mxu0 0.0
        %2808 = vmatprep.subr.mxu0 0.0
        %2809 = vmatpush1.xpose.msra.mxu0 0.0
        %2810 = vmatprep.subr.mxu0 0.0
        %2811 = vmatpush1.xpose.msra.mxu0 0.0
        %2812 = vmatprep.subr.mxu0 0.0
        %2813 = vmatpush1.xpose.msra.mxu0 0.0
        %2814 = vmatprep.subr.mxu0 0.0
        %2815 = vmatpush1.xpose.msra.mxu0 0.0
        %2816 = vmatprep.subr.mxu0 0.0
        %2817 = vmatpush1.xpose.msra.mxu0 0.0
        %2818 = vmatprep.subr.mxu0 0.0
        %2819 = vmatpush1.xpose.msra.mxu0 0.0
        %2820 = vmatprep.subr.mxu0 0.0
        %2821 = vmatpush1.xpose.msra.mxu0 0.0
        %2822 = vmatprep.subr.mxu0 0.0
        %2823 = vmatpush1.xpose.msra.mxu0 0.0
        %2824 = vmatprep.subr.mxu0 0.0
        %2825 = vmatpush1.xpose.msra.mxu0 0.0
        %2826 = vmatprep.subr.mxu0 0.0
        %2827 = vmatpush1.xpose.msra.mxu0 0.0
        %2828 = vmatprep.subr.mxu0 0.0
        %2829 = vmatpush1.xpose.msra.mxu0 0.0
        %2830 = vmatprep.subr.mxu0 0.0
        %2831 = vmatpush1.xpose.msra.mxu0 0.0
        %2832 = vmatprep.subr.mxu0 0.0
        %2833 = vmatpush1.xpose.msra.mxu0 0.0
        %2834 = vmatprep.subr.mxu0 0.0
        %2835 = vmatpush1.xpose.msra.mxu0 0.0
        %2836 = vmatprep.subr.mxu0 0.0
        %2837 = vmatpush1.xpose.msra.mxu0 0.0
        %2838 = vmatprep.subr.mxu0 0.0
        %2839 = vmatpush1.xpose.msra.mxu0 0.0
        %2840 = vmatprep.subr.mxu0 0.0
        %2841 = vmatpush1.xpose.msra.mxu0 0.0
        %2842 = vmatprep.subr.mxu0 0.0
        %2843 = vmatpush1.xpose.msra.mxu0 0.0
        %2844 = vmatprep.mubr.f32.mxu0 0.0
        %2845 = vmatmul.mubr.f32.gmra.mrb[0].mxu0 %v2775
        %v2846 = vpop.f32.mrb[0].mxu0
        %v2847 = vadd.f32 %v1326, %v2846
        %v2848 = vpop.f32.mrb[0].mxu0
        %2849 = vdwg.mxu0
        %v2850 = vsel %vm1559, %v2847, -inf
        %2851 = vmax.xlane.f32.xlu0 %v2850
        %v2852 = vpop.xlane.xlu0 %2851
        %v2853 = vsub.f32 %v2847, %v2852
        %v2854 = vmul.f32 %v2853, 1.442695
        %v2855 = vpow.pop %v2854
        %v2856 = vsel %vm1559, %v2855, 0.0
        %2857 = vadd.xlane.f32.xlu0 %v2856
        %v2858 = vpop.xlane.xlu0 %2857
        %v2859 = vrcp.pop %v2858
        %v2860 = vmul.f32 %v2855, %v2859
        %v2862 = vsel %vm1559, %v2860, 0
        %2864 = vmatprep.subr.mxu0 0.0
        %2865 = vmatpush1.msra.mxu0 %v2771
        %2866 = vmatprep.subr.mxu0 0.0
        %2867 = vmatpush1.msra.mxu0 0.0
        %2868 = vmatprep.subr.mxu0 0.0
        %2869 = vmatpush1.msra.mxu0 0.0
        %2870 = vmatprep.subr.mxu0 0.0
        %2871 = vmatpush1.msra.mxu0 0.0
        %2872 = vmatprep.subr.mxu0 0.0
        %2873 = vmatpush1.msra.mxu0 0.0
        %2874 = vmatprep.subr.mxu0 0.0
        %2875 = vmatpush1.msra.mxu0 0.0
        %2876 = vmatprep.subr.mxu0 0.0
        %2877 = vmatpush1.msra.mxu0 0.0
        %2878 = vmatprep.subr.mxu0 0.0
        %2879 = vmatpush1.msra.mxu0 0.0
        %2880 = vmatprep.subr.mxu0 0.0
        %2881 = vmatpush1.msra.mxu0 0.0
        %2882 = vmatprep.subr.mxu0 0.0
        %2883 = vmatpush1.msra.mxu0 0.0
        %2884 = vmatprep.subr.mxu0 0.0
        %2885 = vmatpush1.msra.mxu0 0.0
        %2886 = vmatprep.subr.mxu0 0.0
        %2887 = vmatpush1.msra.mxu0 0.0
        %2888 = vmatprep.subr.mxu0 0.0
        %2889 = vmatpush1.msra.mxu0 0.0
        %2890 = vmatprep.subr.mxu0 0.0
        %2891 = vmatpush1.msra.mxu0 0.0
        %2892 = vmatprep.subr.mxu0 0.0
        %2893 = vmatpush1.msra.mxu0 0.0
        %2894 = vmatprep.subr.mxu0 0.0
        %2895 = vmatpush1.msra.mxu0 0.0
        %2896 = vmatprep.subr.mxu0 0.0
        %2897 = vmatpush1.msra.mxu0 0.0
        %2898 = vmatprep.subr.mxu0 0.0
        %2899 = vmatpush1.msra.mxu0 0.0
        %2900 = vmatprep.subr.mxu0 0.0
        %2901 = vmatpush1.msra.mxu0 0.0
        %2902 = vmatprep.subr.mxu0 0.0
        %2903 = vmatpush1.msra.mxu0 0.0
        %2904 = vmatprep.subr.mxu0 0.0
        %2905 = vmatpush1.msra.mxu0 0.0
        %2906 = vmatprep.subr.mxu0 0.0
        %2907 = vmatpush1.msra.mxu0 0.0
        %2908 = vmatprep.subr.mxu0 0.0
        %2909 = vmatpush1.msra.mxu0 0.0
        %2910 = vmatprep.subr.mxu0 0.0
        %2911 = vmatpush1.msra.mxu0 0.0
        %2912 = vmatprep.subr.mxu0 0.0
        %2913 = vmatpush1.msra.mxu0 0.0
        %2914 = vmatprep.subr.mxu0 0.0
        %2915 = vmatpush1.msra.mxu0 0.0
        %2916 = vmatprep.subr.mxu0 0.0
        %2917 = vmatpush1.msra.mxu0 0.0
        %2918 = vmatprep.subr.mxu0 0.0
        %2919 = vmatpush1.msra.mxu0 0.0
        %2920 = vmatprep.subr.mxu0 0.0
        %2921 = vmatpush1.msra.mxu0 0.0
        %2922 = vmatprep.subr.mxu0 0.0
        %2923 = vmatpush1.msra.mxu0 0.0
        %2924 = vmatprep.subr.mxu0 0.0
        %2925 = vmatpush1.msra.mxu0 0.0
        %2926 = vmatprep.subr.mxu0 0.0
        %2927 = vmatpush1.msra.mxu0 0.0
        %2928 = vmatprep.mubr.f32.mxu0 0.0
        %2929 = vmatmul.mubr.f32.gmra.mrb[0].mxu0 %v2862
        %v2930 = vpop.f32.mrb[0].mxu0
        %v2931 = vadd.f32 0.0, %v2930
        %v2932 = vpop.f32.mrb[0].mxu0
        %2933 = vdwg.mxu0
        %2934 = vrot.lane.b32.xlu0 %v2630, 120
        %v2935 = vpop.permute.xlu0 %2934
        %2936 = vrot.lane.b32.xlu0 %v2701, 120
        %v2937 = vpop.permute.xlu0 %2936
        %v2938 = vsel %vm1559, %v2935, 0
        %v2940 = vsel %vm1559, %v2937, 0
        %2942 = vmatprep.subr.mxu0 0.0
        %2943 = vmatpush1.xpose.msra.mxu0 %v2940
        %2944 = vmatprep.subr.mxu0 0.0
        %2945 = vmatpush1.xpose.msra.mxu0 0.0
        %2946 = vmatprep.subr.mxu0 0.0
        %2947 = vmatpush1.xpose.msra.mxu0 0.0
        %2948 = vmatprep.subr.mxu0 0.0
        %2949 = vmatpush1.xpose.msra.mxu0 0.0
        %2950 = vmatprep.subr.mxu0 0.0
        %2951 = vmatpush1.xpose.msra.mxu0 0.0
        %2952 = vmatprep.subr.mxu0 0.0
        %2953 = vmatpush1.xpose.msra.mxu0 0.0
        %2954 = vmatprep.subr.mxu0 0.0
        %2955 = vmatpush1.xpose.msra.mxu0 0.0
        %2956 = vmatprep.subr.mxu0 0.0
        %2957 = vmatpush1.xpose.msra.mxu0 0.0
        %2958 = vmatprep.subr.mxu0 0.0
        %2959 = vmatpush1.xpose.msra.mxu0 0.0
        %2960 = vmatprep.subr.mxu0 0.0
        %2961 = vmatpush1.xpose.msra.mxu0 0.0
        %2962 = vmatprep.subr.mxu0 0.0
        %2963 = vmatpush1.xpose.msra.mxu0 0.0
        %2964 = vmatprep.subr.mxu0 0.0
        %2965 = vmatpush1.xpose.msra.mxu0 0.0
        %2966 = vmatprep.subr.mxu0 0.0
        %2967 = vmatpush1.xpose.msra.mxu0 0.0
        %2968 = vmatprep.subr.mxu0 0.0
        %2969 = vmatpush1.xpose.msra.mxu0 0.0
        %2970 = vmatprep.subr.mxu0 0.0
        %2971 = vmatpush1.xpose.msra.mxu0 0.0
        %2972 = vmatprep.subr.mxu0 0.0
        %2973 = vmatpush1.xpose.msra.mxu0 0.0
        %2974 = vmatprep.subr.mxu0 0.0
        %2975 = vmatpush1.xpose.msra.mxu0 0.0
        %2976 = vmatprep.subr.mxu0 0.0
        %2977 = vmatpush1.xpose.msra.mxu0 0.0
        %2978 = vmatprep.subr.mxu0 0.0
        %2979 = vmatpush1.xpose.msra.mxu0 0.0
        %2980 = vmatprep.subr.mxu0 0.0
        %2981 = vmatpush1.xpose.msra.mxu0 0.0
        %2982 = vmatprep.subr.mxu0 0.0
        %2983 = vmatpush1.xpose.msra.mxu0 0.0
        %2984 = vmatprep.subr.mxu0 0.0
        %2985 = vmatpush1.xpose.msra.mxu0 0.0
        %2986 = vmatprep.subr.mxu0 0.0
        %2987 = vmatpush1.xpose.msra.mxu0 0.0
        %2988 = vmatprep.subr.mxu0 0.0
        %2989 = vmatpush1.xpose.msra.mxu0 0.0
        %2990 = vmatprep.subr.mxu0 0.0
        %2991 = vmatpush1.xpose.msra.mxu0 0.0
        %2992 = vmatprep.subr.mxu0 0.0
        %2993 = vmatpush1.xpose.msra.mxu0 0.0
        %2994 = vmatprep.subr.mxu0 0.0
        %2995 = vmatpush1.xpose.msra.mxu0 0.0
        %2996 = vmatprep.subr.mxu0 0.0
        %2997 = vmatpush1.xpose.msra.mxu0 0.0
        %2998 = vmatprep.subr.mxu0 0.0
        %2999 = vmatpush1.xpose.msra.mxu0 0.0
        %3000 = vmatprep.subr.mxu0 0.0
        %3001 = vmatpush1.xpose.msra.mxu0 0.0
        %3002 = vmatprep.subr.mxu0 0.0
        %3003 = vmatpush1.xpose.msra.mxu0 0.0
        %3004 = vmatprep.subr.mxu0 0.0
        %3005 = vmatpush1.xpose.msra.mxu0 0.0
        %3006 = vmatprep.mubr.f32.mxu0 0.0
        %3007 = vmatmul.mubr.f32.gmra.mrb[0].mxu0 %v2938
        %v3008 = vpop.f32.mrb[0].mxu0
        %v3009 = vadd.f32 %v1326, %v3008
        %v3010 = vpop.f32.mrb[0].mxu0
        %3011 = vdwg.mxu0
        %v3012 = vsel %vm1559, %v3009, -inf
        %3013 = vmax.xlane.f32.xlu0 %v3012
        %v3014 = vpop.xlane.xlu0 %3013
        %v3015 = vsub.f32 %v3009, %v3014
        %v3016 = vmul.f32 %v3015, 1.442695
        %v3017 = vpow.pop %v3016
        %v3018 = vsel %vm1559, %v3017, 0.0
        %3019 = vadd.xlane.f32.xlu0 %v3018
        %v3020 = vpop.xlane.xlu0 %3019
        %v3021 = vrcp.pop %v3020
        %v3022 = vmul.f32 %v3017, %v3021
        %3024 = vrot.lane.b32.xlu0 %v2771, 120
        %v3025 = vpop.permute.xlu0 %3024
        %v3028 = vsel %vm1559, %v3022, 0
        %3030 = vmatprep.subr.mxu0 0.0
        %3031 = vmatpush1.msra.mxu0 %v3025
        %3032 = vmatprep.subr.mxu0 0.0
        %3033 = vmatpush1.msra.mxu0 0.0
        %3034 = vmatprep.subr.mxu0 0.0
        %3035 = vmatpush1.msra.mxu0 0.0
        %3036 = vmatprep.subr.mxu0 0.0
        %3037 = vmatpush1.msra.mxu0 0.0
        %3038 = vmatprep.subr.mxu0 0.0
        %3039 = vmatpush1.msra.mxu0 0.0
        %3040 = vmatprep.subr.mxu0 0.0
        %3041 = vmatpush1.msra.mxu0 0.0
        %3042 = vmatprep.subr.mxu0 0.0
        %3043 = vmatpush1.msra.mxu0 0.0
        %3044 = vmatprep.subr.mxu0 0.0
        %3045 = vmatpush1.msra.mxu0 0.0
        %3046 = vmatprep.subr.mxu0 0.0
        %3047 = vmatpush1.msra.mxu0 0.0
        %3048 = vmatprep.subr.mxu0 0.0
        %3049 = vmatpush1.msra.mxu0 0.0
        %3050 = vmatprep.subr.mxu0 0.0
        %3051 = vmatpush1.msra.mxu0 0.0
        %3052 = vmatprep.subr.mxu0 0.0
        %3053 = vmatpush1.msra.mxu0 0.0
        %3054 = vmatprep.subr.mxu0 0.0
        %3055 = vmatpush1.msra.mxu0 0.0
        %3056 = vmatprep.subr.mxu0 0.0
        %3057 = vmatpush1.msra.mxu0 0.0
        %3058 = vmatprep.subr.mxu0 0.0
        %3059 = vmatpush1.msra.mxu0 0.0
        %3060 = vmatprep.subr.mxu0 0.0
        %3061 = vmatpush1.msra.mxu0 0.0
        %3062 = vmatprep.subr.mxu0 0.0
        %3063 = vmatpush1.msra.mxu0 0.0
        %3064 = vmatprep.subr.mxu0 0.0
        %3065 = vmatpush1.msra.mxu0 0.0
        %3066 = vmatprep.subr.mxu0 0.0
        %3067 = vmatpush1.msra.mxu0 0.0
        %3068 = vmatprep.subr.mxu0 0.0
        %3069 = vmatpush1.msra.mxu0 0.0
        %3070 = vmatprep.subr.mxu0 0.0
        %3071 = vmatpush1.msra.mxu0 0.0
        %3072 = vmatprep.subr.mxu0 0.0
        %3073 = vmatpush1.msra.mxu0 0.0
        %3074 = vmatprep.subr.mxu0 0.0
        %3075 = vmatpush1.msra.mxu0 0.0
        %3076 = vmatprep.subr.mxu0 0.0
        %3077 = vmatpush1.msra.mxu0 0.0
        %3078 = vmatprep.subr.mxu0 0.0
        %3079 = vmatpush1.msra.mxu0 0.0
        %3080 = vmatprep.subr.mxu0 0.0
        %3081 = vmatpush1.msra.mxu0 0.0
        %3082 = vmatprep.subr.mxu0 0.0
        %3083 = vmatpush1.msra.mxu0 0.0
        %3084 = vmatprep.subr.mxu0 0.0
        %3085 = vmatpush1.msra.mxu0 0.0
        %3086 = vmatprep.subr.mxu0 0.0
        %3087 = vmatpush1.msra.mxu0 0.0
        %3088 = vmatprep.subr.mxu0 0.0
        %3089 = vmatpush1.msra.mxu0 0.0
        %3090 = vmatprep.subr.mxu0 0.0
        %3091 = vmatpush1.msra.mxu0 0.0
        %3092 = vmatprep.subr.mxu0 0.0
        %3093 = vmatpush1.msra.mxu0 0.0
        %3094 = vmatprep.mubr.f32.mxu0 0.0
        %3095 = vmatmul.mubr.f32.gmra.mrb[0].mxu0 %v3028
        %v3096 = vpop.f32.mrb[0].mxu0
        %v3097 = vadd.f32 0.0, %v3096
        %v3098 = vpop.f32.mrb[0].mxu0
        %3099 = vdwg.mxu0
        %v3101 = vsel %vm1559, %v3097, 0
        %3103 = vmatprep.subr.mxu0 0.0
        %3104 = vmatpush1.msra.mxu0 %v2554
        %3105 = vmatprep.subr.mxu0 0.0
        %3106 = vmatpush1.msra.mxu0 0.0
        %3107 = vmatprep.subr.mxu0 0.0
        %3108 = vmatpush1.msra.mxu0 0.0
        %3109 = vmatprep.subr.mxu0 0.0
        %3110 = vmatpush1.msra.mxu0 0.0
        %3111 = vmatprep.subr.mxu0 0.0
        %3112 = vmatpush1.msra.mxu0 0.0
        %3113 = vmatprep.subr.mxu0 0.0
        %3114 = vmatpush1.msra.mxu0 0.0
        %3115 = vmatprep.subr.mxu0 0.0
        %3116 = vmatpush1.msra.mxu0 0.0
        %3117 = vmatprep.subr.mxu0 0.0
        %3118 = vmatpush1.msra.mxu0 0.0
        %3119 = vmatprep.subr.mxu0 0.0
        %3120 = vmatpush1.msra.mxu0 0.0
        %3121 = vmatprep.subr.mxu0 0.0
        %3122 = vmatpush1.msra.mxu0 0.0
        %3123 = vmatprep.subr.mxu0 0.0
        %3124 = vmatpush1.msra.mxu0 0.0
        %3125 = vmatprep.subr.mxu0 0.0
        %3126 = vmatpush1.msra.mxu0 0.0
        %3127 = vmatprep.subr.mxu0 0.0
        %3128 = vmatpush1.msra.mxu0 0.0
        %3129 = vmatprep.subr.mxu0 0.0
        %3130 = vmatpush1.msra.mxu0 0.0
        %3131 = vmatprep.subr.mxu0 0.0
        %3132 = vmatpush1.msra.mxu0 0.0
        %3133 = vmatprep.subr.mxu0 0.0
        %3134 = vmatpush1.msra.mxu0 0.0
        %3135 = vmatprep.subr.mxu0 0.0
        %3136 = vmatpush1.msra.mxu0 0.0
        %3137 = vmatprep.subr.mxu0 0.0
        %3138 = vmatpush1.msra.mxu0 0.0
        %3139 = vmatprep.subr.mxu0 0.0
        %3140 = vmatpush1.msra.mxu0 0.0
        %3141 = vmatprep.subr.mxu0 0.0
        %3142 = vmatpush1.msra.mxu0 0.0
        %3143 = vmatprep.subr.mxu0 0.0
        %3144 = vmatpush1.msra.mxu0 0.0
        %3145 = vmatprep.subr.mxu0 0.0
        %3146 = vmatpush1.msra.mxu0 0.0
        %3147 = vmatprep.subr.mxu0 0.0
        %3148 = vmatpush1.msra.mxu0 0.0
        %3149 = vmatprep.subr.mxu0 0.0
        %3150 = vmatpush1.msra.mxu0 0.0
        %3151 = vmatprep.subr.mxu0 0.0
        %3152 = vmatpush1.msra.mxu0 0.0
        %3153 = vmatprep.subr.mxu0 0.0
        %3154 = vmatpush1.msra.mxu0 0.0
        %3155 = vmatprep.subr.mxu0 0.0
        %3156 = vmatpush1.msra.mxu0 0.0
        %3157 = vmatprep.subr.mxu0 0.0
        %3158 = vmatpush1.msra.mxu0 0.0
        %3159 = vmatprep.subr.mxu0 0.0
        %3160 = vmatpush1.msra.mxu0 0.0
        %3161 = vmatprep.subr.mxu0 0.0
        %3162 = vmatpush1.msra.mxu0 0.0
        %3163 = vmatprep.subr.mxu0 0.0
        %3164 = vmatpush1.msra.mxu0 0.0
        %3165 = vmatprep.subr.mxu0 0.0
        %3166 = vmatpush1.msra.mxu0 0.0
        %3167 = vmatprep.mubr.f32.mxu0 0.0
        %3168 = vmatmul.mubr.f32.gmra.mrb[0].mxu0 %v3101
        %v3169 = vpop.f32.mrb[0].mxu0
        %v3170 = vadd.f32 0.0, %v3169
        %v3171 = vpop.f32.mrb[0].mxu0
        %3172 = vdwg.mxu0
        %v3174 = vsel %vm1559, %v2931, 0
        %3176 = vmatprep.subr.mxu0 0.0
        %3177 = vmatpush1.msra.mxu0 %v2553
        %3178 = vmatprep.subr.mxu0 0.0
        %3179 = vmatpush1.msra.mxu0 0.0
        %3180 = vmatprep.subr.mxu0 0.0
        %3181 = vmatpush1.msra.mxu0 0.0
        %3182 = vmatprep.subr.mxu0 0.0
        %3183 = vmatpush1.msra.mxu0 0.0
        %3184 = vmatprep.subr.mxu0 0.0
        %3185 = vmatpush1.msra.mxu0 0.0
        %3186 = vmatprep.subr.mxu0 0.0
        %3187 = vmatpush1.msra.mxu0 0.0
        %3188 = vmatprep.subr.mxu0 0.0
        %3189 = vmatpush1.msra.mxu0 0.0
        %3190 = vmatprep.subr.mxu0 0.0
        %3191 = vmatpush1.msra.mxu0 0.0
        %3192 = vmatprep.subr.mxu0 0.0
        %3193 = vmatpush1.msra.mxu0 0.0
        %3194 = vmatprep.subr.mxu0 0.0
        %3195 = vmatpush1.msra.mxu0 0.0
        %3196 = vmatprep.subr.mxu0 0.0
        %3197 = vmatpush1.msra.mxu0 0.0
        %3198 = vmatprep.subr.mxu0 0.0
        %3199 = vmatpush1.msra.mxu0 0.0
        %3200 = vmatprep.subr.mxu0 0.0
        %3201 = vmatpush1.msra.mxu0 0.0
        %3202 = vmatprep.subr.mxu0 0.0
        %3203 = vmatpush1.msra.mxu0 0.0
        %3204 = vmatprep.subr.mxu0 0.0
        %3205 = vmatpush1.msra.mxu0 0.0
        %3206 = vmatprep.subr.mxu0 0.0
        %3207 = vmatpush1.msra.mxu0 0.0
        %3208 = vmatprep.subr.mxu0 0.0
        %3209 = vmatpush1.msra.mxu0 0.0
        %3210 = vmatprep.subr.mxu0 0.0
        %3211 = vmatpush1.msra.mxu0 0.0
        %3212 = vmatprep.subr.mxu0 0.0
        %3213 = vmatpush1.msra.mxu0 0.0
        %3214 = vmatprep.subr.mxu0 0.0
        %3215 = vmatpush1.msra.mxu0 0.0
        %3216 = vmatprep.subr.mxu0 0.0
        %3217 = vmatpush1.msra.mxu0 0.0
        %3218 = vmatprep.subr.mxu0 0.0
        %3219 = vmatpush1.msra.mxu0 0.0
        %3220 = vmatprep.subr.mxu0 0.0
        %3221 = vmatpush1.msra.mxu0 0.0
        %3222 = vmatprep.subr.mxu0 0.0
        %3223 = vmatpush1.msra.mxu0 0.0
        %3224 = vmatprep.subr.mxu0 0.0
        %3225 = vmatpush1.msra.mxu0 0.0
        %3226 = vmatprep.subr.mxu0 0.0
        %3227 = vmatpush1.msra.mxu0 0.0
        %3228 = vmatprep.subr.mxu0 0.0
        %3229 = vmatpush1.msra.mxu0 0.0
        %3230 = vmatprep.subr.mxu0 0.0
        %3231 = vmatpush1.msra.mxu0 0.0
        %3232 = vmatprep.subr.mxu0 0.0
        %3233 = vmatpush1.msra.mxu0 0.0
        %3234 = vmatprep.subr.mxu0 0.0
        %3235 = vmatpush1.msra.mxu0 0.0
        %3236 = vmatprep.subr.mxu0 0.0
        %3237 = vmatpush1.msra.mxu0 0.0
        %3238 = vmatprep.subr.mxu0 0.0
        %3239 = vmatpush1.msra.mxu0 0.0
        %3240 = vmatprep.mubr.f32.mxu0 0.0
        %3241 = vmatmul.mubr.f32.gmra.mrb[0].mxu0 %v3174
        %v3242 = vpop.f32.mrb[0].mxu0
        %v3243 = vadd.f32 %v3170, %v3242
        %v3244 = vpop.f32.mrb[0].mxu0
        %3245 = vdwg.mxu0
        %3246 = vrot.lane.b32.xlu0 %v2630, 112
        %v3247 = vpop.permute.xlu0 %3246
        %3248 = vrot.lane.b32.xlu0 %v2701, 112
        %v3249 = vpop.permute.xlu0 %3248
        %v3250 = vsel %vm1559, %v3247, 0
        %v3252 = vsel %vm1559, %v3249, 0
        %3254 = vmatprep.subr.mxu0 0.0
        %3255 = vmatpush1.xpose.msra.mxu0 %v3252
        %3256 = vmatprep.subr.mxu0 0.0
        %3257 = vmatpush1.xpose.msra.mxu0 0.0
        %3258 = vmatprep.subr.mxu0 0.0
        %3259 = vmatpush1.xpose.msra.mxu0 0.0
        %3260 = vmatprep.subr.mxu0 0.0
        %3261 = vmatpush1.xpose.msra.mxu0 0.0
        %3262 = vmatprep.subr.mxu0 0.0
        %3263 = vmatpush1.xpose.msra.mxu0 0.0
        %3264 = vmatprep.subr.mxu0 0.0
        %3265 = vmatpush1.xpose.msra.mxu0 0.0
        %3266 = vmatprep.subr.mxu0 0.0
        %3267 = vmatpush1.xpose.msra.mxu0 0.0
        %3268 = vmatprep.subr.mxu0 0.0
        %3269 = vmatpush1.xpose.msra.mxu0 0.0
        %3270 = vmatprep.subr.mxu0 0.0
        %3271 = vmatpush1.xpose.msra.mxu0 0.0
        %3272 = vmatprep.subr.mxu0 0.0
        %3273 = vmatpush1.xpose.msra.mxu0 0.0
        %3274 = vmatprep.subr.mxu0 0.0
        %3275 = vmatpush1.xpose.msra.mxu0 0.0
        %3276 = vmatprep.subr.mxu0 0.0
        %3277 = vmatpush1.xpose.msra.mxu0 0.0
        %3278 = vmatprep.subr.mxu0 0.0
        %3279 = vmatpush1.xpose.msra.mxu0 0.0
        %3280 = vmatprep.subr.mxu0 0.0
        %3281 = vmatpush1.xpose.msra.mxu0 0.0
        %3282 = vmatprep.subr.mxu0 0.0
        %3283 = vmatpush1.xpose.msra.mxu0 0.0
        %3284 = vmatprep.subr.mxu0 0.0
        %3285 = vmatpush1.xpose.msra.mxu0 0.0
        %3286 = vmatprep.subr.mxu0 0.0
        %3287 = vmatpush1.xpose.msra.mxu0 0.0
        %3288 = vmatprep.subr.mxu0 0.0
        %3289 = vmatpush1.xpose.msra.mxu0 0.0
        %3290 = vmatprep.subr.mxu0 0.0
        %3291 = vmatpush1.xpose.msra.mxu0 0.0
        %3292 = vmatprep.subr.mxu0 0.0
        %3293 = vmatpush1.xpose.msra.mxu0 0.0
        %3294 = vmatprep.subr.mxu0 0.0
        %3295 = vmatpush1.xpose.msra.mxu0 0.0
        %3296 = vmatprep.subr.mxu0 0.0
        %3297 = vmatpush1.xpose.msra.mxu0 0.0
        %3298 = vmatprep.subr.mxu0 0.0
        %3299 = vmatpush1.xpose.msra.mxu0 0.0
        %3300 = vmatprep.subr.mxu0 0.0
        %3301 = vmatpush1.xpose.msra.mxu0 0.0
        %3302 = vmatprep.subr.mxu0 0.0
        %3303 = vmatpush1.xpose.msra.mxu0 0.0
        %3304 = vmatprep.subr.mxu0 0.0
        %3305 = vmatpush1.xpose.msra.mxu0 0.0
        %3306 = vmatprep.subr.mxu0 0.0
        %3307 = vmatpush1.xpose.msra.mxu0 0.0
        %3308 = vmatprep.subr.mxu0 0.0
        %3309 = vmatpush1.xpose.msra.mxu0 0.0
        %3310 = vmatprep.subr.mxu0 0.0
        %3311 = vmatpush1.xpose.msra.mxu0 0.0
        %3312 = vmatprep.subr.mxu0 0.0
        %3313 = vmatpush1.xpose.msra.mxu0 0.0
        %3314 = vmatprep.subr.mxu0 0.0
        %3315 = vmatpush1.xpose.msra.mxu0 0.0
        %3316 = vmatprep.subr.mxu0 0.0
        %3317 = vmatpush1.xpose.msra.mxu0 0.0
        %3318 = vmatprep.mubr.f32.mxu0 0.0
        %3319 = vmatmul.mubr.f32.gmra.mrb[0].mxu0 %v3250
        %v3320 = vpop.f32.mrb[0].mxu0
        %v3321 = vadd.f32 %v1326, %v3320
        %v3322 = vpop.f32.mrb[0].mxu0
        %3323 = vdwg.mxu0
        %v3324 = vsel %vm1559, %v3321, -inf
        %3325 = vmax.xlane.f32.xlu0 %v3324
        %v3326 = vpop.xlane.xlu0 %3325
        %v3327 = vsub.f32 %v3321, %v3326
        %v3328 = vmul.f32 %v3327, 1.442695
        %v3329 = vpow.pop %v3328
        %v3330 = vsel %vm1559, %v3329, 0.0
        %3331 = vadd.xlane.f32.xlu0 %v3330
        %v3332 = vpop.xlane.xlu0 %3331
        %v3333 = vrcp.pop %v3332
        %v3334 = vmul.f32 %v3329, %v3333
        %3335 = vrot.lane.b32.xlu0 %v2771, 112
        %v3336 = vpop.permute.xlu0 %3335
        %v3339 = vsel %vm1559, %v3334, 0
        %3341 = vmatprep.subr.mxu0 0.0
        %3342 = vmatpush1.msra.mxu0 %v3336
        %3343 = vmatprep.subr.mxu0 0.0
        %3344 = vmatpush1.msra.mxu0 0.0
        %3345 = vmatprep.subr.mxu0 0.0
        %3346 = vmatpush1.msra.mxu0 0.0
        %3347 = vmatprep.subr.mxu0 0.0
        %3348 = vmatpush1.msra.mxu0 0.0
        %3349 = vmatprep.subr.mxu0 0.0
        %3350 = vmatpush1.msra.mxu0 0.0
        %3351 = vmatprep.subr.mxu0 0.0
        %3352 = vmatpush1.msra.mxu0 0.0
        %3353 = vmatprep.subr.mxu0 0.0
        %3354 = vmatpush1.msra.mxu0 0.0
        %3355 = vmatprep.subr.mxu0 0.0
        %3356 = vmatpush1.msra.mxu0 0.0
        %3357 = vmatprep.subr.mxu0 0.0
        %3358 = vmatpush1.msra.mxu0 0.0
        %3359 = vmatprep.subr.mxu0 0.0
        %3360 = vmatpush1.msra.mxu0 0.0
        %3361 = vmatprep.subr.mxu0 0.0
        %3362 = vmatpush1.msra.mxu0 0.0
        %3363 = vmatprep.subr.mxu0 0.0
        %3364 = vmatpush1.msra.mxu0 0.0
        %3365 = vmatprep.subr.mxu0 0.0
        %3366 = vmatpush1.msra.mxu0 0.0
        %3367 = vmatprep.subr.mxu0 0.0
        %3368 = vmatpush1.msra.mxu0 0.0
        %3369 = vmatprep.subr.mxu0 0.0
        %3370 = vmatpush1.msra.mxu0 0.0
        %3371 = vmatprep.subr.mxu0 0.0
        %3372 = vmatpush1.msra.mxu0 0.0
        %3373 = vmatprep.subr.mxu0 0.0
        %3374 = vmatpush1.msra.mxu0 0.0
        %3375 = vmatprep.subr.mxu0 0.0
        %3376 = vmatpush1.msra.mxu0 0.0
        %3377 = vmatprep.subr.mxu0 0.0
        %3378 = vmatpush1.msra.mxu0 0.0
        %3379 = vmatprep.subr.mxu0 0.0
        %3380 = vmatpush1.msra.mxu0 0.0
        %3381 = vmatprep.subr.mxu0 0.0
        %3382 = vmatpush1.msra.mxu0 0.0
        %3383 = vmatprep.subr.mxu0 0.0
        %3384 = vmatpush1.msra.mxu0 0.0
        %3385 = vmatprep.subr.mxu0 0.0
        %3386 = vmatpush1.msra.mxu0 0.0
        %3387 = vmatprep.subr.mxu0 0.0
        %3388 = vmatpush1.msra.mxu0 0.0
        %3389 = vmatprep.subr.mxu0 0.0
        %3390 = vmatpush1.msra.mxu0 0.0
        %3391 = vmatprep.subr.mxu0 0.0
        %3392 = vmatpush1.msra.mxu0 0.0
        %3393 = vmatprep.subr.mxu0 0.0
        %3394 = vmatpush1.msra.mxu0 0.0
        %3395 = vmatprep.subr.mxu0 0.0
        %3396 = vmatpush1.msra.mxu0 0.0
        %3397 = vmatprep.subr.mxu0 0.0
        %3398 = vmatpush1.msra.mxu0 0.0
        %3399 = vmatprep.subr.mxu0 0.0
        %3400 = vmatpush1.msra.mxu0 0.0
        %3401 = vmatprep.subr.mxu0 0.0
        %3402 = vmatpush1.msra.mxu0 0.0
        %3403 = vmatprep.subr.mxu0 0.0
        %3404 = vmatpush1.msra.mxu0 0.0
        %3405 = vmatprep.mubr.f32.mxu0 0.0
        %3406 = vmatmul.mubr.f32.gmra.mrb[0].mxu0 %v3339
        %v3407 = vpop.f32.mrb[0].mxu0
        %v3408 = vadd.f32 0.0, %v3407
        %v3409 = vpop.f32.mrb[0].mxu0
        %3410 = vdwg.mxu0
        %v3412 = vsel %vm1559, %v3408, 0
        %3414 = vmatprep.subr.mxu0 0.0
        %3415 = vmatpush1.msra.mxu0 %v2555
        %3416 = vmatprep.subr.mxu0 0.0
        %3417 = vmatpush1.msra.mxu0 0.0
        %3418 = vmatprep.subr.mxu0 0.0
        %3419 = vmatpush1.msra.mxu0 0.0
        %3420 = vmatprep.subr.mxu0 0.0
        %3421 = vmatpush1.msra.mxu0 0.0
        %3422 = vmatprep.subr.mxu0 0.0
        %3423 = vmatpush1.msra.mxu0 0.0
        %3424 = vmatprep.subr.mxu0 0.0
        %3425 = vmatpush1.msra.mxu0 0.0
        %3426 = vmatprep.subr.mxu0 0.0
        %3427 = vmatpush1.msra.mxu0 0.0
        %3428 = vmatprep.subr.mxu0 0.0
        %3429 = vmatpush1.msra.mxu0 0.0
        %3430 = vmatprep.subr.mxu0 0.0
        %3431 = vmatpush1.msra.mxu0 0.0
        %3432 = vmatprep.subr.mxu0 0.0
        %3433 = vmatpush1.msra.mxu0 0.0
        %3434 = vmatprep.subr.mxu0 0.0
        %3435 = vmatpush1.msra.mxu0 0.0
        %3436 = vmatprep.subr.mxu0 0.0
        %3437 = vmatpush1.msra.mxu0 0.0
        %3438 = vmatprep.subr.mxu0 0.0
        %3439 = vmatpush1.msra.mxu0 0.0
        %3440 = vmatprep.subr.mxu0 0.0
        %3441 = vmatpush1.msra.mxu0 0.0
        %3442 = vmatprep.subr.mxu0 0.0
        %3443 = vmatpush1.msra.mxu0 0.0
        %3444 = vmatprep.subr.mxu0 0.0
        %3445 = vmatpush1.msra.mxu0 0.0
        %3446 = vmatprep.subr.mxu0 0.0
        %3447 = vmatpush1.msra.mxu0 0.0
        %3448 = vmatprep.subr.mxu0 0.0
        %3449 = vmatpush1.msra.mxu0 0.0
        %3450 = vmatprep.subr.mxu0 0.0
        %3451 = vmatpush1.msra.mxu0 0.0
        %3452 = vmatprep.subr.mxu0 0.0
        %3453 = vmatpush1.msra.mxu0 0.0
        %3454 = vmatprep.subr.mxu0 0.0
        %3455 = vmatpush1.msra.mxu0 0.0
        %3456 = vmatprep.subr.mxu0 0.0
        %3457 = vmatpush1.msra.mxu0 0.0
        %3458 = vmatprep.subr.mxu0 0.0
        %3459 = vmatpush1.msra.mxu0 0.0
        %3460 = vmatprep.subr.mxu0 0.0
        %3461 = vmatpush1.msra.mxu0 0.0
        %3462 = vmatprep.subr.mxu0 0.0
        %3463 = vmatpush1.msra.mxu0 0.0
        %3464 = vmatprep.subr.mxu0 0.0
        %3465 = vmatpush1.msra.mxu0 0.0
        %3466 = vmatprep.subr.mxu0 0.0
        %3467 = vmatpush1.msra.mxu0 0.0
        %3468 = vmatprep.subr.mxu0 0.0
        %3469 = vmatpush1.msra.mxu0 0.0
        %3470 = vmatprep.subr.mxu0 0.0
        %3471 = vmatpush1.msra.mxu0 0.0
        %3472 = vmatprep.subr.mxu0 0.0
        %3473 = vmatpush1.msra.mxu0 0.0
        %3474 = vmatprep.subr.mxu0 0.0
        %3475 = vmatpush1.msra.mxu0 0.0
        %3476 = vmatprep.subr.mxu0 0.0
        %3477 = vmatpush1.msra.mxu0 0.0
        %3478 = vmatprep.mubr.f32.mxu0 0.0
        %3479 = vmatmul.mubr.f32.gmra.mrb[0].mxu0 %v3412
        %v3480 = vpop.f32.mrb[0].mxu0
        %v3481 = vadd.f32 0.0, %v3480
        %v3482 = vpop.f32.mrb[0].mxu0
        %3483 = vdwg.mxu0
        %v3484 = vadd.f32 %v3243, %v3481
        %3485 = vrot.lane.b32.xlu0 %v2630, 104
        %v3486 = vpop.permute.xlu0 %3485
        %3487 = vrot.lane.b32.xlu0 %v2701, 104
        %v3488 = vpop.permute.xlu0 %3487
        %v3489 = vsel %vm1559, %v3486, 0
        %v3491 = vsel %vm1559, %v3488, 0
        %3493 = vmatprep.subr.mxu0 0.0
        %3494 = vmatpush1.xpose.msra.mxu0 %v3491
        %3495 = vmatprep.subr.mxu0 0.0
        %3496 = vmatpush1.xpose.msra.mxu0 0.0
        %3497 = vmatprep.subr.mxu0 0.0
        %3498 = vmatpush1.xpose.msra.mxu0 0.0
        %3499 = vmatprep.subr.mxu0 0.0
        %3500 = vmatpush1.xpose.msra.mxu0 0.0
        %3501 = vmatprep.subr.mxu0 0.0
        %3502 = vmatpush1.xpose.msra.mxu0 0.0
        %3503 = vmatprep.subr.mxu0 0.0
        %3504 = vmatpush1.xpose.msra.mxu0 0.0
        %3505 = vmatprep.subr.mxu0 0.0
        %3506 = vmatpush1.xpose.msra.mxu0 0.0
        %3507 = vmatprep.subr.mxu0 0.0
        %3508 = vmatpush1.xpose.msra.mxu0 0.0
        %3509 = vmatprep.subr.mxu0 0.0
        %3510 = vmatpush1.xpose.msra.mxu0 0.0
        %3511 = vmatprep.subr.mxu0 0.0
        %3512 = vmatpush1.xpose.msra.mxu0 0.0
        %3513 = vmatprep.subr.mxu0 0.0
        %3514 = vmatpush1.xpose.msra.mxu0 0.0
        %3515 = vmatprep.subr.mxu0 0.0
        %3516 = vmatpush1.xpose.msra.mxu0 0.0
        %3517 = vmatprep.subr.mxu0 0.0
        %3518 = vmatpush1.xpose.msra.mxu0 0.0
        %3519 = vmatprep.subr.mxu0 0.0
        %3520 = vmatpush1.xpose.msra.mxu0 0.0
        %3521 = vmatprep.subr.mxu0 0.0
        %3522 = vmatpush1.xpose.msra.mxu0 0.0
        %3523 = vmatprep.subr.mxu0 0.0
        %3524 = vmatpush1.xpose.msra.mxu0 0.0
        %3525 = vmatprep.subr.mxu0 0.0
        %3526 = vmatpush1.xpose.msra.mxu0 0.0
        %3527 = vmatprep.subr.mxu0 0.0
        %3528 = vmatpush1.xpose.msra.mxu0 0.0
        %3529 = vmatprep.subr.mxu0 0.0
        %3530 = vmatpush1.xpose.msra.mxu0 0.0
        %3531 = vmatprep.subr.mxu0 0.0
        %3532 = vmatpush1.xpose.msra.mxu0 0.0
        %3533 = vmatprep.subr.mxu0 0.0
        %3534 = vmatpush1.xpose.msra.mxu0 0.0
        %3535 = vmatprep.subr.mxu0 0.0
        %3536 = vmatpush1.xpose.msra.mxu0 0.0
        %3537 = vmatprep.subr.mxu0 0.0
        %3538 = vmatpush1.xpose.msra.mxu0 0.0
        %3539 = vmatprep.subr.mxu0 0.0
        %3540 = vmatpush1.xpose.msra.mxu0 0.0
        %3541 = vmatprep.subr.mxu0 0.0
        %3542 = vmatpush1.xpose.msra.mxu0 0.0
        %3543 = vmatprep.subr.mxu0 0.0
        %3544 = vmatpush1.xpose.msra.mxu0 0.0
        %3545 = vmatprep.subr.mxu0 0.0
        %3546 = vmatpush1.xpose.msra.mxu0 0.0
        %3547 = vmatprep.subr.mxu0 0.0
        %3548 = vmatpush1.xpose.msra.mxu0 0.0
        %3549 = vmatprep.subr.mxu0 0.0
        %3550 = vmatpush1.xpose.msra.mxu0 0.0
        %3551 = vmatprep.subr.mxu0 0.0
        %3552 = vmatpush1.xpose.msra.mxu0 0.0
        %3553 = vmatprep.subr.mxu0 0.0
        %3554 = vmatpush1.xpose.msra.mxu0 0.0
        %3555 = vmatprep.subr.mxu0 0.0
        %3556 = vmatpush1.xpose.msra.mxu0 0.0
        %3557 = vmatprep.mubr.f32.mxu0 0.0
        %3558 = vmatmul.mubr.f32.gmra.mrb[0].mxu0 %v3489
        %v3559 = vpop.f32.mrb[0].mxu0
        %v3560 = vadd.f32 %v1326, %v3559
        %v3561 = vpop.f32.mrb[0].mxu0
        %3562 = vdwg.mxu0
        %v3563 = vsel %vm1559, %v3560, -inf
        %3564 = vmax.xlane.f32.xlu0 %v3563
        %v3565 = vpop.xlane.xlu0 %3564
        %v3566 = vsub.f32 %v3560, %v3565
        %v3567 = vmul.f32 %v3566, 1.442695
        %v3568 = vpow.pop %v3567
        %v3569 = vsel %vm1559, %v3568, 0.0
        %3570 = vadd.xlane.f32.xlu0 %v3569
        %v3571 = vpop.xlane.xlu0 %3570
        %v3572 = vrcp.pop %v3571
        %v3573 = vmul.f32 %v3568, %v3572
        %3574 = vrot.lane.b32.xlu0 %v2771, 104
        %v3575 = vpop.permute.xlu0 %3574
        %v3578 = vsel %vm1559, %v3573, 0
        %3580 = vmatprep.subr.mxu0 0.0
        %3581 = vmatpush1.msra.mxu0 %v3575
        %3582 = vmatprep.subr.mxu0 0.0
        %3583 = vmatpush1.msra.mxu0 0.0
        %3584 = vmatprep.subr.mxu0 0.0
        %3585 = vmatpush1.msra.mxu0 0.0
        %3586 = vmatprep.subr.mxu0 0.0
        %3587 = vmatpush1.msra.mxu0 0.0
        %3588 = vmatprep.subr.mxu0 0.0
        %3589 = vmatpush1.msra.mxu0 0.0
        %3590 = vmatprep.subr.mxu0 0.0
        %3591 = vmatpush1.msra.mxu0 0.0
        %3592 = vmatprep.subr.mxu0 0.0
        %3593 = vmatpush1.msra.mxu0 0.0
        %3594 = vmatprep.subr.mxu0 0.0
        %3595 = vmatpush1.msra.mxu0 0.0
        %3596 = vmatprep.subr.mxu0 0.0
        %3597 = vmatpush1.msra.mxu0 0.0
        %3598 = vmatprep.subr.mxu0 0.0
        %3599 = vmatpush1.msra.mxu0 0.0
        %3600 = vmatprep.subr.mxu0 0.0
        %3601 = vmatpush1.msra.mxu0 0.0
        %3602 = vmatprep.subr.mxu0 0.0
        %3603 = vmatpush1.msra.mxu0 0.0
        %3604 = vmatprep.subr.mxu0 0.0
        %3605 = vmatpush1.msra.mxu0 0.0
        %3606 = vmatprep.subr.mxu0 0.0
        %3607 = vmatpush1.msra.mxu0 0.0
        %3608 = vmatprep.subr.mxu0 0.0
        %3609 = vmatpush1.msra.mxu0 0.0
        %3610 = vmatprep.subr.mxu0 0.0
        %3611 = vmatpush1.msra.mxu0 0.0
        %3612 = vmatprep.subr.mxu0 0.0
        %3613 = vmatpush1.msra.mxu0 0.0
        %3614 = vmatprep.subr.mxu0 0.0
        %3615 = vmatpush1.msra.mxu0 0.0
        %3616 = vmatprep.subr.mxu0 0.0
        %3617 = vmatpush1.msra.mxu0 0.0
        %3618 = vmatprep.subr.mxu0 0.0
        %3619 = vmatpush1.msra.mxu0 0.0
        %3620 = vmatprep.subr.mxu0 0.0
        %3621 = vmatpush1.msra.mxu0 0.0
        %3622 = vmatprep.subr.mxu0 0.0
        %3623 = vmatpush1.msra.mxu0 0.0
        %3624 = vmatprep.subr.mxu0 0.0
        %3625 = vmatpush1.msra.mxu0 0.0
        %3626 = vmatprep.subr.mxu0 0.0
        %3627 = vmatpush1.msra.mxu0 0.0
        %3628 = vmatprep.subr.mxu0 0.0
        %3629 = vmatpush1.msra.mxu0 0.0
        %3630 = vmatprep.subr.mxu0 0.0
        %3631 = vmatpush1.msra.mxu0 0.0
        %3632 = vmatprep.subr.mxu0 0.0
        %3633 = vmatpush1.msra.mxu0 0.0
        %3634 = vmatprep.subr.mxu0 0.0
        %3635 = vmatpush1.msra.mxu0 0.0
        %3636 = vmatprep.subr.mxu0 0.0
        %3637 = vmatpush1.msra.mxu0 0.0
        %3638 = vmatprep.subr.mxu0 0.0
        %3639 = vmatpush1.msra.mxu0 0.0
        %3640 = vmatprep.subr.mxu0 0.0
        %3641 = vmatpush1.msra.mxu0 0.0
        %3642 = vmatprep.subr.mxu0 0.0
        %3643 = vmatpush1.msra.mxu0 0.0
        %3644 = vmatprep.mubr.f32.mxu0 0.0
        %3645 = vmatmul.mubr.f32.gmra.mrb[0].mxu0 %v3578
        %v3646 = vpop.f32.mrb[0].mxu0
        %v3647 = vadd.f32 0.0, %v3646
        %v3648 = vpop.f32.mrb[0].mxu0
        %3649 = vdwg.mxu0
        %v3651 = vsel %vm1559, %v3647, 0
        %3653 = vmatprep.subr.mxu0 0.0
        %3654 = vmatpush1.msra.mxu0 %v2556
        %3655 = vmatprep.subr.mxu0 0.0
        %3656 = vmatpush1.msra.mxu0 0.0
        %3657 = vmatprep.subr.mxu0 0.0
        %3658 = vmatpush1.msra.mxu0 0.0
        %3659 = vmatprep.subr.mxu0 0.0
        %3660 = vmatpush1.msra.mxu0 0.0
        %3661 = vmatprep.subr.mxu0 0.0
        %3662 = vmatpush1.msra.mxu0 0.0
        %3663 = vmatprep.subr.mxu0 0.0
        %3664 = vmatpush1.msra.mxu0 0.0
        %3665 = vmatprep.subr.mxu0 0.0
        %3666 = vmatpush1.msra.mxu0 0.0
        %3667 = vmatprep.subr.mxu0 0.0
        %3668 = vmatpush1.msra.mxu0 0.0
        %3669 = vmatprep.subr.mxu0 0.0
        %3670 = vmatpush1.msra.mxu0 0.0
        %3671 = vmatprep.subr.mxu0 0.0
        %3672 = vmatpush1.msra.mxu0 0.0
        %3673 = vmatprep.subr.mxu0 0.0
        %3674 = vmatpush1.msra.mxu0 0.0
        %3675 = vmatprep.subr.mxu0 0.0
        %3676 = vmatpush1.msra.mxu0 0.0
        %3677 = vmatprep.subr.mxu0 0.0
        %3678 = vmatpush1.msra.mxu0 0.0
        %3679 = vmatprep.subr.mxu0 0.0
        %3680 = vmatpush1.msra.mxu0 0.0
        %3681 = vmatprep.subr.mxu0 0.0
        %3682 = vmatpush1.msra.mxu0 0.0
        %3683 = vmatprep.subr.mxu0 0.0
        %3684 = vmatpush1.msra.mxu0 0.0
        %3685 = vmatprep.subr.mxu0 0.0
        %3686 = vmatpush1.msra.mxu0 0.0
        %3687 = vmatprep.subr.mxu0 0.0
        %3688 = vmatpush1.msra.mxu0 0.0
        %3689 = vmatprep.subr.mxu0 0.0
        %3690 = vmatpush1.msra.mxu0 0.0
        %3691 = vmatprep.subr.mxu0 0.0
        %3692 = vmatpush1.msra.mxu0 0.0
        %3693 = vmatprep.subr.mxu0 0.0
        %3694 = vmatpush1.msra.mxu0 0.0
        %3695 = vmatprep.subr.mxu0 0.0
        %3696 = vmatpush1.msra.mxu0 0.0
        %3697 = vmatprep.subr.mxu0 0.0
        %3698 = vmatpush1.msra.mxu0 0.0
        %3699 = vmatprep.subr.mxu0 0.0
        %3700 = vmatpush1.msra.mxu0 0.0
        %3701 = vmatprep.subr.mxu0 0.0
        %3702 = vmatpush1.msra.mxu0 0.0
        %3703 = vmatprep.subr.mxu0 0.0
        %3704 = vmatpush1.msra.mxu0 0.0
        %3705 = vmatprep.subr.mxu0 0.0
        %3706 = vmatpush1.msra.mxu0 0.0
        %3707 = vmatprep.subr.mxu0 0.0
        %3708 = vmatpush1.msra.mxu0 0.0
        %3709 = vmatprep.subr.mxu0 0.0
        %3710 = vmatpush1.msra.mxu0 0.0
        %3711 = vmatprep.subr.mxu0 0.0
        %3712 = vmatpush1.msra.mxu0 0.0
        %3713 = vmatprep.subr.mxu0 0.0
        %3714 = vmatpush1.msra.mxu0 0.0
        %3715 = vmatprep.subr.mxu0 0.0
        %3716 = vmatpush1.msra.mxu0 0.0
        %3717 = vmatprep.mubr.f32.mxu0 0.0
        %3718 = vmatmul.mubr.f32.gmra.mrb[0].mxu0 %v3651
        %v3719 = vpop.f32.mrb[0].mxu0
        %v3720 = vadd.f32 0.0, %v3719
        %v3721 = vpop.f32.mrb[0].mxu0
        %3722 = vdwg.mxu0
        %v3723 = vadd.f32 %v3484, %v3720
        %3724 = vst.msk [vmem:[%s1275] sm:$0xff] %vm1559, %v2860
        %3725 = vst.msk [vmem:[%s1275 + $0x8] sm:$0xff] %vm1559, %v3022
        %3726 = vst.msk [vmem:[%s1275 + $0x10] sm:$0xff] %vm1559, %v3334
        %3727 = vst.msk [vmem:[%s1275 + $0x18] sm:$0xff] %vm1559, %v3573
        %v3728 = vadd.f32 %v3723, %v2540
        %v3729 = vld [vmem:[%s1097] sm:$0x1]
        %v3730 = vld [vmem:[%s1105] sm:$0x1]
        %v3731 = vsel %vm1344, %v3728, 0.0
        %3732 = vadd.xlane.f32.xlu0 %v3731
        %v3733 = vpop.xlane.xlu0 %3732
        %v3734 = vmul.f32 %v3733, %v2516
        %v3735 = vsub.f32 %v3728, %v3734
        %v3736 = vmul.f32 %v3735, %v3735
        %v3737 = vsel %vm1344, %v3736, 0.0
        %3738 = vadd.xlane.f32.xlu0 %v3737
        %v3739 = vpop.xlane.xlu0 %3738
        %v3740 = vmul.f32 %v3739, %v2516
        %v3741 = vadd.f32 %v3740, 1e-05
        %v3742 = vrsqrt.pop %v3741
        %v3743 = vmul.f32 %v3735, %v3742
        %v3745 = vlaneseq
        %v3746 = vshrl.u32 %v3745, 7
        %v3747 = vsub.s32 0, %v3746
        %v3748 = vrot.slane %v3729, %v3747
        %v3750 = vmul.f32 %v3743, %v3748
        %v3752 = vlaneseq
        %v3753 = vshrl.u32 %v3752, 7
        %v3754 = vsub.s32 0, %v3753
        %v3755 = vrot.slane %v3730, %v3754
        %v3757 = vadd.f32 %v3750, %v3755
        %v3758 = vld [vmem:[%s1114] sm:$0xff]
        %v3759 = vld [vmem:[%s1114 + $0x8] sm:$0xff]
        %v3760 = vld [vmem:[%s1114 + $0x10] sm:$0xff]
        %v3761 = vld [vmem:[%s1114 + $0x18] sm:$0xff]
        %v3762 = vld [vmem:[%s1122] sm:$0x1]
        %v3764 = vlaneseq
        %v3765 = vshrl.u32 %v3764, 7
        %v3766 = vsub.s32 0, %v3765
        %v3767 = vrot.slane %v3762, %v3766
        %v3770 = vsel %vm1344, %v3757, 0
        %3772 = vmatprep.subr.mxu0 0.0
        %3773 = vmatpush1.msra.mxu0 %v3758
        %3774 = vmatprep.subr.mxu0 0.0
        %3775 = vmatpush1.msra.mxu0 %v3759
        %3776 = vmatprep.subr.mxu0 0.0
        %3777 = vmatpush1.msra.mxu0 %v3760
        %3778 = vmatprep.subr.mxu0 0.0
        %3779 = vmatpush1.msra.mxu0 %v3761
        %3780 = vmatprep.subr.mxu0 0.0
        %3781 = vmatpush1.msra.mxu0 0.0
        %3782 = vmatprep.subr.mxu0 0.0
        %3783 = vmatpush1.msra.mxu0 0.0
        %3784 = vmatprep.subr.mxu0 0.0
        %3785 = vmatpush1.msra.mxu0 0.0
        %3786 = vmatprep.subr.mxu0 0.0
        %3787 = vmatpush1.msra.mxu0 0.0
        %3788 = vmatprep.subr.mxu0 0.0
        %3789 = vmatpush1.msra.mxu0 0.0
        %3790 = vmatprep.subr.mxu0 0.0
        %3791 = vmatpush1.msra.mxu0 0.0
        %3792 = vmatprep.subr.mxu0 0.0
        %3793 = vmatpush1.msra.mxu0 0.0
        %3794 = vmatprep.subr.mxu0 0.0
        %3795 = vmatpush1.msra.mxu0 0.0
        %3796 = vmatprep.subr.mxu0 0.0
        %3797 = vmatpush1.msra.mxu0 0.0
        %3798 = vmatprep.subr.mxu0 0.0
        %3799 = vmatpush1.msra.mxu0 0.0
        %3800 = vmatprep.subr.mxu0 0.0
        %3801 = vmatpush1.msra.mxu0 0.0
        %3802 = vmatprep.subr.mxu0 0.0
        %3803 = vmatpush1.msra.mxu0 0.0
        %3804 = vmatprep.subr.mxu0 0.0
        %3805 = vmatpush1.msra.mxu0 0.0
        %3806 = vmatprep.subr.mxu0 0.0
        %3807 = vmatpush1.msra.mxu0 0.0
        %3808 = vmatprep.subr.mxu0 0.0
        %3809 = vmatpush1.msra.mxu0 0.0
        %3810 = vmatprep.subr.mxu0 0.0
        %3811 = vmatpush1.msra.mxu0 0.0
        %3812 = vmatprep.subr.mxu0 0.0
        %3813 = vmatpush1.msra.mxu0 0.0
        %3814 = vmatprep.subr.mxu0 0.0
        %3815 = vmatpush1.msra.mxu0 0.0
        %3816 = vmatprep.subr.mxu0 0.0
        %3817 = vmatpush1.msra.mxu0 0.0
        %3818 = vmatprep.subr.mxu0 0.0
        %3819 = vmatpush1.msra.mxu0 0.0
        %3820 = vmatprep.subr.mxu0 0.0
        %3821 = vmatpush1.msra.mxu0 0.0
        %3822 = vmatprep.subr.mxu0 0.0
        %3823 = vmatpush1.msra.mxu0 0.0
        %3824 = vmatprep.subr.mxu0 0.0
        %3825 = vmatpush1.msra.mxu0 0.0
        %3826 = vmatprep.subr.mxu0 0.0
        %3827 = vmatpush1.msra.mxu0 0.0
        %3828 = vmatprep.subr.mxu0 0.0
        %3829 = vmatpush1.msra.mxu0 0.0
        %3830 = vmatprep.subr.mxu0 0.0
        %3831 = vmatpush1.msra.mxu0 0.0
        %3832 = vmatprep.subr.mxu0 0.0
        %3833 = vmatpush1.msra.mxu0 0.0
        %3834 = vmatprep.subr.mxu0 0.0
        %3835 = vmatpush1.msra.mxu0 0.0
        %3836 = vmatprep.mubr.f32.mxu0 0.0
        %3837 = vmatmul.mubr.f32.gmra.mrb[0].mxu0 %v3770
        %v3838 = vpop.f32.mrb[0].mxu0
        %v3839 = vadd.f32 %v3767, %v3838
        %v3840 = vpop.f32.mrb[0].mxu0
        %3841 = vdwg.mxu0
        %v3842 = vmax.f32 %v3839, 0.0
        %v3843 = vld [vmem:[%s1301] sm:$0xff]
        %v3844 = vld [vmem:[%s1301 + $0x8] sm:$0xff]
        %v3845 = vld [vmem:[%s1301 + $0x10] sm:$0xff]
        %v3846 = vld [vmem:[%s1301 + $0x18] sm:$0xff]
        %v3847 = vld [vmem:[%s1301 + $0x20] sm:$0xff]
        %v3848 = vld [vmem:[%s1301 + $0x28] sm:$0xff]
        %v3849 = vld [vmem:[%s1301 + $0x30] sm:$0xff]
        %v3850 = vld [vmem:[%s1301 + $0x38] sm:$0xff]
        %v3851 = vld [vmem:[%s1304] sm:$0x1]
        %v3853 = vlaneseq
        %v3854 = vshrl.u32 %v3853, 7
        %v3855 = vsub.s32 0, %v3854
        %v3856 = vrot.slane %v3851, %v3855
        %vm3858 = vcmask 523264
        %v3860 = vsel %vm3858, %v3842, 0
        %3862 = vmatprep.subr.mxu0 0.0
        %3863 = vmatpush1.msra.mxu0 %v3843
        %3864 = vmatprep.subr.mxu0 0.0
        %3865 = vmatpush1.msra.mxu0 %v3844
        %3866 = vmatprep.subr.mxu0 0.0
        %3867 = vmatpush1.msra.mxu0 %v3845
        %3868 = vmatprep.subr.mxu0 0.0
        %3869 = vmatpush1.msra.mxu0 %v3846
        %3870 = vmatprep.subr.mxu0 0.0
        %3871 = vmatpush1.msra.mxu0 %v3847
        %3872 = vmatprep.subr.mxu0 0.0
        %3873 = vmatpush1.msra.mxu0 %v3848
        %3874 = vmatprep.subr.mxu0 0.0
        %3875 = vmatpush1.msra.mxu0 %v3849
        %3876 = vmatprep.subr.mxu0 0.0
        %3877 = vmatpush1.msra.mxu0 %v3850
        %3878 = vmatprep.subr.mxu0 0.0
        %3879 = vmatpush1.msra.mxu0 0.0
        %3880 = vmatprep.subr.mxu0 0.0
        %3881 = vmatpush1.msra.mxu0 0.0
        %3882 = vmatprep.subr.mxu0 0.0
        %3883 = vmatpush1.msra.mxu0 0.0
        %3884 = vmatprep.subr.mxu0 0.0
        %3885 = vmatpush1.msra.mxu0 0.0
        %3886 = vmatprep.subr.mxu0 0.0
        %3887 = vmatpush1.msra.mxu0 0.0
        %3888 = vmatprep.subr.mxu0 0.0
        %3889 = vmatpush1.msra.mxu0 0.0
        %3890 = vmatprep.subr.mxu0 0.0
        %3891 = vmatpush1.msra.mxu0 0.0
        %3892 = vmatprep.subr.mxu0 0.0
        %3893 = vmatpush1.msra.mxu0 0.0
        %3894 = vmatprep.subr.mxu0 0.0
        %3895 = vmatpush1.msra.mxu0 0.0
        %3896 = vmatprep.subr.mxu0 0.0
        %3897 = vmatpush1.msra.mxu0 0.0
        %3898 = vmatprep.subr.mxu0 0.0
        %3899 = vmatpush1.msra.mxu0 0.0
        %3900 = vmatprep.subr.mxu0 0.0
        %3901 = vmatpush1.msra.mxu0 0.0
        %3902 = vmatprep.subr.mxu0 0.0
        %3903 = vmatpush1.msra.mxu0 0.0
        %3904 = vmatprep.subr.mxu0 0.0
        %3905 = vmatpush1.msra.mxu0 0.0
        %3906 = vmatprep.subr.mxu0 0.0
        %3907 = vmatpush1.msra.mxu0 0.0
        %3908 = vmatprep.subr.mxu0 0.0
        %3909 = vmatpush1.msra.mxu0 0.0
        %3910 = vmatprep.subr.mxu0 0.0
        %3911 = vmatpush1.msra.mxu0 0.0
        %3912 = vmatprep.subr.mxu0 0.0
        %3913 = vmatpush1.msra.mxu0 0.0
        %3914 = vmatprep.subr.mxu0 0.0
        %3915 = vmatpush1.msra.mxu0 0.0
        %3916 = vmatprep.subr.mxu0 0.0
        %3917 = vmatpush1.msra.mxu0 0.0
        %3918 = vmatprep.subr.mxu0 0.0
        %3919 = vmatpush1.msra.mxu0 0.0
        %3920 = vmatprep.subr.mxu0 0.0
        %3921 = vmatpush1.msra.mxu0 0.0
        %3922 = vmatprep.subr.mxu0 0.0
        %3923 = vmatpush1.msra.mxu0 0.0
        %3924 = vmatprep.subr.mxu0 0.0
        %3925 = vmatpush1.msra.mxu0 0.0
        %3926 = vmatprep.mubr.f32.mxu0 0.0
        %3927 = vmatmul.mubr.f32.gmra.mrb[0].mxu0 %v3860
        %v3928 = vpop.f32.mrb[0].mxu0
        %v3929 = vadd.f32 %v3856, %v3928
        %v3930 = vpop.f32.mrb[0].mxu0
        %3931 = vdwg.mxu0
        %v3932 = vadd.f32 %v3929, %v3757
        %v3933 = vld [vmem:[%s1307] sm:$0x1]
        %v3934 = vld [vmem:[%s1310] sm:$0x1]
        %v3935 = vsel %vm1344, %v3932, 0.0
        %3936 = vadd.xlane.f32.xlu0 %v3935
        %v3937 = vpop.xlane.xlu0 %3936
        %v3938 = vmul.f32 %v3937, %v2516
        %v3939 = vsub.f32 %v3932, %v3938
        %v3940 = vmul.f32 %v3939, %v3939
        %v3941 = vsel %vm1344, %v3940, 0.0
        %3942 = vadd.xlane.f32.xlu0 %v3941
        %v3943 = vpop.xlane.xlu0 %3942
        %v3944 = vmul.f32 %v3943, %v2516
        %v3945 = vadd.f32 %v3944, 1e-05
        %v3946 = vrsqrt.pop %v3945
        %v3947 = vmul.f32 %v3939, %v3946
        %v3949 = vlaneseq
        %v3950 = vshrl.u32 %v3949, 7
        %v3951 = vsub.s32 0, %v3950
        %v3952 = vrot.slane %v3933, %v3951
        %v3954 = vmul.f32 %v3947, %v3952
        %v3956 = vlaneseq
        %v3957 = vshrl.u32 %v3956, 7
        %v3958 = vsub.s32 0, %v3957
        %v3959 = vrot.slane %v3934, %v3958
        %v3961 = vadd.f32 %v3954, %v3959
        %3962 = vst.msk [vmem:[#allocation2] sm:$0xff] %vm1344, %v3961
        %3963 = vst.msk [vmem:[%s1268] sm:$0xff] %vm1344, %v3961
        %s3964 = sand.u32 %s649, 1
        %s3965 = scalar_lea.sflag [#allocation5], %s3964
        %s3966 = sand.u32 %s649, 1
        %s3967 = smul.addr %s3966, 8
        %s3968 = scalar_lea.vmem [#allocation24], %s3967
        %s3969 = sand.u32 %s677, 1
        %s3970 = scalar_lea.sflag [#allocation26], %s3969
        %s3971 = sand.u32 %s677, 1
        %s3972 = smul.addr %s3971, 32
        %s3973 = scalar_lea.vmem [#allocation25], %s3972
        // Predicated region
        $region165: #{tpu_custom_call.1} parent=107 // pred_check
          %p3974 = pneg %p659
        $region166: #{tpu_custom_call.1} parent=107 // pred_check_branch
          %3976 = sbr.rel (%p3974) target = $region168
        $region167: #{tpu_custom_call.1} parent=107 // pred_region
          %s3978 = ssub.s32 128, 128
          %3979 = vsyncadd %s3965, %s3978
          %s3980 = smul.addr %s66, 128
          %s3981 = scalar_lea.hbm %s22, %s3980
          %s3983 = sshll.u32 %s3968, 4
          %s3984 = int_to_ptr.vmem [resolvable:$true] %s3983
          %3986 = dma.vmem_to_hbm [thread:$0]  %s3984, 128, %s3981, %s3965
        $region168: #{tpu_custom_call.1} parent=107 // pred_fallthru
          _
        // Predicated region
        $region169: #{tpu_custom_call.1} parent=107 // pred_check
          %p3987 = pneg %p687
        $region170: #{tpu_custom_call.1} parent=107 // pred_check_branch
          %3989 = sbr.rel (%p3987) target = $region172
        $region171: #{tpu_custom_call.1} parent=107 // pred_region
          %s3991 = ssub.s32 512, 512
          %3992 = vsyncadd %s3970, %s3991
          %s3993 = smul.addr %s66, 4
          %s3994 = smul.addr %s67, 8
          %s3995 = sadd.s32 %s3993, %s3994
          %s3996 = smul.addr %s3995, 128
          %s3997 = scalar_lea.hbm %s23, %s3996
          %s3998 = sshll.u32 %s3973, 4
          %s3999 = int_to_ptr.vmem [resolvable:$true] %s3998
          %4004 = dma.vmem_to_hbm [thread:$0]  %s3999, 512, %s3997, %s3970, 128, 128, 8
        $region172: #{tpu_custom_call.1} parent=107 // pred_fallthru
          _
      $region108: #{tpu_custom_call.1} parent=5 // pred_fallthru
        _
      %p4005 = scmp.le.s32.totalorder 2, %s57
      // Predicated region
      $region173: #{tpu_custom_call.1} parent=5 // pred_check
        %p4006 = pneg %p4005
      $region174: #{tpu_custom_call.1} parent=5 // pred_check_branch
        %4008 = sbr.rel (%p4006) target = $region176
      $region175: #{tpu_custom_call.1} parent=5 // pred_region
        %s4009 = ssub.s32 %s57, 2
        // Predicated region
        $region177: #{tpu_custom_call.1} parent=175 // pred_check
          %p4010 = pneg %p665
        $region178: #{tpu_custom_call.1} parent=175 // pred_check_branch
          %4012 = sbr.rel (%p4010) target = $region180
        $region179: #{tpu_custom_call.1} parent=175 // pred_region
          %s4013 = sand.u32 %s650, 1
          %s4014 = scalar_lea.sflag [#allocation5], %s4013
          %s4015 = sand.u32 %s650, 1
          %s4016 = smul.addr %s4015, 8
          %s4017 = scalar_lea.vmem [#allocation24], %s4016
          %4018 = dma.done %s4014, 128
        $region180: #{tpu_custom_call.1} parent=175 // pred_fallthru
          _
        // Predicated region
        $region181: #{tpu_custom_call.1} parent=175 // pred_check
          %p4019 = pneg %p693
        $region182: #{tpu_custom_call.1} parent=175 // pred_check_branch
          %4021 = sbr.rel (%p4019) target = $region184
        $region183: #{tpu_custom_call.1} parent=175 // pred_region
          %s4022 = sand.u32 %s678, 1
          %s4023 = scalar_lea.sflag [#allocation26], %s4022
          %s4024 = sand.u32 %s678, 1
          %s4025 = smul.addr %s4024, 32
          %s4026 = scalar_lea.vmem [#allocation25], %s4025
          %4027 = dma.done %s4023, 512
        $region184: #{tpu_custom_call.1} parent=175 // pred_fallthru
          _
      $region176: #{tpu_custom_call.1} parent=5 // pred_fallthru
        _
    $region6: #{tpu_custom_call.1} parent=1 // loop_footer
      %s61 = sadd.s32 1, %s57
    $region7: #{tpu_custom_call.1} parent=1 // loop_footer_branch
      %56 = sbr.rel target = $region3
    $region8: #{tpu_custom_call.1} parent=1 // loop_exit
      _
    %4028 = vsyncpa [#allocation4], 1
    %s4029 = scalar_lea.sflag [#allocation4], 1
    %4030 = vsyncpa %s4029, 1
    %4031 = vsyncpa [#allocation7], 1
    %s4032 = scalar_lea.sflag [#allocation7], 1
    %4033 = vsyncpa %s4032, 1
    %4034 = vsyncpa [#allocation10], 1
    %s4035 = scalar_lea.sflag [#allocation10], 1
    %4036 = vsyncpa %s4035, 1
    %4037 = vsyncpa [#allocation13], 1
    %s4038 = scalar_lea.sflag [#allocation13], 1
    %4039 = vsyncpa %s4038, 1
    %4040 = vsyncpa [#allocation16], 1
    %s4041 = scalar_lea.sflag [#allocation16], 1
    %4042 = vsyncpa %s4041, 1
    %4043 = vsyncpa [#allocation19], 1
    %s4044 = scalar_lea.sflag [#allocation19], 1
    %4045 = vsyncpa %s4044, 1
    %4046 = vsyncpa [#allocation22], 1
    %s4047 = scalar_lea.sflag [#allocation22], 1
    %4048 = vsyncpa %s4047, 1
    %4049 = vsyncpa [#allocation5], 1
    %s4050 = scalar_lea.sflag [#allocation5], 1
    %4051 = vsyncpa %s4050, 1
    %4052 = vsyncpa [#allocation26], 1
    %s4053 = scalar_lea.sflag [#allocation26], 1
    %4054 = vsyncpa %s4053, 1

</llo_original>
